<compile_context>
chip_gen: v7x
topology: tpu7x:2x2x1
jax: 0.10.0
libtpu: 0.0.40
codegen_flags: <defaults>
</compile_context>

<pallas_src>
import math

import jax
import jax.numpy as jnp
from jax import lax
from jax.experimental import pallas as pl
from jax.experimental.pallas import tpu as pltpu

# ----------------------------- small config ---------------------------------
BATCH = 2
SEQ = 8                 # num_frames; query length == key/value length (CoDA gate
                        # requires Lq == Lk, as in the reference broadcast)
WIDTH = 128             # embed_dim (lane-dense: multiple of 128)
HEADS = 4
HEAD_DIM = WIDTH // HEADS
MLP_HIDDEN = 4 * WIDTH
BLOCKS = 2              # number of ResidualAttentionBlocks (len(layer_indices))
EPS = 1e-5              # torch nn.LayerNorm default eps
NEG_INF = -1e30         # stands in for float('-inf') in masked_fill
ROWS = BATCH * SEQ      # batch folded onto the sublane/row axis


# ----------------------------- kernel ----------------------------------------
def _layernorm(x, g, b):
    xf = x.astype(jnp.float32)
    mean = jnp.mean(xf, axis=-1, keepdims=True)
    var = jnp.mean((xf - mean) ** 2, axis=-1, keepdims=True)
    return (xf - mean) * lax.rsqrt(var + EPS) * g + b


def _transformer_kernel(
    x_ref, k_ref, v_ref, m_row_ref, m_col_ref, vecs_ref,
    wi_ref, wo_ref, w1_ref, w2_ref,
    out_ref, x_carry,
):
    """One grid step = one ResidualAttentionBlock, all batch rows at once."""
    j = pl.program_id(0)          # block index (sequential; x carried in VMEM)

    @pl.when(j == 0)
    def _():                      # load the initial query sequence (all batches)
        x_carry[...] = x_ref[...]

    x = x_carry[...]                                        # (N*L, D) f32

    # packed per-block vectors: one DMA instead of eight tiny ones
    vecs = vecs_ref[...]                                    # (8, MLP_HIDDEN) f32
    ln1_g = vecs[0:1, :WIDTH];  ln1_b = vecs[1:2, :WIDTH]
    out_b = vecs[2:3, :WIDTH];  ln2_g = vecs[3:4, :WIDTH]
    ln2_b = vecs[4:5, :WIDTH];  fc2_b = vecs[5:6, :WIDTH]
    in_b  = vecs[6:7, :2 * WIDTH]
    fc1_b = vecs[7:8, :MLP_HIDDEN]

    # ---------------- attention branch: x + attn(ln_1(x), k, v, m) -----------
    xn = _layernorm(x, ln1_g, ln1_b)

    # in_proj(q): columns [0:D] = softmax-query heads, [D:2D] = CoDA-query heads
    # (head-major h*HEAD_DIM + c); equivalent to torch's interleaved
    # view(N,L,H,2*Dh).split(Dh,-1) after a column permutation of the weight.
    qproj = jnp.dot(xn.astype(jnp.bfloat16), wi_ref[...],
                    preferred_element_type=jnp.float32) + in_b   # (N*L, 2D) f32

    k_all = k_ref[...]                                      # (N, L, D) f32
    v_all = v_ref[...]                                      # (N, L, D) f32
    m_row_all = m_row_ref[...]                              # (N, 1, L) 1.0 = valid
    m_col_all = m_col_ref[...]                              # (N, L, 1)

    scale = 1.0 / math.sqrt(HEAD_DIM)
    cdims = (((1,), (1,)), ((), ()))                        # contract last dims

    batch_mixes = []
    for n in range(BATCH):                                  # static: N=2
        q_n = qproj[n * SEQ:(n + 1) * SEQ]                  # (L, 2D)
        k_n = k_all[n]
        v_n = v_all[n]
        m_row = m_row_all[n]                                # (1, L)
        m_col = m_col_all[n]                                # (L, 1)

        head_mixes = []
        for h in range(HEADS):                              # static: H=4
            lo = h * HEAD_DIM
            hi = lo + HEAD_DIM
            q0h = q_n[:, lo:hi]                             # softmax query, head h
            q1h = q_n[:, WIDTH + lo:WIDTH + hi]             # CoDA query, head h
            kh = k_n[:, lo:hi]
            vh = v_n[:, lo:hi]

            # fused QK: one (2L, Dh) @ (Dh, L) push for both affinities
            q01 = jnp.concatenate([q0h, q1h], axis=0) * scale          # (2L, Dh)
            scores = lax.dot_general(q01.astype(jnp.bfloat16),
                                     kh.astype(jnp.bfloat16), cdims,
                                     preferred_element_type=jnp.float32)  # (2L, L)

            # -- masked softmax affinity (smax) --
            s0 = jnp.where(m_row > 0.5, scores[:SEQ], NEG_INF)
            s0 = s0 - jnp.max(s0, axis=-1, keepdims=True)
            p0 = jnp.exp(s0)
            p0 = p0 * pl.reciprocal(jnp.sum(p0, axis=-1, keepdims=True),
                                    approx=True)

            # -- Compositional De-Attention affinity (coda) --
            s1 = jnp.tanh(scores[SEQ:])
            gdist = -jnp.sum(jnp.abs(q1h - kh), axis=-1, keepdims=True) * scale
            gate = 2.0 * jax.nn.sigmoid(gdist) * m_col                  # (L, 1)

            # fused PV: aff = 0.5*(p0 + s1*gate_row); key-wise gate folded into V
            # (s1*gate_row)@v == s1@(gate_col*v)
            pcat = jnp.concatenate([p0, s1], axis=1).astype(jnp.bfloat16)      # (L, 2L)
            vcat = jnp.concatenate([vh, gate * vh], axis=0).astype(jnp.bfloat16)  # (2L, Dh)
            mix_h = 0.5 * jnp.dot(pcat, vcat,
                                  preferred_element_type=jnp.float32)   # (L, Dh)
            head_mixes.append(mix_h)

        batch_mixes.append(jnp.concatenate(head_mixes, axis=-1))        # (L, D)

    mix = jnp.concatenate(batch_mixes, axis=0)                          # (N*L, D)

    # single out_proj matmul over all heads / batches
    attn = jnp.dot(mix.astype(jnp.bfloat16), wo_ref[...],
                   preferred_element_type=jnp.float32) + out_b
    x = x + attn

    # ---------------- MLP branch: x + c_proj(QuickGELU(c_fc(ln_2(x)))) -------
    xn2 = _layernorm(x, ln2_g, ln2_b)
    h1 = jnp.dot(xn2.astype(jnp.bfloat16), w1_ref[...],
                 preferred_element_type=jnp.float32) + fc1_b
    h1 = h1 * jax.nn.sigmoid(1.702 * h1)                    # QuickGELU
    # TODO(synk): nn.Dropout(config.dropout) is identity in eval mode; not applied.
    h2 = jnp.dot(h1.astype(jnp.bfloat16), w2_ref[...],
                 preferred_element_type=jnp.float32) + fc2_b
    x = x + h2

    out_ref[...] = x               # result.append(x) for this block
    x_carry[...] = x               # carry into the next block
    # TODO(synk): augment_query_embeddings (config.op_mode.aug_query) not modeled
    # (defaults off); 'frame'/'temporal' attn_mode variants not modeled (default '').


# ----------------------------- wrapper ----------------------------------------
def transformer_forward(x, kvs, m, params):
    """x: (N, L, D) queries; kvs: list (len BLOCKS) of {'k','v'} each (N, L, H, Dh);
    m: (N, L) bool (True = valid frame).  Returns (N, BLOCKS*L, D), matching
    torch.cat([x_after_block_i for i], dim=1)."""
    N, Lq, D = x.shape
    Lk = kvs[0]["k"].shape[1]
    HID = MLP_HIDDEN

    # stack per-block k/v, merge heads onto the lane axis (feature = h*Dh + c)
    k_all = jnp.stack([kv["k"].reshape(N, Lk, D) for kv in kvs], axis=0)
    v_all = jnp.stack([kv["v"].reshape(N, Lk, D) for kv in kvs], axis=0)
    m_f = m.astype(jnp.float32)
    m_row = m_f.reshape(N, 1, Lk)
    m_col = m_f.reshape(N, Lk, 1)

    x_rows = x.reshape(N * Lq, D)                           # batch folded onto rows

    p = params

    # bf16 weights: halve HBM bytes, bf16-native MXU (f32 accumulation in-kernel)
    wi = p["in_w"].astype(jnp.bfloat16)                     # (B, D, 2D)
    wo = p["out_w"].astype(jnp.bfloat16)                    # (B, D, D)
    w1 = p["fc1_w"].astype(jnp.bfloat16)                    # (B, D, HID)
    w2 = p["fc2_w"].astype(jnp.bfloat16)                    # (B, HID, D)

    # pack the eight tiny per-block vectors into one (B, 8, HID) f32 array
    def pad_to(a, width):
        return jnp.pad(a, ((0, 0), (0, 0), (0, width - a.shape[-1])))
    vecs = jnp.concatenate(
        [pad_to(p["ln1_g"], HID), pad_to(p["ln1_b"], HID), pad_to(p["out_b"], HID),
         pad_to(p["ln2_g"], HID), pad_to(p["ln2_b"], HID), pad_to(p["fc2_b"], HID),
         pad_to(p["in_b"], HID), p["fc1_b"]], axis=1)       # (B, 8, HID)

    const3 = lambda j: (0, 0, 0)
    per_block = lambda j: (j, 0, 0, 0)
    per_block3 = lambda j: (j, 0, 0)

    in_specs = [
        pl.BlockSpec((N * Lq, D), lambda j: (0, 0)),        # x (constant -> 1 fetch)
        pl.BlockSpec((None, N, Lk, D), per_block),          # k (per block)
        pl.BlockSpec((None, N, Lk, D), per_block),          # v
        pl.BlockSpec((N, 1, Lk), const3),                   # mask (row layout)
        pl.BlockSpec((N, Lk, 1), const3),                   # mask (col layout)
        pl.BlockSpec((None, 8, HID), per_block3),           # packed LN/bias vectors
        pl.BlockSpec((None, D, 2 * D), per_block3),         # in_proj W   (bf16)
        pl.BlockSpec((None, D, D), per_block3),             # out_proj W  (bf16)
        pl.BlockSpec((None, D, HID), per_block3),           # c_fc W      (bf16)
        pl.BlockSpec((None, HID, D), per_block3),           # c_proj W    (bf16)
    ]
    out_spec = pl.BlockSpec((None, N * Lq, D), lambda j: (j, 0, 0))

    out = pl.pallas_call(
        _transformer_kernel,
        out_shape=jax.ShapeDtypeStruct((BLOCKS, N * Lq, D), jnp.float32),
        grid=(BLOCKS,),
        in_specs=in_specs,
        out_specs=out_spec,
        scratch_shapes=[pltpu.VMEM((N * Lq, D), jnp.float32)],  # x carried across blocks
        compiler_params=pltpu.CompilerParams(
            dimension_semantics=("arbitrary",)),
    )(x_rows, k_all, v_all, m_row, m_col, vecs, wi, wo, w1, w2)

    # (BLOCKS, N*Lq, D) -> torch.cat(result, dim=1) layout (N, BLOCKS*Lq, D)
    return out.reshape(BLOCKS, N, Lq, D).transpose(1, 0, 2, 3).reshape(N, BLOCKS * Lq, D)


# ----------------------------- pure-JAX reference -----------------------------
def transformer_reference(x, kvs, m, params):
    N, Lq, D = x.shape
    mf = m.astype(jnp.float32)
    scale = 1.0 / math.sqrt(HEAD_DIM)

    def ln(z, g, b):
        mu = jnp.mean(z, -1, keepdims=True)
        var = jnp.mean((z - mu) ** 2, -1, keepdims=True)
        return (z - mu) / jnp.sqrt(var + EPS) * g + b

    outs = []
    for b in range(BLOCKS):
        k_ = kvs[b]["k"]                                     # (N, L, H, Dh)
        v_ = kvs[b]["v"]
        xn = ln(x, params["ln1_g"][b, 0], params["ln1_b"][b, 0])
        qproj = xn @ params["in_w"][b] + params["in_b"][b, 0]
        q0 = qproj[..., :D].reshape(N, Lq, HEADS, HEAD_DIM)
        q1 = qproj[..., D:].reshape(N, Lq, HEADS, HEAD_DIM)

        s0 = jnp.einsum("nqhc,nkhc->nqkh", q0 * scale, k_)
        s0 = jnp.where(mf[:, None, :, None] > 0.5, s0, NEG_INF)
        a0 = jax.nn.softmax(s0, axis=2)

        s1 = jnp.tanh(jnp.einsum("nqhc,nkhc->nqkh", q1 * scale, k_))
        gd = -jnp.sum(jnp.abs(q1 - k_), axis=-1) * scale     # (N, L, H)
        gate = 2.0 * jax.nn.sigmoid(gd)[:, None] * mf[:, None, :, None]
        aff = 0.5 * (a0 + s1 * gate)

        mix = jnp.einsum("nqlh,nlhc->nqhc", aff, v_).reshape(N, Lq, D)
        x = x + mix @ params["out_w"][b] + params["out_b"][b, 0]

        xn2 = ln(x, params["ln2_g"][b, 0], params["ln2_b"][b, 0])
        h1 = xn2 @ params["fc1_w"][b] + params["fc1_b"][b, 0]
        h1 = h1 * jax.nn.sigmoid(1.702 * h1)
        x = x + h1 @ params["fc2_w"][b] + params["fc2_b"][b, 0]
        outs.append(x)
    return jnp.concatenate(outs, axis=1)


# ----------------------------- parameter init ---------------------------------
def init_params(key):
    """Synthetic weights (stands in for CLIP/DINOv2 reference-layer init).
    Linear weights are stored (in_features, out_features) = torch weight.T;
    in_w columns are [smax-query heads | coda-query heads], head-major."""
    D, HID = WIDTH, MLP_HIDDEN
    keys = jax.random.split(key, BLOCKS * 8)

    def nrm(k, shape, std=0.02):
        return (std * jax.random.normal(k, shape)).astype(jnp.float32)

    stk = lambda lst: jnp.stack(lst, axis=0)
    in_w, in_b, out_w, out_b, fc1_w, fc1_b, fc2_w, fc2_b = ([] for _ in range(8))
    for b in range(BLOCKS):
        kb = keys[b * 8:(b + 1) * 8]
        in_w.append(nrm(kb[0], (D, 2 * D)));   in_b.append(nrm(kb[1], (1, 2 * D)))
        out_w.append(nrm(kb[2], (D, D)));      out_b.append(nrm(kb[3], (1, D)))
        fc1_w.append(nrm(kb[4], (D, HID)));    fc1_b.append(nrm(kb[5], (1, HID)))
        fc2_w.append(nrm(kb[6], (HID, D)));    fc2_b.append(nrm(kb[7], (1, D)))

    ones = jnp.ones((BLOCKS, 1, D), jnp.float32)
    zeros = jnp.zeros((BLOCKS, 1, D), jnp.float32)
    return {
        "ln1_g": ones, "ln1_b": zeros,
        "in_w": stk(in_w), "in_b": stk(in_b),
        "out_w": stk(out_w), "out_b": stk(out_b),
        "ln2_g": ones, "ln2_b": zeros,
        "fc1_w": stk(fc1_w), "fc1_b": stk(fc1_b),
        "fc2_w": stk(fc2_w), "fc2_b": stk(fc2_b),
    }


if __name__ == "__main__":
    key = jax.random.PRNGKey(0)
    kp, kx, kk, kv, _ = jax.random.split(key, 5)
    params = init_params(kp)

    x = jax.random.normal(kx, (BATCH, SEQ, WIDTH), dtype=jnp.float32)
    kkeys = jax.random.split(kk, BLOCKS)
    vkeys = jax.random.split(kv, BLOCKS)
    kvs = [{"k": jax.random.normal(kkeys[b], (BATCH, SEQ, HEADS, HEAD_DIM), jnp.float32),
            "v": jax.random.normal(vkeys[b], (BATCH, SEQ, HEADS, HEAD_DIM), jnp.float32)}
           for b in range(BLOCKS)]
    # frame-validity mask: last two frames of batch element 1 are padding
    m = jnp.ones((BATCH, SEQ), dtype=bool).at[1, SEQ - 2:].set(False)

    out = transformer_forward(x, kvs, m, params)
    jax.block_until_ready(out)

    assert out.shape == (BATCH, BLOCKS * SEQ, WIDTH)
    assert bool(jnp.all(jnp.isfinite(out)))

    ref = transformer_reference(x, kvs, m, params)
    max_err = float(jnp.max(jnp.abs(out - ref)))
    # NOTE: kernel uses bf16 MXU operands + approx reciprocal; reference is pure f32.
    assert max_err < 5e-2, f"mismatch vs pure-JAX reference: max |err| = {max_err}"

    print("KERNEL_OK")
</pallas_src>

<mosaic_0001>
module attributes {stable_mosaic.version = 11 : i64} {
  func.func @_transformer_kernel(%arg0: i32, %arg1: memref<16x128xf32, #tpu.memory_space<vmem>>, %arg2: memref<1x2x8x128xf32, #tpu.memory_space<vmem>>, %arg3: memref<1x2x8x128xf32, #tpu.memory_space<vmem>>, %arg4: memref<2x1x8xf32, #tpu.memory_space<vmem>>, %arg5: memref<2x8x1xf32, #tpu.memory_space<vmem>>, %arg6: memref<1x8x512xf32, #tpu.memory_space<vmem>>, %arg7: memref<1x128x256xbf16, #tpu.memory_space<vmem>>, %arg8: memref<1x128x128xbf16, #tpu.memory_space<vmem>>, %arg9: memref<1x128x512xbf16, #tpu.memory_space<vmem>>, %arg10: memref<1x512x128xbf16, #tpu.memory_space<vmem>>, %arg11: memref<1x16x128xf32, #tpu.memory_space<vmem>>, %arg12: memref<16x128xf32, #tpu.memory_space<vmem>>) attributes {dimension_semantics = [#tpu.dimension_semantics<arbitrary>], iteration_bounds = array<i64: 2>, scalar_prefetch = 0 : i64, scratch_operands = 1 : i64, tpu.core_type = #tpu.core_type<tc>, window_params = [{pipeline_mode = #tpu.pipeline_mode<synchronous>, transform_indices = @transform_0, window_bounds = array<i64: 16, 128>}, {transform_indices = @transform_1, window_bounds = array<i64: 1, 2, 8, 128>}, {transform_indices = @transform_2, window_bounds = array<i64: 1, 2, 8, 128>}, {pipeline_mode = #tpu.pipeline_mode<synchronous>, transform_indices = @transform_3, window_bounds = array<i64: 2, 1, 8>}, {pipeline_mode = #tpu.pipeline_mode<synchronous>, transform_indices = @transform_4, window_bounds = array<i64: 2, 8, 1>}, {transform_indices = @transform_5, window_bounds = array<i64: 1, 8, 512>}, {transform_indices = @transform_6, window_bounds = array<i64: 1, 128, 256>}, {transform_indices = @transform_7, window_bounds = array<i64: 1, 128, 128>}, {transform_indices = @transform_8, window_bounds = array<i64: 1, 128, 512>}, {transform_indices = @transform_9, window_bounds = array<i64: 1, 512, 128>}, {transform_indices = @transform_10, window_bounds = array<i64: 1, 16, 128>}]} {
    %c0_i32 = arith.constant 0 : i32
    %0 = arith.cmpi eq, %arg0, %c0_i32 : i32
    %1 = arith.extui %0 : i1 to i32
    %c0_i32_0 = arith.constant 0 : i32
    %2 = arith.cmpi ne, %1, %c0_i32_0 : i32
    scf.if %2 {
      %c0_155 = arith.constant 0 : index
      %c0_156 = arith.constant 0 : index
      %555 = vector.load %arg1[%c0_155, %c0_156] : memref<16x128xf32, #tpu.memory_space<vmem>>, vector<16x128xf32>
      %c0_157 = arith.constant 0 : index
      %c0_158 = arith.constant 0 : index
      %556 = vector.load %arg12[%c0_157, %c0_158] : memref<16x128xf32, #tpu.memory_space<vmem>>, vector<16x128xf32>
      tpu.vector_store %arg12[%c0_157, %c0_158], %555 {strides = array<i32>} : memref<16x128xf32, #tpu.memory_space<vmem>>, vector<16x128xf32>,
    } else {
    }
    %c0 = arith.constant 0 : index
    %c0_1 = arith.constant 0 : index
    %3 = vector.load %arg12[%c0, %c0_1] : memref<16x128xf32, #tpu.memory_space<vmem>>, vector<16x128xf32>
    %c0_2 = arith.constant 0 : index
    %c0_3 = arith.constant 0 : index
    %c0_4 = arith.constant 0 : index
    %4 = vector.load %arg6[%c0_2, %c0_3, %c0_4] : memref<1x8x512xf32, #tpu.memory_space<vmem>>, vector<1x8x512xf32>
    %5 = vector.shape_cast %4 : vector<1x8x512xf32> to vector<8x512xf32>
    %6 = vector.extract_strided_slice %5 {offsets = [0, 0], sizes = [1, 128], strides = [1, 1]} : vector<8x512xf32> to vector<1x128xf32>
    %7 = vector.extract_strided_slice %5 {offsets = [1, 0], sizes = [1, 128], strides = [1, 1]} : vector<8x512xf32> to vector<1x128xf32>
    %8 = vector.extract_strided_slice %5 {offsets = [2, 0], sizes = [1, 128], strides = [1, 1]} : vector<8x512xf32> to vector<1x128xf32>
    %9 = vector.extract_strided_slice %5 {offsets = [3, 0], sizes = [1, 128], strides = [1, 1]} : vector<8x512xf32> to vector<1x128xf32>
    %10 = vector.extract_strided_slice %5 {offsets = [4, 0], sizes = [1, 128], strides = [1, 1]} : vector<8x512xf32> to vector<1x128xf32>
    %11 = vector.extract_strided_slice %5 {offsets = [5, 0], sizes = [1, 128], strides = [1, 1]} : vector<8x512xf32> to vector<1x128xf32>
    %12 = vector.extract_strided_slice %5 {offsets = [6, 0], sizes = [1, 256], strides = [1, 1]} : vector<8x512xf32> to vector<1x256xf32>
    %13 = vector.extract_strided_slice %5 {offsets = [7, 0], sizes = [1, 512], strides = [1, 1]} : vector<8x512xf32> to vector<1x512xf32>
    %cst = arith.constant dense<0.000000e+00> : vector<16xf32>
    %14 = vector.multi_reduction <add>, %3, %cst [1] : vector<16x128xf32> to vector<16xf32>
    %15 = vector.shape_cast %14 : vector<16xf32> to vector<16x1xf32>
    %cst_5 = arith.constant 1.280000e+02 : f32
    %16 = vector.broadcast %cst_5 : f32 to vector<16x1xf32>
    %17 = arith.divf %15, %16 : vector<16x1xf32>
    %18 = vector.broadcast %17 : vector<16x1xf32> to vector<16x128xf32>
    %19 = arith.subf %3, %18 : vector<16x128xf32>
    %20 = arith.mulf %19, %19 : vector<16x128xf32>
    %cst_6 = arith.constant dense<0.000000e+00> : vector<16xf32>
    %21 = vector.multi_reduction <add>, %20, %cst_6 [1] : vector<16x128xf32> to vector<16xf32>
    %22 = vector.shape_cast %21 : vector<16xf32> to vector<16x1xf32>
    %cst_7 = arith.constant 1.280000e+02 : f32
    %23 = vector.broadcast %cst_7 : f32 to vector<16x1xf32>
    %24 = arith.divf %22, %23 : vector<16x1xf32>
    %25 = vector.broadcast %17 : vector<16x1xf32> to vector<16x128xf32>
    %26 = arith.subf %3, %25 : vector<16x128xf32>
    %cst_8 = arith.constant 9.99999974E-6 : f32
    %27 = vector.broadcast %cst_8 : f32 to vector<16x1xf32>
    %28 = arith.addf %24, %27 : vector<16x1xf32>
    %29 = math.rsqrt %28 : vector<16x1xf32>
    %30 = vector.broadcast %29 : vector<16x1xf32> to vector<16x128xf32>
    %31 = arith.mulf %26, %30 : vector<16x128xf32>
    %32 = vector.broadcast %6 : vector<1x128xf32> to vector<16x128xf32>
    %33 = arith.mulf %31, %32 : vector<16x128xf32>
    %34 = vector.broadcast %7 : vector<1x128xf32> to vector<16x128xf32>
    %35 = arith.addf %33, %34 : vector<16x128xf32>
    %36 = arith.truncf %35 : vector<16x128xf32> to vector<16x128xbf16>
    %c0_9 = arith.constant 0 : index
    %c0_10 = arith.constant 0 : index
    %c0_11 = arith.constant 0 : index
    %37 = vector.load %arg7[%c0_9, %c0_10, %c0_11] : memref<1x128x256xbf16, #tpu.memory_space<vmem>>, vector<1x128x256xbf16>
    %38 = vector.shape_cast %37 : vector<1x128x256xbf16> to vector<128x256xbf16>
    %cst_12 = arith.constant dense<0.000000e+00> : vector<16x256xf32>
    %39 = tpu.matmul %36, %38, %cst_12 {dimension_numbers = #tpu.dot_dimension_numbers<[1], [0], [0], [1], [0, 0, 1, 1], [], []>} : vector<16x128xbf16>, vector<128x256xbf16>, vector<16x256xf32> -> vector<16x256xf32>
    %40 = vector.broadcast %12 : vector<1x256xf32> to vector<16x256xf32>
    %41 = arith.addf %39, %40 : vector<16x256xf32>
    %c0_13 = arith.constant 0 : index
    %c0_14 = arith.constant 0 : index
    %c0_15 = arith.constant 0 : index
    %c0_16 = arith.constant 0 : index
    %42 = vector.load %arg2[%c0_13, %c0_14, %c0_15, %c0_16] : memref<1x2x8x128xf32, #tpu.memory_space<vmem>>, vector<1x2x8x128xf32>
    %43 = vector.shape_cast %42 : vector<1x2x8x128xf32> to vector<2x8x128xf32>
    %c0_17 = arith.constant 0 : index
    %c0_18 = arith.constant 0 : index
    %c0_19 = arith.constant 0 : index
    %c0_20 = arith.constant 0 : index
    %44 = vector.load %arg3[%c0_17, %c0_18, %c0_19, %c0_20] : memref<1x2x8x128xf32, #tpu.memory_space<vmem>>, vector<1x2x8x128xf32>
    %45 = vector.shape_cast %44 : vector<1x2x8x128xf32> to vector<2x8x128xf32>
    %c0_21 = arith.constant 0 : index
    %c0_22 = arith.constant 0 : index
    %c0_23 = arith.constant 0 : index
    %46 = vector.load %arg4[%c0_21, %c0_22, %c0_23] : memref<2x1x8xf32, #tpu.memory_space<vmem>>, vector<2x1x8xf32>
    %c0_24 = arith.constant 0 : index
    %c0_25 = arith.constant 0 : index
    %c0_26 = arith.constant 0 : index
    %47 = vector.load %arg5[%c0_24, %c0_25, %c0_26] : memref<2x8x1xf32, #tpu.memory_space<vmem>>, vector<2x8x1xf32>
    %48 = vector.extract_strided_slice %41 {offsets = [0, 0], sizes = [8, 256], strides = [1, 1]} : vector<16x256xf32> to vector<8x256xf32>
    %49 = vector.extract_strided_slice %43 {offsets = [0, 0, 0], sizes = [1, 8, 128], strides = [1, 1, 1]} : vector<2x8x128xf32> to vector<1x8x128xf32>
    %50 = vector.shape_cast %49 : vector<1x8x128xf32> to vector<8x128xf32>
    %51 = vector.extract_strided_slice %45 {offsets = [0, 0, 0], sizes = [1, 8, 128], strides = [1, 1, 1]} : vector<2x8x128xf32> to vector<1x8x128xf32>
    %52 = vector.shape_cast %51 : vector<1x8x128xf32> to vector<8x128xf32>
    %53 = vector.extract_strided_slice %46 {offsets = [0, 0, 0], sizes = [1, 1, 8], strides = [1, 1, 1]} : vector<2x1x8xf32> to vector<1x1x8xf32>
    %54 = vector.shape_cast %53 : vector<1x1x8xf32> to vector<1x8xf32>
    %55 = vector.extract_strided_slice %47 {offsets = [0, 0, 0], sizes = [1, 8, 1], strides = [1, 1, 1]} : vector<2x8x1xf32> to vector<1x8x1xf32>
    %56 = vector.shape_cast %55 : vector<1x8x1xf32> to vector<8x1xf32>
    %57 = vector.extract_strided_slice %48 {offsets = [0, 0], sizes = [8, 32], strides = [1, 1]} : vector<8x256xf32> to vector<8x32xf32>
    %58 = vector.extract_strided_slice %48 {offsets = [0, 128], sizes = [8, 32], strides = [1, 1]} : vector<8x256xf32> to vector<8x32xf32>
    %59 = vector.extract_strided_slice %50 {offsets = [0, 0], sizes = [8, 32], strides = [1, 1]} : vector<8x128xf32> to vector<8x32xf32>
    %60 = vector.extract_strided_slice %52 {offsets = [0, 0], sizes = [8, 32], strides = [1, 1]} : vector<8x128xf32> to vector<8x32xf32>
    %61 = tpu.concatenate %57, %58 in 0 : vector<8x32xf32>, vector<8x32xf32> -> vector<16x32xf32>
    %cst_27 = arith.constant 0.176776692 : f32
    %62 = vector.broadcast %cst_27 : f32 to vector<16x32xf32>
    %63 = arith.mulf %61, %62 : vector<16x32xf32>
    %64 = arith.truncf %63 : vector<16x32xf32> to vector<16x32xbf16>
    %65 = arith.truncf %59 : vector<8x32xf32> to vector<8x32xbf16>
    %cst_28 = arith.constant dense<0.000000e+00> : vector<16x8xf32>
    %66 = tpu.matmul %64, %65, %cst_28 {dimension_numbers = #tpu.dot_dimension_numbers<[1], [1], [0], [0], [0, 0, 1, 0], [], []>} : vector<16x32xbf16>, vector<8x32xbf16>, vector<16x8xf32> -> vector<16x8xf32>
    %cst_29 = arith.constant 5.000000e-01 : f32
    %67 = vector.broadcast %cst_29 : f32 to vector<1x8xf32>
    %68 = arith.cmpf ogt, %54, %67 : vector<1x8xf32>
    %69 = vector.extract_strided_slice %66 {offsets = [0, 0], sizes = [8, 8], strides = [1, 1]} : vector<16x8xf32> to vector<8x8xf32>
    %cst_30 = arith.constant -1.000000e+30 : f32
    %70 = vector.shape_cast %68 : vector<1x8xi1> to vector<1x8xi1>
    %71 = vector.broadcast %70 : vector<1x8xi1> to vector<8x8xi1>
    %72 = vector.broadcast %cst_30 : f32 to vector<8x8xf32>
    %73 = arith.select %71, %69, %72 : vector<8x8xi1>, vector<8x8xf32>
    %cst_31 = arith.constant dense<0xFF800000> : vector<8xf32>
    %74 = vector.multi_reduction <maximumf>, %73, %cst_31 [1] : vector<8x8xf32> to vector<8xf32>
    %75 = vector.shape_cast %74 : vector<8xf32> to vector<8x1xf32>
    %76 = vector.broadcast %75 : vector<8x1xf32> to vector<8x8xf32>
    %77 = arith.subf %73, %76 : vector<8x8xf32>
    %78 = math.exp %77 : vector<8x8xf32>
    %cst_32 = arith.constant dense<0.000000e+00> : vector<8xf32>
    %79 = vector.multi_reduction <add>, %78, %cst_32 [1] : vector<8x8xf32> to vector<8xf32>
    %80 = vector.shape_cast %79 : vector<8xf32> to vector<8x1xf32>
    %81 = tpu.reciprocal %80 {approx = true} : vector<8x1xf32> -> vector<8x1xf32>
    %82 = vector.broadcast %81 : vector<8x1xf32> to vector<8x8xf32>
    %83 = arith.mulf %78, %82 : vector<8x8xf32>
    %84 = vector.extract_strided_slice %66 {offsets = [8, 0], sizes = [8, 8], strides = [1, 1]} : vector<16x8xf32> to vector<8x8xf32>
    %85 = math.tanh %84 : vector<8x8xf32>
    %86 = arith.subf %58, %59 : vector<8x32xf32>
    %87 = math.absf %86 : vector<8x32xf32>
    %cst_33 = arith.constant dense<0.000000e+00> : vector<8xf32>
    %88 = vector.multi_reduction <add>, %87, %cst_33 [1] : vector<8x32xf32> to vector<8xf32>
    %89 = vector.shape_cast %88 : vector<8xf32> to vector<8x1xf32>
    %cst_34 = arith.constant 0.000000e+00 : f32
    %90 = vector.broadcast %cst_34 : f32 to vector<8x1xf32>
    %91 = arith.subf %90, %89 : vector<8x1xf32>
    %cst_35 = arith.constant 0.176776692 : f32
    %92 = vector.broadcast %cst_35 : f32 to vector<8x1xf32>
    %93 = arith.mulf %91, %92 : vector<8x1xf32>
    %94 = arith.negf %93 : vector<8x1xf32>
    %95 = math.exp %94 : vector<8x1xf32>
    %cst_36 = arith.constant 1.000000e+00 : f32
    %96 = vector.broadcast %cst_36 : f32 to vector<8x1xf32>
    %97 = arith.addf %96, %95 : vector<8x1xf32>
    %98 = arith.divf %96, %97 : vector<8x1xf32>
    %cst_37 = arith.constant 2.000000e+00 : f32
    %99 = vector.broadcast %cst_37 : f32 to vector<8x1xf32>
    %100 = arith.mulf %99, %98 : vector<8x1xf32>
    %101 = arith.mulf %100, %56 : vector<8x1xf32>
    %102 = tpu.concatenate %83, %85 in 1 : vector<8x8xf32>, vector<8x8xf32> -> vector<8x16xf32>
    %103 = arith.truncf %102 : vector<8x16xf32> to vector<8x16xbf16>
    %104 = vector.broadcast %101 : vector<8x1xf32> to vector<8x32xf32>
    %105 = arith.mulf %104, %60 : vector<8x32xf32>
    %106 = tpu.concatenate %60, %105 in 0 : vector<8x32xf32>, vector<8x32xf32> -> vector<16x32xf32>
    %107 = arith.truncf %106 : vector<16x32xf32> to vector<16x32xbf16>
    %cst_38 = arith.constant dense<0.000000e+00> : vector<8x32xf32>
    %108 = tpu.matmul %103, %107, %cst_38 {dimension_numbers = #tpu.dot_dimension_numbers<[1], [0], [0], [1], [0, 0, 1, 1], [], []>} : vector<8x16xbf16>, vector<16x32xbf16>, vector<8x32xf32> -> vector<8x32xf32>
    %cst_39 = arith.constant 5.000000e-01 : f32
    %109 = vector.broadcast %cst_39 : f32 to vector<8x32xf32>
    %110 = arith.mulf %109, %108 : vector<8x32xf32>
    %111 = vector.extract_strided_slice %48 {offsets = [0, 32], sizes = [8, 32], strides = [1, 1]} : vector<8x256xf32> to vector<8x32xf32>
    %112 = vector.extract_strided_slice %48 {offsets = [0, 160], sizes = [8, 32], strides = [1, 1]} : vector<8x256xf32> to vector<8x32xf32>
    %113 = vector.extract_strided_slice %50 {offsets = [0, 32], sizes = [8, 32], strides = [1, 1]} : vector<8x128xf32> to vector<8x32xf32>
    %114 = vector.extract_strided_slice %52 {offsets = [0, 32], sizes = [8, 32], strides = [1, 1]} : vector<8x128xf32> to vector<8x32xf32>
    %115 = tpu.concatenate %111, %112 in 0 : vector<8x32xf32>, vector<8x32xf32> -> vector<16x32xf32>
    %cst_40 = arith.constant 0.176776692 : f32
    %116 = vector.broadcast %cst_40 : f32 to vector<16x32xf32>
    %117 = arith.mulf %115, %116 : vector<16x32xf32>
    %118 = arith.truncf %117 : vector<16x32xf32> to vector<16x32xbf16>
    %119 = arith.truncf %113 : vector<8x32xf32> to vector<8x32xbf16>
    %cst_41 = arith.constant dense<0.000000e+00> : vector<16x8xf32>
    %120 = tpu.matmul %118, %119, %cst_41 {dimension_numbers = #tpu.dot_dimension_numbers<[1], [1], [0], [0], [0, 0, 1, 0], [], []>} : vector<16x32xbf16>, vector<8x32xbf16>, vector<16x8xf32> -> vector<16x8xf32>
    %cst_42 = arith.constant 5.000000e-01 : f32
    %121 = vector.broadcast %cst_42 : f32 to vector<1x8xf32>
    %122 = arith.cmpf ogt, %54, %121 : vector<1x8xf32>
    %123 = vector.extract_strided_slice %120 {offsets = [0, 0], sizes = [8, 8], strides = [1, 1]} : vector<16x8xf32> to vector<8x8xf32>
    %cst_43 = arith.constant -1.000000e+30 : f32
    %124 = vector.shape_cast %122 : vector<1x8xi1> to vector<1x8xi1>
    %125 = vector.broadcast %124 : vector<1x8xi1> to vector<8x8xi1>
    %126 = vector.broadcast %cst_43 : f32 to vector<8x8xf32>
    %127 = arith.select %125, %123, %126 : vector<8x8xi1>, vector<8x8xf32>
    %cst_44 = arith.constant dense<0xFF800000> : vector<8xf32>
    %128 = vector.multi_reduction <maximumf>, %127, %cst_44 [1] : vector<8x8xf32> to vector<8xf32>
    %129 = vector.shape_cast %128 : vector<8xf32> to vector<8x1xf32>
    %130 = vector.broadcast %129 : vector<8x1xf32> to vector<8x8xf32>
    %131 = arith.subf %127, %130 : vector<8x8xf32>
    %132 = math.exp %131 : vector<8x8xf32>
    %cst_45 = arith.constant dense<0.000000e+00> : vector<8xf32>
    %133 = vector.multi_reduction <add>, %132, %cst_45 [1] : vector<8x8xf32> to vector<8xf32>
    %134 = vector.shape_cast %133 : vector<8xf32> to vector<8x1xf32>
    %135 = tpu.reciprocal %134 {approx = true} : vector<8x1xf32> -> vector<8x1xf32>
    %136 = vector.broadcast %135 : vector<8x1xf32> to vector<8x8xf32>
    %137 = arith.mulf %132, %136 : vector<8x8xf32>
    %138 = vector.extract_strided_slice %120 {offsets = [8, 0], sizes = [8, 8], strides = [1, 1]} : vector<16x8xf32> to vector<8x8xf32>
    %139 = math.tanh %138 : vector<8x8xf32>
    %140 = arith.subf %112, %113 : vector<8x32xf32>
    %141 = math.absf %140 : vector<8x32xf32>
    %cst_46 = arith.constant dense<0.000000e+00> : vector<8xf32>
    %142 = vector.multi_reduction <add>, %141, %cst_46 [1] : vector<8x32xf32> to vector<8xf32>
    %143 = vector.shape_cast %142 : vector<8xf32> to vector<8x1xf32>
    %cst_47 = arith.constant 0.000000e+00 : f32
    %144 = vector.broadcast %cst_47 : f32 to vector<8x1xf32>
    %145 = arith.subf %144, %143 : vector<8x1xf32>
    %cst_48 = arith.constant 0.176776692 : f32
    %146 = vector.broadcast %cst_48 : f32 to vector<8x1xf32>
    %147 = arith.mulf %145, %146 : vector<8x1xf32>
    %148 = arith.negf %147 : vector<8x1xf32>
    %149 = math.exp %148 : vector<8x1xf32>
    %cst_49 = arith.constant 1.000000e+00 : f32
    %150 = vector.broadcast %cst_49 : f32 to vector<8x1xf32>
    %151 = arith.addf %150, %149 : vector<8x1xf32>
    %152 = arith.divf %150, %151 : vector<8x1xf32>
    %cst_50 = arith.constant 2.000000e+00 : f32
    %153 = vector.broadcast %cst_50 : f32 to vector<8x1xf32>
    %154 = arith.mulf %153, %152 : vector<8x1xf32>
    %155 = arith.mulf %154, %56 : vector<8x1xf32>
    %156 = tpu.concatenate %137, %139 in 1 : vector<8x8xf32>, vector<8x8xf32> -> vector<8x16xf32>
    %157 = arith.truncf %156 : vector<8x16xf32> to vector<8x16xbf16>
    %158 = vector.broadcast %155 : vector<8x1xf32> to vector<8x32xf32>
    %159 = arith.mulf %158, %114 : vector<8x32xf32>
    %160 = tpu.concatenate %114, %159 in 0 : vector<8x32xf32>, vector<8x32xf32> -> vector<16x32xf32>
    %161 = arith.truncf %160 : vector<16x32xf32> to vector<16x32xbf16>
    %cst_51 = arith.constant dense<0.000000e+00> : vector<8x32xf32>
    %162 = tpu.matmul %157, %161, %cst_51 {dimension_numbers = #tpu.dot_dimension_numbers<[1], [0], [0], [1], [0, 0, 1, 1], [], []>} : vector<8x16xbf16>, vector<16x32xbf16>, vector<8x32xf32> -> vector<8x32xf32>
    %cst_52 = arith.constant 5.000000e-01 : f32
    %163 = vector.broadcast %cst_52 : f32 to vector<8x32xf32>
    %164 = arith.mulf %163, %162 : vector<8x32xf32>
    %165 = vector.extract_strided_slice %48 {offsets = [0, 64], sizes = [8, 32], strides = [1, 1]} : vector<8x256xf32> to vector<8x32xf32>
    %166 = vector.extract_strided_slice %48 {offsets = [0, 192], sizes = [8, 32], strides = [1, 1]} : vector<8x256xf32> to vector<8x32xf32>
    %167 = vector.extract_strided_slice %50 {offsets = [0, 64], sizes = [8, 32], strides = [1, 1]} : vector<8x128xf32> to vector<8x32xf32>
    %168 = vector.extract_strided_slice %52 {offsets = [0, 64], sizes = [8, 32], strides = [1, 1]} : vector<8x128xf32> to vector<8x32xf32>
    %169 = tpu.concatenate %165, %166 in 0 : vector<8x32xf32>, vector<8x32xf32> -> vector<16x32xf32>
    %cst_53 = arith.constant 0.176776692 : f32
    %170 = vector.broadcast %cst_53 : f32 to vector<16x32xf32>
    %171 = arith.mulf %169, %170 : vector<16x32xf32>
    %172 = arith.truncf %171 : vector<16x32xf32> to vector<16x32xbf16>
    %173 = arith.truncf %167 : vector<8x32xf32> to vector<8x32xbf16>
    %cst_54 = arith.constant dense<0.000000e+00> : vector<16x8xf32>
    %174 = tpu.matmul %172, %173, %cst_54 {dimension_numbers = #tpu.dot_dimension_numbers<[1], [1], [0], [0], [0, 0, 1, 0], [], []>} : vector<16x32xbf16>, vector<8x32xbf16>, vector<16x8xf32> -> vector<16x8xf32>
    %cst_55 = arith.constant 5.000000e-01 : f32
    %175 = vector.broadcast %cst_55 : f32 to vector<1x8xf32>
    %176 = arith.cmpf ogt, %54, %175 : vector<1x8xf32>
    %177 = vector.extract_strided_slice %174 {offsets = [0, 0], sizes = [8, 8], strides = [1, 1]} : vector<16x8xf32> to vector<8x8xf32>
    %cst_56 = arith.constant -1.000000e+30 : f32
    %178 = vector.shape_cast %176 : vector<1x8xi1> to vector<1x8xi1>
    %179 = vector.broadcast %178 : vector<1x8xi1> to vector<8x8xi1>
    %180 = vector.broadcast %cst_56 : f32 to vector<8x8xf32>
    %181 = arith.select %179, %177, %180 : vector<8x8xi1>, vector<8x8xf32>
    %cst_57 = arith.constant dense<0xFF800000> : vector<8xf32>
    %182 = vector.multi_reduction <maximumf>, %181, %cst_57 [1] : vector<8x8xf32> to vector<8xf32>
    %183 = vector.shape_cast %182 : vector<8xf32> to vector<8x1xf32>
    %184 = vector.broadcast %183 : vector<8x1xf32> to vector<8x8xf32>
    %185 = arith.subf %181, %184 : vector<8x8xf32>
    %186 = math.exp %185 : vector<8x8xf32>
    %cst_58 = arith.constant dense<0.000000e+00> : vector<8xf32>
    %187 = vector.multi_reduction <add>, %186, %cst_58 [1] : vector<8x8xf32> to vector<8xf32>
    %188 = vector.shape_cast %187 : vector<8xf32> to vector<8x1xf32>
    %189 = tpu.reciprocal %188 {approx = true} : vector<8x1xf32> -> vector<8x1xf32>
    %190 = vector.broadcast %189 : vector<8x1xf32> to vector<8x8xf32>
    %191 = arith.mulf %186, %190 : vector<8x8xf32>
    %192 = vector.extract_strided_slice %174 {offsets = [8, 0], sizes = [8, 8], strides = [1, 1]} : vector<16x8xf32> to vector<8x8xf32>
    %193 = math.tanh %192 : vector<8x8xf32>
    %194 = arith.subf %166, %167 : vector<8x32xf32>
    %195 = math.absf %194 : vector<8x32xf32>
    %cst_59 = arith.constant dense<0.000000e+00> : vector<8xf32>
    %196 = vector.multi_reduction <add>, %195, %cst_59 [1] : vector<8x32xf32> to vector<8xf32>
    %197 = vector.shape_cast %196 : vector<8xf32> to vector<8x1xf32>
    %cst_60 = arith.constant 0.000000e+00 : f32
    %198 = vector.broadcast %cst_60 : f32 to vector<8x1xf32>
    %199 = arith.subf %198, %197 : vector<8x1xf32>
    %cst_61 = arith.constant 0.176776692 : f32
    %200 = vector.broadcast %cst_61 : f32 to vector<8x1xf32>
    %201 = arith.mulf %199, %200 : vector<8x1xf32>
    %202 = arith.negf %201 : vector<8x1xf32>
    %203 = math.exp %202 : vector<8x1xf32>
    %cst_62 = arith.constant 1.000000e+00 : f32
    %204 = vector.broadcast %cst_62 : f32 to vector<8x1xf32>
    %205 = arith.addf %204, %203 : vector<8x1xf32>
    %206 = arith.divf %204, %205 : vector<8x1xf32>
    %cst_63 = arith.constant 2.000000e+00 : f32
    %207 = vector.broadcast %cst_63 : f32 to vector<8x1xf32>
    %208 = arith.mulf %207, %206 : vector<8x1xf32>
    %209 = arith.mulf %208, %56 : vector<8x1xf32>
    %210 = tpu.concatenate %191, %193 in 1 : vector<8x8xf32>, vector<8x8xf32> -> vector<8x16xf32>
    %211 = arith.truncf %210 : vector<8x16xf32> to vector<8x16xbf16>
    %212 = vector.broadcast %209 : vector<8x1xf32> to vector<8x32xf32>
    %213 = arith.mulf %212, %168 : vector<8x32xf32>
    %214 = tpu.concatenate %168, %213 in 0 : vector<8x32xf32>, vector<8x32xf32> -> vector<16x32xf32>
    %215 = arith.truncf %214 : vector<16x32xf32> to vector<16x32xbf16>
    %cst_64 = arith.constant dense<0.000000e+00> : vector<8x32xf32>
    %216 = tpu.matmul %211, %215, %cst_64 {dimension_numbers = #tpu.dot_dimension_numbers<[1], [0], [0], [1], [0, 0, 1, 1], [], []>} : vector<8x16xbf16>, vector<16x32xbf16>, vector<8x32xf32> -> vector<8x32xf32>
    %cst_65 = arith.constant 5.000000e-01 : f32
    %217 = vector.broadcast %cst_65 : f32 to vector<8x32xf32>
    %218 = arith.mulf %217, %216 : vector<8x32xf32>
    %219 = vector.extract_strided_slice %48 {offsets = [0, 96], sizes = [8, 32], strides = [1, 1]} : vector<8x256xf32> to vector<8x32xf32>
    %220 = vector.extract_strided_slice %48 {offsets = [0, 224], sizes = [8, 32], strides = [1, 1]} : vector<8x256xf32> to vector<8x32xf32>
    %221 = vector.extract_strided_slice %50 {offsets = [0, 96], sizes = [8, 32], strides = [1, 1]} : vector<8x128xf32> to vector<8x32xf32>
    %222 = vector.extract_strided_slice %52 {offsets = [0, 96], sizes = [8, 32], strides = [1, 1]} : vector<8x128xf32> to vector<8x32xf32>
    %223 = tpu.concatenate %219, %220 in 0 : vector<8x32xf32>, vector<8x32xf32> -> vector<16x32xf32>
    %cst_66 = arith.constant 0.176776692 : f32
    %224 = vector.broadcast %cst_66 : f32 to vector<16x32xf32>
    %225 = arith.mulf %223, %224 : vector<16x32xf32>
    %226 = arith.truncf %225 : vector<16x32xf32> to vector<16x32xbf16>
    %227 = arith.truncf %221 : vector<8x32xf32> to vector<8x32xbf16>
    %cst_67 = arith.constant dense<0.000000e+00> : vector<16x8xf32>
    %228 = tpu.matmul %226, %227, %cst_67 {dimension_numbers = #tpu.dot_dimension_numbers<[1], [1], [0], [0], [0, 0, 1, 0], [], []>} : vector<16x32xbf16>, vector<8x32xbf16>, vector<16x8xf32> -> vector<16x8xf32>
    %cst_68 = arith.constant 5.000000e-01 : f32
    %229 = vector.broadcast %cst_68 : f32 to vector<1x8xf32>
    %230 = arith.cmpf ogt, %54, %229 : vector<1x8xf32>
    %231 = vector.extract_strided_slice %228 {offsets = [0, 0], sizes = [8, 8], strides = [1, 1]} : vector<16x8xf32> to vector<8x8xf32>
    %cst_69 = arith.constant -1.000000e+30 : f32
    %232 = vector.shape_cast %230 : vector<1x8xi1> to vector<1x8xi1>
    %233 = vector.broadcast %232 : vector<1x8xi1> to vector<8x8xi1>
    %234 = vector.broadcast %cst_69 : f32 to vector<8x8xf32>
    %235 = arith.select %233, %231, %234 : vector<8x8xi1>, vector<8x8xf32>
    %cst_70 = arith.constant dense<0xFF800000> : vector<8xf32>
    %236 = vector.multi_reduction <maximumf>, %235, %cst_70 [1] : vector<8x8xf32> to vector<8xf32>
    %237 = vector.shape_cast %236 : vector<8xf32> to vector<8x1xf32>
    %238 = vector.broadcast %237 : vector<8x1xf32> to vector<8x8xf32>
    %239 = arith.subf %235, %238 : vector<8x8xf32>
    %240 = math.exp %239 : vector<8x8xf32>
    %cst_71 = arith.constant dense<0.000000e+00> : vector<8xf32>
    %241 = vector.multi_reduction <add>, %240, %cst_71 [1] : vector<8x8xf32> to vector<8xf32>
    %242 = vector.shape_cast %241 : vector<8xf32> to vector<8x1xf32>
    %243 = tpu.reciprocal %242 {approx = true} : vector<8x1xf32> -> vector<8x1xf32>
    %244 = vector.broadcast %243 : vector<8x1xf32> to vector<8x8xf32>
    %245 = arith.mulf %240, %244 : vector<8x8xf32>
    %246 = vector.extract_strided_slice %228 {offsets = [8, 0], sizes = [8, 8], strides = [1, 1]} : vector<16x8xf32> to vector<8x8xf32>
    %247 = math.tanh %246 : vector<8x8xf32>
    %248 = arith.subf %220, %221 : vector<8x32xf32>
    %249 = math.absf %248 : vector<8x32xf32>
    %cst_72 = arith.constant dense<0.000000e+00> : vector<8xf32>
    %250 = vector.multi_reduction <add>, %249, %cst_72 [1] : vector<8x32xf32> to vector<8xf32>
    %251 = vector.shape_cast %250 : vector<8xf32> to vector<8x1xf32>
    %cst_73 = arith.constant 0.000000e+00 : f32
    %252 = vector.broadcast %cst_73 : f32 to vector<8x1xf32>
    %253 = arith.subf %252, %251 : vector<8x1xf32>
    %cst_74 = arith.constant 0.176776692 : f32
    %254 = vector.broadcast %cst_74 : f32 to vector<8x1xf32>
    %255 = arith.mulf %253, %254 : vector<8x1xf32>
    %256 = arith.negf %255 : vector<8x1xf32>
    %257 = math.exp %256 : vector<8x1xf32>
    %cst_75 = arith.constant 1.000000e+00 : f32
    %258 = vector.broadcast %cst_75 : f32 to vector<8x1xf32>
    %259 = arith.addf %258, %257 : vector<8x1xf32>
    %260 = arith.divf %258, %259 : vector<8x1xf32>
    %cst_76 = arith.constant 2.000000e+00 : f32
    %261 = vector.broadcast %cst_76 : f32 to vector<8x1xf32>
    %262 = arith.mulf %261, %260 : vector<8x1xf32>
    %263 = arith.mulf %262, %56 : vector<8x1xf32>
    %264 = tpu.concatenate %245, %247 in 1 : vector<8x8xf32>, vector<8x8xf32> -> vector<8x16xf32>
    %265 = arith.truncf %264 : vector<8x16xf32> to vector<8x16xbf16>
    %266 = vector.broadcast %263 : vector<8x1xf32> to vector<8x32xf32>
    %267 = arith.mulf %266, %222 : vector<8x32xf32>
    %268 = tpu.concatenate %222, %267 in 0 : vector<8x32xf32>, vector<8x32xf32> -> vector<16x32xf32>
    %269 = arith.truncf %268 : vector<16x32xf32> to vector<16x32xbf16>
    %cst_77 = arith.constant dense<0.000000e+00> : vector<8x32xf32>
    %270 = tpu.matmul %265, %269, %cst_77 {dimension_numbers = #tpu.dot_dimension_numbers<[1], [0], [0], [1], [0, 0, 1, 1], [], []>} : vector<8x16xbf16>, vector<16x32xbf16>, vector<8x32xf32> -> vector<8x32xf32>
    %cst_78 = arith.constant 5.000000e-01 : f32
    %271 = vector.broadcast %cst_78 : f32 to vector<8x32xf32>
    %272 = arith.mulf %271, %270 : vector<8x32xf32>
    %273 = tpu.concatenate %110, %164, %218, %272 in 1 : vector<8x32xf32>, vector<8x32xf32>, vector<8x32xf32>, vector<8x32xf32> -> vector<8x128xf32>
    %274 = vector.extract_strided_slice %41 {offsets = [8, 0], sizes = [8, 256], strides = [1, 1]} : vector<16x256xf32> to vector<8x256xf32>
    %275 = vector.extract_strided_slice %43 {offsets = [1, 0, 0], sizes = [1, 8, 128], strides = [1, 1, 1]} : vector<2x8x128xf32> to vector<1x8x128xf32>
    %276 = vector.shape_cast %275 : vector<1x8x128xf32> to vector<8x128xf32>
    %277 = vector.extract_strided_slice %45 {offsets = [1, 0, 0], sizes = [1, 8, 128], strides = [1, 1, 1]} : vector<2x8x128xf32> to vector<1x8x128xf32>
    %278 = vector.shape_cast %277 : vector<1x8x128xf32> to vector<8x128xf32>
    %279 = vector.extract_strided_slice %46 {offsets = [1, 0, 0], sizes = [1, 1, 8], strides = [1, 1, 1]} : vector<2x1x8xf32> to vector<1x1x8xf32>
    %280 = vector.shape_cast %279 : vector<1x1x8xf32> to vector<1x8xf32>
    %281 = vector.extract_strided_slice %47 {offsets = [1, 0, 0], sizes = [1, 8, 1], strides = [1, 1, 1]} : vector<2x8x1xf32> to vector<1x8x1xf32>
    %282 = vector.shape_cast %281 : vector<1x8x1xf32> to vector<8x1xf32>
    %283 = vector.extract_strided_slice %274 {offsets = [0, 0], sizes = [8, 32], strides = [1, 1]} : vector<8x256xf32> to vector<8x32xf32>
    %284 = vector.extract_strided_slice %274 {offsets = [0, 128], sizes = [8, 32], strides = [1, 1]} : vector<8x256xf32> to vector<8x32xf32>
    %285 = vector.extract_strided_slice %276 {offsets = [0, 0], sizes = [8, 32], strides = [1, 1]} : vector<8x128xf32> to vector<8x32xf32>
    %286 = vector.extract_strided_slice %278 {offsets = [0, 0], sizes = [8, 32], strides = [1, 1]} : vector<8x128xf32> to vector<8x32xf32>
    %287 = tpu.concatenate %283, %284 in 0 : vector<8x32xf32>, vector<8x32xf32> -> vector<16x32xf32>
    %cst_79 = arith.constant 0.176776692 : f32
    %288 = vector.broadcast %cst_79 : f32 to vector<16x32xf32>
    %289 = arith.mulf %287, %288 : vector<16x32xf32>
    %290 = arith.truncf %289 : vector<16x32xf32> to vector<16x32xbf16>
    %291 = arith.truncf %285 : vector<8x32xf32> to vector<8x32xbf16>
    %cst_80 = arith.constant dense<0.000000e+00> : vector<16x8xf32>
    %292 = tpu.matmul %290, %291, %cst_80 {dimension_numbers = #tpu.dot_dimension_numbers<[1], [1], [0], [0], [0, 0, 1, 0], [], []>} : vector<16x32xbf16>, vector<8x32xbf16>, vector<16x8xf32> -> vector<16x8xf32>
    %cst_81 = arith.constant 5.000000e-01 : f32
    %293 = vector.broadcast %cst_81 : f32 to vector<1x8xf32>
    %294 = arith.cmpf ogt, %280, %293 : vector<1x8xf32>
    %295 = vector.extract_strided_slice %292 {offsets = [0, 0], sizes = [8, 8], strides = [1, 1]} : vector<16x8xf32> to vector<8x8xf32>
    %cst_82 = arith.constant -1.000000e+30 : f32
    %296 = vector.shape_cast %294 : vector<1x8xi1> to vector<1x8xi1>
    %297 = vector.broadcast %296 : vector<1x8xi1> to vector<8x8xi1>
    %298 = vector.broadcast %cst_82 : f32 to vector<8x8xf32>
    %299 = arith.select %297, %295, %298 : vector<8x8xi1>, vector<8x8xf32>
    %cst_83 = arith.constant dense<0xFF800000> : vector<8xf32>
    %300 = vector.multi_reduction <maximumf>, %299, %cst_83 [1] : vector<8x8xf32> to vector<8xf32>
    %301 = vector.shape_cast %300 : vector<8xf32> to vector<8x1xf32>
    %302 = vector.broadcast %301 : vector<8x1xf32> to vector<8x8xf32>
    %303 = arith.subf %299, %302 : vector<8x8xf32>
    %304 = math.exp %303 : vector<8x8xf32>
    %cst_84 = arith.constant dense<0.000000e+00> : vector<8xf32>
    %305 = vector.multi_reduction <add>, %304, %cst_84 [1] : vector<8x8xf32> to vector<8xf32>
    %306 = vector.shape_cast %305 : vector<8xf32> to vector<8x1xf32>
    %307 = tpu.reciprocal %306 {approx = true} : vector<8x1xf32> -> vector<8x1xf32>
    %308 = vector.broadcast %307 : vector<8x1xf32> to vector<8x8xf32>
    %309 = arith.mulf %304, %308 : vector<8x8xf32>
    %310 = vector.extract_strided_slice %292 {offsets = [8, 0], sizes = [8, 8], strides = [1, 1]} : vector<16x8xf32> to vector<8x8xf32>
    %311 = math.tanh %310 : vector<8x8xf32>
    %312 = arith.subf %284, %285 : vector<8x32xf32>
    %313 = math.absf %312 : vector<8x32xf32>
    %cst_85 = arith.constant dense<0.000000e+00> : vector<8xf32>
    %314 = vector.multi_reduction <add>, %313, %cst_85 [1] : vector<8x32xf32> to vector<8xf32>
    %315 = vector.shape_cast %314 : vector<8xf32> to vector<8x1xf32>
    %cst_86 = arith.constant 0.000000e+00 : f32
    %316 = vector.broadcast %cst_86 : f32 to vector<8x1xf32>
    %317 = arith.subf %316, %315 : vector<8x1xf32>
    %cst_87 = arith.constant 0.176776692 : f32
    %318 = vector.broadcast %cst_87 : f32 to vector<8x1xf32>
    %319 = arith.mulf %317, %318 : vector<8x1xf32>
    %320 = arith.negf %319 : vector<8x1xf32>
    %321 = math.exp %320 : vector<8x1xf32>
    %cst_88 = arith.constant 1.000000e+00 : f32
    %322 = vector.broadcast %cst_88 : f32 to vector<8x1xf32>
    %323 = arith.addf %322, %321 : vector<8x1xf32>
    %324 = arith.divf %322, %323 : vector<8x1xf32>
    %cst_89 = arith.constant 2.000000e+00 : f32
    %325 = vector.broadcast %cst_89 : f32 to vector<8x1xf32>
    %326 = arith.mulf %325, %324 : vector<8x1xf32>
    %327 = arith.mulf %326, %282 : vector<8x1xf32>
    %328 = tpu.concatenate %309, %311 in 1 : vector<8x8xf32>, vector<8x8xf32> -> vector<8x16xf32>
    %329 = arith.truncf %328 : vector<8x16xf32> to vector<8x16xbf16>
    %330 = vector.broadcast %327 : vector<8x1xf32> to vector<8x32xf32>
    %331 = arith.mulf %330, %286 : vector<8x32xf32>
    %332 = tpu.concatenate %286, %331 in 0 : vector<8x32xf32>, vector<8x32xf32> -> vector<16x32xf32>
    %333 = arith.truncf %332 : vector<16x32xf32> to vector<16x32xbf16>
    %cst_90 = arith.constant dense<0.000000e+00> : vector<8x32xf32>
    %334 = tpu.matmul %329, %333, %cst_90 {dimension_numbers = #tpu.dot_dimension_numbers<[1], [0], [0], [1], [0, 0, 1, 1], [], []>} : vector<8x16xbf16>, vector<16x32xbf16>, vector<8x32xf32> -> vector<8x32xf32>
    %cst_91 = arith.constant 5.000000e-01 : f32
    %335 = vector.broadcast %cst_91 : f32 to vector<8x32xf32>
    %336 = arith.mulf %335, %334 : vector<8x32xf32>
    %337 = vector.extract_strided_slice %274 {offsets = [0, 32], sizes = [8, 32], strides = [1, 1]} : vector<8x256xf32> to vector<8x32xf32>
    %338 = vector.extract_strided_slice %274 {offsets = [0, 160], sizes = [8, 32], strides = [1, 1]} : vector<8x256xf32> to vector<8x32xf32>
    %339 = vector.extract_strided_slice %276 {offsets = [0, 32], sizes = [8, 32], strides = [1, 1]} : vector<8x128xf32> to vector<8x32xf32>
    %340 = vector.extract_strided_slice %278 {offsets = [0, 32], sizes = [8, 32], strides = [1, 1]} : vector<8x128xf32> to vector<8x32xf32>
    %341 = tpu.concatenate %337, %338 in 0 : vector<8x32xf32>, vector<8x32xf32> -> vector<16x32xf32>
    %cst_92 = arith.constant 0.176776692 : f32
    %342 = vector.broadcast %cst_92 : f32 to vector<16x32xf32>
    %343 = arith.mulf %341, %342 : vector<16x32xf32>
    %344 = arith.truncf %343 : vector<16x32xf32> to vector<16x32xbf16>
    %345 = arith.truncf %339 : vector<8x32xf32> to vector<8x32xbf16>
    %cst_93 = arith.constant dense<0.000000e+00> : vector<16x8xf32>
    %346 = tpu.matmul %344, %345, %cst_93 {dimension_numbers = #tpu.dot_dimension_numbers<[1], [1], [0], [0], [0, 0, 1, 0], [], []>} : vector<16x32xbf16>, vector<8x32xbf16>, vector<16x8xf32> -> vector<16x8xf32>
    %cst_94 = arith.constant 5.000000e-01 : f32
    %347 = vector.broadcast %cst_94 : f32 to vector<1x8xf32>
    %348 = arith.cmpf ogt, %280, %347 : vector<1x8xf32>
    %349 = vector.extract_strided_slice %346 {offsets = [0, 0], sizes = [8, 8], strides = [1, 1]} : vector<16x8xf32> to vector<8x8xf32>
    %cst_95 = arith.constant -1.000000e+30 : f32
    %350 = vector.shape_cast %348 : vector<1x8xi1> to vector<1x8xi1>
    %351 = vector.broadcast %350 : vector<1x8xi1> to vector<8x8xi1>
    %352 = vector.broadcast %cst_95 : f32 to vector<8x8xf32>
    %353 = arith.select %351, %349, %352 : vector<8x8xi1>, vector<8x8xf32>
    %cst_96 = arith.constant dense<0xFF800000> : vector<8xf32>
    %354 = vector.multi_reduction <maximumf>, %353, %cst_96 [1] : vector<8x8xf32> to vector<8xf32>
    %355 = vector.shape_cast %354 : vector<8xf32> to vector<8x1xf32>
    %356 = vector.broadcast %355 : vector<8x1xf32> to vector<8x8xf32>
    %357 = arith.subf %353, %356 : vector<8x8xf32>
    %358 = math.exp %357 : vector<8x8xf32>
    %cst_97 = arith.constant dense<0.000000e+00> : vector<8xf32>
    %359 = vector.multi_reduction <add>, %358, %cst_97 [1] : vector<8x8xf32> to vector<8xf32>
    %360 = vector.shape_cast %359 : vector<8xf32> to vector<8x1xf32>
    %361 = tpu.reciprocal %360 {approx = true} : vector<8x1xf32> -> vector<8x1xf32>
    %362 = vector.broadcast %361 : vector<8x1xf32> to vector<8x8xf32>
    %363 = arith.mulf %358, %362 : vector<8x8xf32>
    %364 = vector.extract_strided_slice %346 {offsets = [8, 0], sizes = [8, 8], strides = [1, 1]} : vector<16x8xf32> to vector<8x8xf32>
    %365 = math.tanh %364 : vector<8x8xf32>
    %366 = arith.subf %338, %339 : vector<8x32xf32>
    %367 = math.absf %366 : vector<8x32xf32>
    %cst_98 = arith.constant dense<0.000000e+00> : vector<8xf32>
    %368 = vector.multi_reduction <add>, %367, %cst_98 [1] : vector<8x32xf32> to vector<8xf32>
    %369 = vector.shape_cast %368 : vector<8xf32> to vector<8x1xf32>
    %cst_99 = arith.constant 0.000000e+00 : f32
    %370 = vector.broadcast %cst_99 : f32 to vector<8x1xf32>
    %371 = arith.subf %370, %369 : vector<8x1xf32>
    %cst_100 = arith.constant 0.176776692 : f32
    %372 = vector.broadcast %cst_100 : f32 to vector<8x1xf32>
    %373 = arith.mulf %371, %372 : vector<8x1xf32>
    %374 = arith.negf %373 : vector<8x1xf32>
    %375 = math.exp %374 : vector<8x1xf32>
    %cst_101 = arith.constant 1.000000e+00 : f32
    %376 = vector.broadcast %cst_101 : f32 to vector<8x1xf32>
    %377 = arith.addf %376, %375 : vector<8x1xf32>
    %378 = arith.divf %376, %377 : vector<8x1xf32>
    %cst_102 = arith.constant 2.000000e+00 : f32
    %379 = vector.broadcast %cst_102 : f32 to vector<8x1xf32>
    %380 = arith.mulf %379, %378 : vector<8x1xf32>
    %381 = arith.mulf %380, %282 : vector<8x1xf32>
    %382 = tpu.concatenate %363, %365 in 1 : vector<8x8xf32>, vector<8x8xf32> -> vector<8x16xf32>
    %383 = arith.truncf %382 : vector<8x16xf32> to vector<8x16xbf16>
    %384 = vector.broadcast %381 : vector<8x1xf32> to vector<8x32xf32>
    %385 = arith.mulf %384, %340 : vector<8x32xf32>
    %386 = tpu.concatenate %340, %385 in 0 : vector<8x32xf32>, vector<8x32xf32> -> vector<16x32xf32>
    %387 = arith.truncf %386 : vector<16x32xf32> to vector<16x32xbf16>
    %cst_103 = arith.constant dense<0.000000e+00> : vector<8x32xf32>
    %388 = tpu.matmul %383, %387, %cst_103 {dimension_numbers = #tpu.dot_dimension_numbers<[1], [0], [0], [1], [0, 0, 1, 1], [], []>} : vector<8x16xbf16>, vector<16x32xbf16>, vector<8x32xf32> -> vector<8x32xf32>
    %cst_104 = arith.constant 5.000000e-01 : f32
    %389 = vector.broadcast %cst_104 : f32 to vector<8x32xf32>
    %390 = arith.mulf %389, %388 : vector<8x32xf32>
    %391 = vector.extract_strided_slice %274 {offsets = [0, 64], sizes = [8, 32], strides = [1, 1]} : vector<8x256xf32> to vector<8x32xf32>
    %392 = vector.extract_strided_slice %274 {offsets = [0, 192], sizes = [8, 32], strides = [1, 1]} : vector<8x256xf32> to vector<8x32xf32>
    %393 = vector.extract_strided_slice %276 {offsets = [0, 64], sizes = [8, 32], strides = [1, 1]} : vector<8x128xf32> to vector<8x32xf32>
    %394 = vector.extract_strided_slice %278 {offsets = [0, 64], sizes = [8, 32], strides = [1, 1]} : vector<8x128xf32> to vector<8x32xf32>
    %395 = tpu.concatenate %391, %392 in 0 : vector<8x32xf32>, vector<8x32xf32> -> vector<16x32xf32>
    %cst_105 = arith.constant 0.176776692 : f32
    %396 = vector.broadcast %cst_105 : f32 to vector<16x32xf32>
    %397 = arith.mulf %395, %396 : vector<16x32xf32>
    %398 = arith.truncf %397 : vector<16x32xf32> to vector<16x32xbf16>
    %399 = arith.truncf %393 : vector<8x32xf32> to vector<8x32xbf16>
    %cst_106 = arith.constant dense<0.000000e+00> : vector<16x8xf32>
    %400 = tpu.matmul %398, %399, %cst_106 {dimension_numbers = #tpu.dot_dimension_numbers<[1], [1], [0], [0], [0, 0, 1, 0], [], []>} : vector<16x32xbf16>, vector<8x32xbf16>, vector<16x8xf32> -> vector<16x8xf32>
    %cst_107 = arith.constant 5.000000e-01 : f32
    %401 = vector.broadcast %cst_107 : f32 to vector<1x8xf32>
    %402 = arith.cmpf ogt, %280, %401 : vector<1x8xf32>
    %403 = vector.extract_strided_slice %400 {offsets = [0, 0], sizes = [8, 8], strides = [1, 1]} : vector<16x8xf32> to vector<8x8xf32>
    %cst_108 = arith.constant -1.000000e+30 : f32
    %404 = vector.shape_cast %402 : vector<1x8xi1> to vector<1x8xi1>
    %405 = vector.broadcast %404 : vector<1x8xi1> to vector<8x8xi1>
    %406 = vector.broadcast %cst_108 : f32 to vector<8x8xf32>
    %407 = arith.select %405, %403, %406 : vector<8x8xi1>, vector<8x8xf32>
    %cst_109 = arith.constant dense<0xFF800000> : vector<8xf32>
    %408 = vector.multi_reduction <maximumf>, %407, %cst_109 [1] : vector<8x8xf32> to vector<8xf32>
    %409 = vector.shape_cast %408 : vector<8xf32> to vector<8x1xf32>
    %410 = vector.broadcast %409 : vector<8x1xf32> to vector<8x8xf32>
    %411 = arith.subf %407, %410 : vector<8x8xf32>
    %412 = math.exp %411 : vector<8x8xf32>
    %cst_110 = arith.constant dense<0.000000e+00> : vector<8xf32>
    %413 = vector.multi_reduction <add>, %412, %cst_110 [1] : vector<8x8xf32> to vector<8xf32>
    %414 = vector.shape_cast %413 : vector<8xf32> to vector<8x1xf32>
    %415 = tpu.reciprocal %414 {approx = true} : vector<8x1xf32> -> vector<8x1xf32>
    %416 = vector.broadcast %415 : vector<8x1xf32> to vector<8x8xf32>
    %417 = arith.mulf %412, %416 : vector<8x8xf32>
    %418 = vector.extract_strided_slice %400 {offsets = [8, 0], sizes = [8, 8], strides = [1, 1]} : vector<16x8xf32> to vector<8x8xf32>
    %419 = math.tanh %418 : vector<8x8xf32>
    %420 = arith.subf %392, %393 : vector<8x32xf32>
    %421 = math.absf %420 : vector<8x32xf32>
    %cst_111 = arith.constant dense<0.000000e+00> : vector<8xf32>
    %422 = vector.multi_reduction <add>, %421, %cst_111 [1] : vector<8x32xf32> to vector<8xf32>
    %423 = vector.shape_cast %422 : vector<8xf32> to vector<8x1xf32>
    %cst_112 = arith.constant 0.000000e+00 : f32
    %424 = vector.broadcast %cst_112 : f32 to vector<8x1xf32>
    %425 = arith.subf %424, %423 : vector<8x1xf32>
    %cst_113 = arith.constant 0.176776692 : f32
    %426 = vector.broadcast %cst_113 : f32 to vector<8x1xf32>
    %427 = arith.mulf %425, %426 : vector<8x1xf32>
    %428 = arith.negf %427 : vector<8x1xf32>
    %429 = math.exp %428 : vector<8x1xf32>
    %cst_114 = arith.constant 1.000000e+00 : f32
    %430 = vector.broadcast %cst_114 : f32 to vector<8x1xf32>
    %431 = arith.addf %430, %429 : vector<8x1xf32>
    %432 = arith.divf %430, %431 : vector<8x1xf32>
    %cst_115 = arith.constant 2.000000e+00 : f32
    %433 = vector.broadcast %cst_115 : f32 to vector<8x1xf32>
    %434 = arith.mulf %433, %432 : vector<8x1xf32>
    %435 = arith.mulf %434, %282 : vector<8x1xf32>
    %436 = tpu.concatenate %417, %419 in 1 : vector<8x8xf32>, vector<8x8xf32> -> vector<8x16xf32>
    %437 = arith.truncf %436 : vector<8x16xf32> to vector<8x16xbf16>
    %438 = vector.broadcast %435 : vector<8x1xf32> to vector<8x32xf32>
    %439 = arith.mulf %438, %394 : vector<8x32xf32>
    %440 = tpu.concatenate %394, %439 in 0 : vector<8x32xf32>, vector<8x32xf32> -> vector<16x32xf32>
    %441 = arith.truncf %440 : vector<16x32xf32> to vector<16x32xbf16>
    %cst_116 = arith.constant dense<0.000000e+00> : vector<8x32xf32>
    %442 = tpu.matmul %437, %441, %cst_116 {dimension_numbers = #tpu.dot_dimension_numbers<[1], [0], [0], [1], [0, 0, 1, 1], [], []>} : vector<8x16xbf16>, vector<16x32xbf16>, vector<8x32xf32> -> vector<8x32xf32>
    %cst_117 = arith.constant 5.000000e-01 : f32
    %443 = vector.broadcast %cst_117 : f32 to vector<8x32xf32>
    %444 = arith.mulf %443, %442 : vector<8x32xf32>
    %445 = vector.extract_strided_slice %274 {offsets = [0, 96], sizes = [8, 32], strides = [1, 1]} : vector<8x256xf32> to vector<8x32xf32>
    %446 = vector.extract_strided_slice %274 {offsets = [0, 224], sizes = [8, 32], strides = [1, 1]} : vector<8x256xf32> to vector<8x32xf32>
    %447 = vector.extract_strided_slice %276 {offsets = [0, 96], sizes = [8, 32], strides = [1, 1]} : vector<8x128xf32> to vector<8x32xf32>
    %448 = vector.extract_strided_slice %278 {offsets = [0, 96], sizes = [8, 32], strides = [1, 1]} : vector<8x128xf32> to vector<8x32xf32>
    %449 = tpu.concatenate %445, %446 in 0 : vector<8x32xf32>, vector<8x32xf32> -> vector<16x32xf32>
    %cst_118 = arith.constant 0.176776692 : f32
    %450 = vector.broadcast %cst_118 : f32 to vector<16x32xf32>
    %451 = arith.mulf %449, %450 : vector<16x32xf32>
    %452 = arith.truncf %451 : vector<16x32xf32> to vector<16x32xbf16>
    %453 = arith.truncf %447 : vector<8x32xf32> to vector<8x32xbf16>
    %cst_119 = arith.constant dense<0.000000e+00> : vector<16x8xf32>
    %454 = tpu.matmul %452, %453, %cst_119 {dimension_numbers = #tpu.dot_dimension_numbers<[1], [1], [0], [0], [0, 0, 1, 0], [], []>} : vector<16x32xbf16>, vector<8x32xbf16>, vector<16x8xf32> -> vector<16x8xf32>
    %cst_120 = arith.constant 5.000000e-01 : f32
    %455 = vector.broadcast %cst_120 : f32 to vector<1x8xf32>
    %456 = arith.cmpf ogt, %280, %455 : vector<1x8xf32>
    %457 = vector.extract_strided_slice %454 {offsets = [0, 0], sizes = [8, 8], strides = [1, 1]} : vector<16x8xf32> to vector<8x8xf32>
    %cst_121 = arith.constant -1.000000e+30 : f32
    %458 = vector.shape_cast %456 : vector<1x8xi1> to vector<1x8xi1>
    %459 = vector.broadcast %458 : vector<1x8xi1> to vector<8x8xi1>
    %460 = vector.broadcast %cst_121 : f32 to vector<8x8xf32>
    %461 = arith.select %459, %457, %460 : vector<8x8xi1>, vector<8x8xf32>
    %cst_122 = arith.constant dense<0xFF800000> : vector<8xf32>
    %462 = vector.multi_reduction <maximumf>, %461, %cst_122 [1] : vector<8x8xf32> to vector<8xf32>
    %463 = vector.shape_cast %462 : vector<8xf32> to vector<8x1xf32>
    %464 = vector.broadcast %463 : vector<8x1xf32> to vector<8x8xf32>
    %465 = arith.subf %461, %464 : vector<8x8xf32>
    %466 = math.exp %465 : vector<8x8xf32>
    %cst_123 = arith.constant dense<0.000000e+00> : vector<8xf32>
    %467 = vector.multi_reduction <add>, %466, %cst_123 [1] : vector<8x8xf32> to vector<8xf32>
    %468 = vector.shape_cast %467 : vector<8xf32> to vector<8x1xf32>
    %469 = tpu.reciprocal %468 {approx = true} : vector<8x1xf32> -> vector<8x1xf32>
    %470 = vector.broadcast %469 : vector<8x1xf32> to vector<8x8xf32>
    %471 = arith.mulf %466, %470 : vector<8x8xf32>
    %472 = vector.extract_strided_slice %454 {offsets = [8, 0], sizes = [8, 8], strides = [1, 1]} : vector<16x8xf32> to vector<8x8xf32>
    %473 = math.tanh %472 : vector<8x8xf32>
    %474 = arith.subf %446, %447 : vector<8x32xf32>
    %475 = math.absf %474 : vector<8x32xf32>
    %cst_124 = arith.constant dense<0.000000e+00> : vector<8xf32>
    %476 = vector.multi_reduction <add>, %475, %cst_124 [1] : vector<8x32xf32> to vector<8xf32>
    %477 = vector.shape_cast %476 : vector<8xf32> to vector<8x1xf32>
    %cst_125 = arith.constant 0.000000e+00 : f32
    %478 = vector.broadcast %cst_125 : f32 to vector<8x1xf32>
    %479 = arith.subf %478, %477 : vector<8x1xf32>
    %cst_126 = arith.constant 0.176776692 : f32
    %480 = vector.broadcast %cst_126 : f32 to vector<8x1xf32>
    %481 = arith.mulf %479, %480 : vector<8x1xf32>
    %482 = arith.negf %481 : vector<8x1xf32>
    %483 = math.exp %482 : vector<8x1xf32>
    %cst_127 = arith.constant 1.000000e+00 : f32
    %484 = vector.broadcast %cst_127 : f32 to vector<8x1xf32>
    %485 = arith.addf %484, %483 : vector<8x1xf32>
    %486 = arith.divf %484, %485 : vector<8x1xf32>
    %cst_128 = arith.constant 2.000000e+00 : f32
    %487 = vector.broadcast %cst_128 : f32 to vector<8x1xf32>
    %488 = arith.mulf %487, %486 : vector<8x1xf32>
    %489 = arith.mulf %488, %282 : vector<8x1xf32>
    %490 = tpu.concatenate %471, %473 in 1 : vector<8x8xf32>, vector<8x8xf32> -> vector<8x16xf32>
    %491 = arith.truncf %490 : vector<8x16xf32> to vector<8x16xbf16>
    %492 = vector.broadcast %489 : vector<8x1xf32> to vector<8x32xf32>
    %493 = arith.mulf %492, %448 : vector<8x32xf32>
    %494 = tpu.concatenate %448, %493 in 0 : vector<8x32xf32>, vector<8x32xf32> -> vector<16x32xf32>
    %495 = arith.truncf %494 : vector<16x32xf32> to vector<16x32xbf16>
    %cst_129 = arith.constant dense<0.000000e+00> : vector<8x32xf32>
    %496 = tpu.matmul %491, %495, %cst_129 {dimension_numbers = #tpu.dot_dimension_numbers<[1], [0], [0], [1], [0, 0, 1, 1], [], []>} : vector<8x16xbf16>, vector<16x32xbf16>, vector<8x32xf32> -> vector<8x32xf32>
    %cst_130 = arith.constant 5.000000e-01 : f32
    %497 = vector.broadcast %cst_130 : f32 to vector<8x32xf32>
    %498 = arith.mulf %497, %496 : vector<8x32xf32>
    %499 = tpu.concatenate %336, %390, %444, %498 in 1 : vector<8x32xf32>, vector<8x32xf32>, vector<8x32xf32>, vector<8x32xf32> -> vector<8x128xf32>
    %500 = tpu.concatenate %273, %499 in 0 : vector<8x128xf32>, vector<8x128xf32> -> vector<16x128xf32>
    %501 = arith.truncf %500 : vector<16x128xf32> to vector<16x128xbf16>
    %c0_131 = arith.constant 0 : index
    %c0_132 = arith.constant 0 : index
    %c0_133 = arith.constant 0 : index
    %502 = vector.load %arg8[%c0_131, %c0_132, %c0_133] : memref<1x128x128xbf16, #tpu.memory_space<vmem>>, vector<1x128x128xbf16>
    %503 = vector.shape_cast %502 : vector<1x128x128xbf16> to vector<128x128xbf16>
    %cst_134 = arith.constant dense<0.000000e+00> : vector<16x128xf32>
    %504 = tpu.matmul %501, %503, %cst_134 {dimension_numbers = #tpu.dot_dimension_numbers<[1], [0], [0], [1], [0, 0, 1, 1], [], []>} : vector<16x128xbf16>, vector<128x128xbf16>, vector<16x128xf32> -> vector<16x128xf32>
    %505 = vector.broadcast %8 : vector<1x128xf32> to vector<16x128xf32>
    %506 = arith.addf %504, %505 : vector<16x128xf32>
    %507 = arith.addf %3, %506 : vector<16x128xf32>
    %cst_135 = arith.constant dense<0.000000e+00> : vector<16xf32>
    %508 = vector.multi_reduction <add>, %507, %cst_135 [1] : vector<16x128xf32> to vector<16xf32>
    %509 = vector.shape_cast %508 : vector<16xf32> to vector<16x1xf32>
    %cst_136 = arith.constant 1.280000e+02 : f32
    %510 = vector.broadcast %cst_136 : f32 to vector<16x1xf32>
    %511 = arith.divf %509, %510 : vector<16x1xf32>
    %512 = vector.broadcast %511 : vector<16x1xf32> to vector<16x128xf32>
    %513 = arith.subf %507, %512 : vector<16x128xf32>
    %514 = arith.mulf %513, %513 : vector<16x128xf32>
    %cst_137 = arith.constant dense<0.000000e+00> : vector<16xf32>
    %515 = vector.multi_reduction <add>, %514, %cst_137 [1] : vector<16x128xf32> to vector<16xf32>
    %516 = vector.shape_cast %515 : vector<16xf32> to vector<16x1xf32>
    %cst_138 = arith.constant 1.280000e+02 : f32
    %517 = vector.broadcast %cst_138 : f32 to vector<16x1xf32>
    %518 = arith.divf %516, %517 : vector<16x1xf32>
    %519 = vector.broadcast %511 : vector<16x1xf32> to vector<16x128xf32>
    %520 = arith.subf %507, %519 : vector<16x128xf32>
    %cst_139 = arith.constant 9.99999974E-6 : f32
    %521 = vector.broadcast %cst_139 : f32 to vector<16x1xf32>
    %522 = arith.addf %518, %521 : vector<16x1xf32>
    %523 = math.rsqrt %522 : vector<16x1xf32>
    %524 = vector.broadcast %523 : vector<16x1xf32> to vector<16x128xf32>
    %525 = arith.mulf %520, %524 : vector<16x128xf32>
    %526 = vector.broadcast %9 : vector<1x128xf32> to vector<16x128xf32>
    %527 = arith.mulf %525, %526 : vector<16x128xf32>
    %528 = vector.broadcast %10 : vector<1x128xf32> to vector<16x128xf32>
    %529 = arith.addf %527, %528 : vector<16x128xf32>
    %530 = arith.truncf %529 : vector<16x128xf32> to vector<16x128xbf16>
    %c0_140 = arith.constant 0 : index
    %c0_141 = arith.constant 0 : index
    %c0_142 = arith.constant 0 : index
    %531 = vector.load %arg9[%c0_140, %c0_141, %c0_142] : memref<1x128x512xbf16, #tpu.memory_space<vmem>>, vector<1x128x512xbf16>
    %532 = vector.shape_cast %531 : vector<1x128x512xbf16> to vector<128x512xbf16>
    %cst_143 = arith.constant dense<0.000000e+00> : vector<16x512xf32>
    %533 = tpu.matmul %530, %532, %cst_143 {dimension_numbers = #tpu.dot_dimension_numbers<[1], [0], [0], [1], [0, 0, 1, 1], [], []>} : vector<16x128xbf16>, vector<128x512xbf16>, vector<16x512xf32> -> vector<16x512xf32>
    %534 = vector.broadcast %13 : vector<1x512xf32> to vector<16x512xf32>
    %535 = arith.addf %533, %534 : vector<16x512xf32>
    %cst_144 = arith.constant 1.702000e+00 : f32
    %536 = vector.broadcast %cst_144 : f32 to vector<16x512xf32>
    %537 = arith.mulf %536, %535 : vector<16x512xf32>
    %538 = arith.negf %537 : vector<16x512xf32>
    %539 = math.exp %538 : vector<16x512xf32>
    %cst_145 = arith.constant 1.000000e+00 : f32
    %540 = vector.broadcast %cst_145 : f32 to vector<16x512xf32>
    %541 = arith.addf %540, %539 : vector<16x512xf32>
    %542 = arith.divf %540, %541 : vector<16x512xf32>
    %543 = arith.mulf %535, %542 : vector<16x512xf32>
    %544 = arith.truncf %543 : vector<16x512xf32> to vector<16x512xbf16>
    %c0_146 = arith.constant 0 : index
    %c0_147 = arith.constant 0 : index
    %c0_148 = arith.constant 0 : index
    %545 = vector.load %arg10[%c0_146, %c0_147, %c0_148] : memref<1x512x128xbf16, #tpu.memory_space<vmem>>, vector<1x512x128xbf16>
    %546 = vector.shape_cast %545 : vector<1x512x128xbf16> to vector<512x128xbf16>
    %cst_149 = arith.constant dense<0.000000e+00> : vector<16x128xf32>
    %547 = tpu.matmul %544, %546, %cst_149 {dimension_numbers = #tpu.dot_dimension_numbers<[1], [0], [0], [1], [0, 0, 1, 1], [], []>} : vector<16x512xbf16>, vector<512x128xbf16>, vector<16x128xf32> -> vector<16x128xf32>
    %548 = vector.broadcast %11 : vector<1x128xf32> to vector<16x128xf32>
    %549 = arith.addf %547, %548 : vector<16x128xf32>
    %550 = arith.addf %507, %549 : vector<16x128xf32>
    %c0_150 = arith.constant 0 : index
    %c0_151 = arith.constant 0 : index
    %c0_152 = arith.constant 0 : index
    %551 = vector.load %arg11[%c0_150, %c0_151, %c0_152] : memref<1x16x128xf32, #tpu.memory_space<vmem>>, vector<1x16x128xf32>
    %552 = vector.shape_cast %551 : vector<1x16x128xf32> to vector<16x128xf32>
    %553 = vector.shape_cast %550 : vector<16x128xf32> to vector<1x16x128xf32>
    tpu.vector_store %arg11[%c0_150, %c0_151, %c0_152], %553 {strides = array<i32>} : memref<1x16x128xf32, #tpu.memory_space<vmem>>, vector<1x16x128xf32>,
    %c0_153 = arith.constant 0 : index
    %c0_154 = arith.constant 0 : index
    %554 = vector.load %arg12[%c0_153, %c0_154] : memref<16x128xf32, #tpu.memory_space<vmem>>, vector<16x128xf32>
    tpu.vector_store %arg12[%c0_153, %c0_154], %550 {strides = array<i32>} : memref<16x128xf32, #tpu.memory_space<vmem>>, vector<16x128xf32>,
    return
  }
  func.func @transform_0(%arg0: i32) -> (i32, i32) {
    %c0_i32 = arith.constant 0 : i32
    %c0_i32_0 = arith.constant 0 : i32
    %c0_i32_1 = arith.constant 0 : i32
    return %c0_i32, %c0_i32_0 : i32, i32
  }
  func.func @transform_1(%arg0: i32) -> (i32, i32, i32, i32) {
    %c0_i32 = arith.constant 0 : i32
    %c0_i32_0 = arith.constant 0 : i32
    %c0_i32_1 = arith.constant 0 : i32
    %c0_i32_2 = arith.constant 0 : i32
    return %arg0, %c0_i32, %c0_i32_0, %c0_i32_1 : i32, i32, i32, i32
  }
  func.func @transform_2(%arg0: i32) -> (i32, i32, i32, i32) {
    %c0_i32 = arith.constant 0 : i32
    %c0_i32_0 = arith.constant 0 : i32
    %c0_i32_1 = arith.constant 0 : i32
    %c0_i32_2 = arith.constant 0 : i32
    return %arg0, %c0_i32, %c0_i32_0, %c0_i32_1 : i32, i32, i32, i32
  }
  func.func @transform_3(%arg0: i32) -> (i32, i32, i32) {
    %c0_i32 = arith.constant 0 : i32
    %c0_i32_0 = arith.constant 0 : i32
    %c0_i32_1 = arith.constant 0 : i32
    %c0_i32_2 = arith.constant 0 : i32
    return %c0_i32, %c0_i32_0, %c0_i32_1 : i32, i32, i32
  }
  func.func @transform_4(%arg0: i32) -> (i32, i32, i32) {
    %c0_i32 = arith.constant 0 : i32
    %c0_i32_0 = arith.constant 0 : i32
    %c0_i32_1 = arith.constant 0 : i32
    %c0_i32_2 = arith.constant 0 : i32
    return %c0_i32, %c0_i32_0, %c0_i32_1 : i32, i32, i32
  }
  func.func @transform_5(%arg0: i32) -> (i32, i32, i32) {
    %c0_i32 = arith.constant 0 : i32
    %c0_i32_0 = arith.constant 0 : i32
    %c0_i32_1 = arith.constant 0 : i32
    return %arg0, %c0_i32, %c0_i32_0 : i32, i32, i32
  }
  func.func @transform_6(%arg0: i32) -> (i32, i32, i32) {
    %c0_i32 = arith.constant 0 : i32
    %c0_i32_0 = arith.constant 0 : i32
    %c0_i32_1 = arith.constant 0 : i32
    return %arg0, %c0_i32, %c0_i32_0 : i32, i32, i32
  }
  func.func @transform_7(%arg0: i32) -> (i32, i32, i32) {
    %c0_i32 = arith.constant 0 : i32
    %c0_i32_0 = arith.constant 0 : i32
    %c0_i32_1 = arith.constant 0 : i32
    return %arg0, %c0_i32, %c0_i32_0 : i32, i32, i32
  }
  func.func @transform_8(%arg0: i32) -> (i32, i32, i32) {
    %c0_i32 = arith.constant 0 : i32
    %c0_i32_0 = arith.constant 0 : i32
    %c0_i32_1 = arith.constant 0 : i32
    return %arg0, %c0_i32, %c0_i32_0 : i32, i32, i32
  }
  func.func @transform_9(%arg0: i32) -> (i32, i32, i32) {
    %c0_i32 = arith.constant 0 : i32
    %c0_i32_0 = arith.constant 0 : i32
    %c0_i32_1 = arith.constant 0 : i32
    return %arg0, %c0_i32, %c0_i32_0 : i32, i32, i32
  }
  func.func @transform_10(%arg0: i32) -> (i32, i32, i32) {
    %c0_i32 = arith.constant 0 : i32
    %c0_i32_0 = arith.constant 0 : i32
    %c0_i32_1 = arith.constant 0 : i32
    return %arg0, %c0_i32, %c0_i32_0 : i32, i32, i32
  }
}

</mosaic_0001>

<llo_original>
// kernel: tpu_custom_call.1
$region0: #{tpu_custom_call.1}
  #allocation0 [shape = 'u32[]', space=smem, size = 0x4, offset = 0x4, fixed_abs, tag = 'smem constant byte address 0x4 - core index']
  #allocation1 [shape = 'u32[144,128]{1,0:T(1,128)}', space=vmem, size = 0x12000, scoped, tag = 'internal scratch']
  #allocation2 [shape = 'f32[16,128]{1,0:T(8,128)}', space=vmem, size = 0x2000, scoped, tag = 'scratch operand']
  %s0 = inlined_call_operand.vmem [shape: f32[16,128], index: 0, kind: input, shape index: {}]
  %s1 = inlined_call_operand.hbm [shape: f32[2,2,8,128], index: 1, kind: input, shape index: {}]
  %s2 = inlined_call_operand.hbm [shape: f32[2,2,8,128], index: 2, kind: input, shape index: {}]
  %s3 = inlined_call_operand.vmem [shape: f32[2,1,8], index: 3, kind: input, shape index: {}]
  %s4 = inlined_call_operand.vmem [shape: f32[2,8,1], index: 4, kind: input, shape index: {}]
  %s5 = inlined_call_operand.hbm [shape: f32[2,8,512], index: 5, kind: input, shape index: {}]
  %s6 = inlined_call_operand.hbm [shape: bf16[2,128,256], index: 6, kind: input, shape index: {}]
  %s7 = inlined_call_operand.hbm [shape: bf16[2,128,128], index: 7, kind: input, shape index: {}]
  %s8 = inlined_call_operand.hbm [shape: bf16[2,128,512], index: 8, kind: input, shape index: {}]
  %s9 = inlined_call_operand.hbm [shape: bf16[2,512,128], index: 9, kind: input, shape index: {}]
  %s10 = inlined_call_operand.hbm [shape: f32[2,16,128], index: 10, kind: output, shape index: {}]
  %s11 = sld [smem:[#allocation0]]
  $region105: #{tpu_custom_call.1} parent=0
    _
  %s13 = ssub.s32 1, %s11
  %s14 = scalar_select 0, %s13, %s11
  $region1: #{tpu_custom_call.1} parent=0
    #allocation3 [shape = 'u8[16384]{0}', space=vmem, size = 0x4000, scoped, tag = 'input window, operand 1']
    #allocation4 [shape = 's32[2]{0}', space=sflag, size = 0x8, scoped, tag = 'scoped memory for tpu_custom_call.1']
    #allocation5 [shape = 's32[2]{0}', space=sflag, size = 0x8, scoped, tag = 'scoped memory for tpu_custom_call.1']
    #allocation6 [shape = 'u8[16384]{0}', space=vmem, size = 0x4000, scoped, tag = 'input window, operand 2']
    #allocation7 [shape = 's32[2]{0}', space=sflag, size = 0x8, scoped, tag = 'scoped memory for tpu_custom_call.1']
    #allocation8 [shape = 'u8[32768]{0}', space=vmem, size = 0x8000, scoped, tag = 'input window, operand 5']
    #allocation9 [shape = 'u8[131072]{0}', space=vmem, size = 0x20000, scoped, tag = 'input window, operand 6']
    #allocation10 [shape = 's32[2]{0}', space=sflag, size = 0x8, scoped, tag = 'scoped memory for tpu_custom_call.1']
    #allocation11 [shape = 'u8[65536]{0}', space=vmem, size = 0x10000, scoped, tag = 'input window, operand 7']
    #allocation12 [shape = 'u8[262144]{0}', space=vmem, size = 0x40000, scoped, tag = 'input window, operand 8']
    #allocation13 [shape = 's32[2]{0}', space=sflag, size = 0x8, scoped, tag = 'scoped memory for tpu_custom_call.1']
    #allocation14 [shape = 'u8[262144]{0}', space=vmem, size = 0x40000, scoped, tag = 'input window, operand 9']
    #allocation15 [shape = 'u8[16384]{0}', space=vmem, size = 0x4000, scoped, tag = 'output window, operand 0']
    %15 = vsyncpa [#allocation4], 0
    %s16 = scalar_lea.sflag [#allocation4], 1
    %17 = vsyncpa %s16, 0
    %18 = vsyncpa [#allocation7], 0
    %s19 = scalar_lea.sflag [#allocation7], 1
    %20 = vsyncpa %s19, 0
    %21 = vsyncpa [#allocation10], 0
    %s22 = scalar_lea.sflag [#allocation10], 1
    %23 = vsyncpa %s22, 0
    %24 = vsyncpa [#allocation13], 0
    %s25 = scalar_lea.sflag [#allocation13], 1
    %26 = vsyncpa %s25, 0
    %27 = vsyncpa [#allocation5], 0
    %s28 = scalar_lea.sflag [#allocation5], 1
    %29 = vsyncpa %s28, 0
    loop: start=0, step=1, limit=4
    $region2: #{tpu_custom_call.1} parent=1 // loop_pre_header
      _
    $region3: #{tpu_custom_call.1} parent=1 // loop_header
      %s31 = sphi 0, %s35
      %p32 = scmp.ge.s32.totalorder %s31, 4
      %s39 = sphi 0, %s39
      %s41 = sphi 0, %s39
      %s42 = sphi 0, %s41
      %s56 = sphi 0, %s42
      %s62 = sphi 0, %s64
      %s65 = sphi 0, %s62
      %s66 = sphi 0, %s65
      %s82 = sphi 0, %s66
      %s88 = sphi 0, %s90
      %s91 = sphi 0, %s88
      %s92 = sphi 0, %s91
      %s108 = sphi 0, %s92
      %s112 = sphi 0, %s112
      %s114 = sphi 0, %s112
      %s115 = sphi 0, %s114
      %s129 = sphi 0, %s115
      %s133 = sphi 0, %s133
      %s135 = sphi 0, %s133
      %s136 = sphi 0, %s135
      %s150 = sphi 0, %s136
      %s156 = sphi 0, %s158
      %s159 = sphi 0, %s156
      %s160 = sphi 0, %s159
      %s176 = sphi 0, %s160
      %s182 = sphi 0, %s184
      %s185 = sphi 0, %s182
      %s186 = sphi 0, %s185
      %s202 = sphi 0, %s186
      %s208 = sphi 0, %s210
      %s211 = sphi 0, %s208
      %s212 = sphi 0, %s211
      %s228 = sphi 0, %s212
      %s234 = sphi 0, %s236
      %s237 = sphi 0, %s234
      %s238 = sphi 0, %s237
      %s254 = sphi 0, %s238
      %s260 = sphi 0, %s262
      %s263 = sphi 0, %s260
      %s264 = sphi 0, %s263
      %s280 = sphi 0, %s264
      %s286 = sphi 0, %s288
      %s289 = sphi 0, %s286
      %s290 = sphi 0, %s289
      %s306 = sphi 0, %s290
    $region4: #{tpu_custom_call.1} parent=1 // loop_header_branch
      %34 = sbr.rel (%p32) target = $region8
    $region5: #{tpu_custom_call.1} parent=1 // loop_body
      %s36 = ssub.s32 %s31, 1
      %s37 = ssub.s32 %s31, 2
      %s38 = sadd.s32 %s31, 1
      %s40 = sadd.s32 %s39, 1
      %p43 = scmp.eq.s32.totalorder %s31, 1
      %p44 = scmp.ne.s32.totalorder %s39, %s41
      %p45 = scmp.eq.s32.totalorder %s31, 0
      %p46 = por %p44, %p45
      %p47 = scmp.ne.s32.totalorder %s39, %s41
      %p48 = scmp.eq.s32.totalorder %s36, 1
      %p49 = por %p47, %p48
      %p50 = scmp.ne.s32.totalorder %s41, %s42
      %p51 = scmp.eq.s32.totalorder %s36, 0
      %p52 = por %p50, %p51
      %p53 = scmp.ne.s32.totalorder %s41, %s42
      %p54 = scmp.eq.s32.totalorder %s37, 1
      %p55 = por %p53, %p54
      %p57 = scmp.ne.s32.totalorder %s42, %s56
      %p58 = scmp.eq.s32.totalorder %s37, 0
      %p59 = por %p57, %p58
      %s60 = ssub.s32 %s31, %s38
      %p61 = scmp.eq.s32.totalorder %s60, 0
      %s63 = sadd.s32 %s62, 1
      %s64 = scalar_select %p61, %s62, %s63
      %p67 = pneg %p61
      %p68 = scmp.eq.s32.totalorder %s31, 1
      %p69 = por %p67, %p68
      %p70 = scmp.ne.s32.totalorder %s62, %s65
      %p71 = scmp.eq.s32.totalorder %s31, 0
      %p72 = por %p70, %p71
      %p73 = scmp.ne.s32.totalorder %s62, %s65
      %p74 = scmp.eq.s32.totalorder %s36, 1
      %p75 = por %p73, %p74
      %p76 = scmp.ne.s32.totalorder %s65, %s66
      %p77 = scmp.eq.s32.totalorder %s36, 0
      %p78 = por %p76, %p77
      %p79 = scmp.ne.s32.totalorder %s65, %s66
      %p80 = scmp.eq.s32.totalorder %s37, 1
      %p81 = por %p79, %p80
      %p83 = scmp.ne.s32.totalorder %s66, %s82
      %p84 = scmp.eq.s32.totalorder %s37, 0
      %p85 = por %p83, %p84
      %s86 = ssub.s32 %s31, %s38
      %p87 = scmp.eq.s32.totalorder %s86, 0
      %s89 = sadd.s32 %s88, 1
      %s90 = scalar_select %p87, %s88, %s89
      %p93 = pneg %p87
      %p94 = scmp.eq.s32.totalorder %s31, 1
      %p95 = por %p93, %p94
      %p96 = scmp.ne.s32.totalorder %s88, %s91
      %p97 = scmp.eq.s32.totalorder %s31, 0
      %p98 = por %p96, %p97
      %p99 = scmp.ne.s32.totalorder %s88, %s91
      %p100 = scmp.eq.s32.totalorder %s36, 1
      %p101 = por %p99, %p100
      %p102 = scmp.ne.s32.totalorder %s91, %s92
      %p103 = scmp.eq.s32.totalorder %s36, 0
      %p104 = por %p102, %p103
      %p105 = scmp.ne.s32.totalorder %s91, %s92
      %p106 = scmp.eq.s32.totalorder %s37, 1
      %p107 = por %p105, %p106
      %p109 = scmp.ne.s32.totalorder %s92, %s108
      %p110 = scmp.eq.s32.totalorder %s37, 0
      %p111 = por %p109, %p110
      %s113 = sadd.s32 %s112, 1
      %p116 = scmp.eq.s32.totalorder %s31, 1
      %p117 = scmp.ne.s32.totalorder %s112, %s114
      %p118 = scmp.eq.s32.totalorder %s31, 0
      %p119 = por %p117, %p118
      %p120 = scmp.ne.s32.totalorder %s112, %s114
      %p121 = scmp.eq.s32.totalorder %s36, 1
      %p122 = por %p120, %p121
      %p123 = scmp.ne.s32.totalorder %s114, %s115
      %p124 = scmp.eq.s32.totalorder %s36, 0
      %p125 = por %p123, %p124
      %p126 = scmp.ne.s32.totalorder %s114, %s115
      %p127 = scmp.eq.s32.totalorder %s37, 1
      %p128 = por %p126, %p127
      %p130 = scmp.ne.s32.totalorder %s115, %s129
      %p131 = scmp.eq.s32.totalorder %s37, 0
      %p132 = por %p130, %p131
      %s134 = sadd.s32 %s133, 1
      %p137 = scmp.eq.s32.totalorder %s31, 1
      %p138 = scmp.ne.s32.totalorder %s133, %s135
      %p139 = scmp.eq.s32.totalorder %s31, 0
      %p140 = por %p138, %p139
      %p141 = scmp.ne.s32.totalorder %s133, %s135
      %p142 = scmp.eq.s32.totalorder %s36, 1
      %p143 = por %p141, %p142
      %p144 = scmp.ne.s32.totalorder %s135, %s136
      %p145 = scmp.eq.s32.totalorder %s36, 0
      %p146 = por %p144, %p145
      %p147 = scmp.ne.s32.totalorder %s135, %s136
      %p148 = scmp.eq.s32.totalorder %s37, 1
      %p149 = por %p147, %p148
      %p151 = scmp.ne.s32.totalorder %s136, %s150
      %p152 = scmp.eq.s32.totalorder %s37, 0
      %p153 = por %p151, %p152
      %s154 = ssub.s32 %s31, %s38
      %p155 = scmp.eq.s32.totalorder %s154, 0
      %s157 = sadd.s32 %s156, 1
      %s158 = scalar_select %p155, %s156, %s157
      %p161 = pneg %p155
      %p162 = scmp.eq.s32.totalorder %s31, 1
      %p163 = por %p161, %p162
      %p164 = scmp.ne.s32.totalorder %s156, %s159
      %p165 = scmp.eq.s32.totalorder %s31, 0
      %p166 = por %p164, %p165
      %p167 = scmp.ne.s32.totalorder %s156, %s159
      %p168 = scmp.eq.s32.totalorder %s36, 1
      %p169 = por %p167, %p168
      %p170 = scmp.ne.s32.totalorder %s159, %s160
      %p171 = scmp.eq.s32.totalorder %s36, 0
      %p172 = por %p170, %p171
      %p173 = scmp.ne.s32.totalorder %s159, %s160
      %p174 = scmp.eq.s32.totalorder %s37, 1
      %p175 = por %p173, %p174
      %p177 = scmp.ne.s32.totalorder %s160, %s176
      %p178 = scmp.eq.s32.totalorder %s37, 0
      %p179 = por %p177, %p178
      %s180 = ssub.s32 %s31, %s38
      %p181 = scmp.eq.s32.totalorder %s180, 0
      %s183 = sadd.s32 %s182, 1
      %s184 = scalar_select %p181, %s182, %s183
      %p187 = pneg %p181
      %p188 = scmp.eq.s32.totalorder %s31, 1
      %p189 = por %p187, %p188
      %p190 = scmp.ne.s32.totalorder %s182, %s185
      %p191 = scmp.eq.s32.totalorder %s31, 0
      %p192 = por %p190, %p191
      %p193 = scmp.ne.s32.totalorder %s182, %s185
      %p194 = scmp.eq.s32.totalorder %s36, 1
      %p195 = por %p193, %p194
      %p196 = scmp.ne.s32.totalorder %s185, %s186
      %p197 = scmp.eq.s32.totalorder %s36, 0
      %p198 = por %p196, %p197
      %p199 = scmp.ne.s32.totalorder %s185, %s186
      %p200 = scmp.eq.s32.totalorder %s37, 1
      %p201 = por %p199, %p200
      %p203 = scmp.ne.s32.totalorder %s186, %s202
      %p204 = scmp.eq.s32.totalorder %s37, 0
      %p205 = por %p203, %p204
      %s206 = ssub.s32 %s31, %s38
      %p207 = scmp.eq.s32.totalorder %s206, 0
      %s209 = sadd.s32 %s208, 1
      %s210 = scalar_select %p207, %s208, %s209
      %p213 = pneg %p207
      %p214 = scmp.eq.s32.totalorder %s31, 1
      %p215 = por %p213, %p214
      %p216 = scmp.ne.s32.totalorder %s208, %s211
      %p217 = scmp.eq.s32.totalorder %s31, 0
      %p218 = por %p216, %p217
      %p219 = scmp.ne.s32.totalorder %s208, %s211
      %p220 = scmp.eq.s32.totalorder %s36, 1
      %p221 = por %p219, %p220
      %p222 = scmp.ne.s32.totalorder %s211, %s212
      %p223 = scmp.eq.s32.totalorder %s36, 0
      %p224 = por %p222, %p223
      %p225 = scmp.ne.s32.totalorder %s211, %s212
      %p226 = scmp.eq.s32.totalorder %s37, 1
      %p227 = por %p225, %p226
      %p229 = scmp.ne.s32.totalorder %s212, %s228
      %p230 = scmp.eq.s32.totalorder %s37, 0
      %p231 = por %p229, %p230
      %s232 = ssub.s32 %s31, %s38
      %p233 = scmp.eq.s32.totalorder %s232, 0
      %s235 = sadd.s32 %s234, 1
      %s236 = scalar_select %p233, %s234, %s235
      %p239 = pneg %p233
      %p240 = scmp.eq.s32.totalorder %s31, 1
      %p241 = por %p239, %p240
      %p242 = scmp.ne.s32.totalorder %s234, %s237
      %p243 = scmp.eq.s32.totalorder %s31, 0
      %p244 = por %p242, %p243
      %p245 = scmp.ne.s32.totalorder %s234, %s237
      %p246 = scmp.eq.s32.totalorder %s36, 1
      %p247 = por %p245, %p246
      %p248 = scmp.ne.s32.totalorder %s237, %s238
      %p249 = scmp.eq.s32.totalorder %s36, 0
      %p250 = por %p248, %p249
      %p251 = scmp.ne.s32.totalorder %s237, %s238
      %p252 = scmp.eq.s32.totalorder %s37, 1
      %p253 = por %p251, %p252
      %p255 = scmp.ne.s32.totalorder %s238, %s254
      %p256 = scmp.eq.s32.totalorder %s37, 0
      %p257 = por %p255, %p256
      %s258 = ssub.s32 %s31, %s38
      %p259 = scmp.eq.s32.totalorder %s258, 0
      %s261 = sadd.s32 %s260, 1
      %s262 = scalar_select %p259, %s260, %s261
      %p265 = pneg %p259
      %p266 = scmp.eq.s32.totalorder %s31, 1
      %p267 = por %p265, %p266
      %p268 = scmp.ne.s32.totalorder %s260, %s263
      %p269 = scmp.eq.s32.totalorder %s31, 0
      %p270 = por %p268, %p269
      %p271 = scmp.ne.s32.totalorder %s260, %s263
      %p272 = scmp.eq.s32.totalorder %s36, 1
      %p273 = por %p271, %p272
      %p274 = scmp.ne.s32.totalorder %s263, %s264
      %p275 = scmp.eq.s32.totalorder %s36, 0
      %p276 = por %p274, %p275
      %p277 = scmp.ne.s32.totalorder %s263, %s264
      %p278 = scmp.eq.s32.totalorder %s37, 1
      %p279 = por %p277, %p278
      %p281 = scmp.ne.s32.totalorder %s264, %s280
      %p282 = scmp.eq.s32.totalorder %s37, 0
      %p283 = por %p281, %p282
      %s284 = ssub.s32 %s31, %s38
      %p285 = scmp.eq.s32.totalorder %s284, 0
      %s287 = sadd.s32 %s286, 1
      %s288 = scalar_select %p285, %s286, %s287
      %p291 = pneg %p285
      %p292 = scmp.eq.s32.totalorder %s31, 1
      %p293 = por %p291, %p292
      %p294 = scmp.ne.s32.totalorder %s286, %s289
      %p295 = scmp.eq.s32.totalorder %s31, 0
      %p296 = por %p294, %p295
      %p297 = scmp.ne.s32.totalorder %s286, %s289
      %p298 = scmp.eq.s32.totalorder %s36, 1
      %p299 = por %p297, %p298
      %p300 = scmp.ne.s32.totalorder %s289, %s290
      %p301 = scmp.eq.s32.totalorder %s36, 0
      %p302 = por %p300, %p301
      %p303 = scmp.ne.s32.totalorder %s289, %s290
      %p304 = scmp.eq.s32.totalorder %s37, 1
      %p305 = por %p303, %p304
      %p307 = scmp.ne.s32.totalorder %s290, %s306
      %p308 = scmp.eq.s32.totalorder %s37, 0
      %p309 = por %p307, %p308
      %p310 = scmp.le.s32.totalorder 1, %s31
      %p311 = scmp.lt.s32.totalorder %s31, 3
      %p312 = pnand %p310, %p311
      %p313 = pneg %p312
      // Predicated region
      $region9: #{tpu_custom_call.1} parent=5 // pred_check
        _
      $region10: #{tpu_custom_call.1} parent=5 // pred_check_branch
        %315 = sbr.rel (%p312) target = $region12
      $region11: #{tpu_custom_call.1} parent=5 // pred_region
        %s316 = ssub.s32 %s31, 1
        // Predicated region
        $region13: #{tpu_custom_call.1} parent=11 // pred_check
          %p317 = pneg %p52
        $region14: #{tpu_custom_call.1} parent=11 // pred_check_branch
          %319 = sbr.rel (%p317) target = $region16
        $region15: #{tpu_custom_call.1} parent=11 // pred_region
          _
        $region16: #{tpu_custom_call.1} parent=11 // pred_fallthru
          _
        // Predicated region
        $region17: #{tpu_custom_call.1} parent=11 // pred_check
          %p320 = pneg %p125
        $region18: #{tpu_custom_call.1} parent=11 // pred_check_branch
          %322 = sbr.rel (%p320) target = $region20
        $region19: #{tpu_custom_call.1} parent=11 // pred_region
          _
        $region20: #{tpu_custom_call.1} parent=11 // pred_fallthru
          _
        // Predicated region
        $region21: #{tpu_custom_call.1} parent=11 // pred_check
          %p323 = pneg %p146
        $region22: #{tpu_custom_call.1} parent=11 // pred_check_branch
          %325 = sbr.rel (%p323) target = $region24
        $region23: #{tpu_custom_call.1} parent=11 // pred_region
          _
        $region24: #{tpu_custom_call.1} parent=11 // pred_fallthru
          _
      $region12: #{tpu_custom_call.1} parent=5 // pred_fallthru
        _
      %p326 = scmp.lt.s32.totalorder %s31, 2
      // Predicated region
      $region25: #{tpu_custom_call.1} parent=5 // pred_check
        %p327 = pneg %p326
      $region26: #{tpu_custom_call.1} parent=5 // pred_check_branch
        %329 = sbr.rel (%p327) target = $region28
      $region27: #{tpu_custom_call.1} parent=5 // pred_region
        // Predicated region
        $region29: #{tpu_custom_call.1} parent=27 // pred_check
          %p330 = pneg %p72
        $region30: #{tpu_custom_call.1} parent=27 // pred_check_branch
          %332 = sbr.rel (%p330) target = $region32
        $region31: #{tpu_custom_call.1} parent=27 // pred_region
          %s333 = sand.u32 %s62, 1
          %s334 = scalar_lea.sflag [#allocation4], %s333
          %s335 = sand.u32 %s62, 1
          %s336 = smul.addr %s335, 16
          %s337 = scalar_lea.vmem [#allocation3], %s336
          %s339 = ssub.s32 256, 256
          %340 = vsyncadd %s334, %s339
          %s341 = smul.addr %s31, 2
          %s342 = smul.addr %s341, 128
          %s343 = scalar_lea.hbm %s1, %s342
          %s344 = sshll.u32 %s337, 4
          %s345 = int_to_ptr.vmem [resolvable:$true] %s344
          %350 = dma.hbm_to_vmem [thread:$0]  %s343, 256, %s345, %s334, 128, 128, 8
        $region32: #{tpu_custom_call.1} parent=27 // pred_fallthru
          _
        // Predicated region
        $region33: #{tpu_custom_call.1} parent=27 // pred_check
          %p351 = pneg %p98
        $region34: #{tpu_custom_call.1} parent=27 // pred_check_branch
          %353 = sbr.rel (%p351) target = $region36
        $region35: #{tpu_custom_call.1} parent=27 // pred_region
          %s354 = sand.u32 %s31, 1
          %s355 = scalar_lea.sflag [#allocation7], %s354
          %s356 = sand.u32 %s88, 1
          %s357 = smul.addr %s356, 16
          %s358 = scalar_lea.vmem [#allocation6], %s357
          %s360 = ssub.s32 256, 256
          %361 = vsyncadd %s355, %s360
          %s362 = smul.addr %s31, 2
          %s363 = smul.addr %s362, 128
          %s364 = scalar_lea.hbm %s2, %s363
          %s365 = sshll.u32 %s358, 4
          %s366 = int_to_ptr.vmem [resolvable:$true] %s365
          %371 = dma.hbm_to_vmem [thread:$0]  %s364, 256, %s366, %s355, 128, 128, 8
        $region36: #{tpu_custom_call.1} parent=27 // pred_fallthru
          _
        // Predicated region
        $region37: #{tpu_custom_call.1} parent=27 // pred_check
          %p372 = pneg %p166
        $region38: #{tpu_custom_call.1} parent=27 // pred_check_branch
          %374 = sbr.rel (%p372) target = $region40
        $region39: #{tpu_custom_call.1} parent=27 // pred_region
          %s375 = sand.u32 %s31, 1
          %s376 = scalar_lea.sflag [#allocation7], %s375
          %s377 = sand.u32 %s156, 1
          %s378 = smul.addr %s377, 32
          %s379 = scalar_lea.vmem [#allocation8], %s378
          %s381 = ssub.s32 512, 512
          %382 = vsyncadd %s376, %s381
          %s383 = smul.addr %s31, 4
          %s384 = smul.addr %s383, 128
          %s385 = scalar_lea.hbm %s5, %s384
          %s387 = sshll.u32 %s379, 4
          %s388 = int_to_ptr.vmem [resolvable:$true] %s387
          %390 = dma.hbm_to_vmem [thread:$0]  %s385, 512, %s388, %s376
        $region40: #{tpu_custom_call.1} parent=27 // pred_fallthru
          _
        // Predicated region
        $region41: #{tpu_custom_call.1} parent=27 // pred_check
          %p391 = pneg %p192
        $region42: #{tpu_custom_call.1} parent=27 // pred_check_branch
          %393 = sbr.rel (%p391) target = $region44
        $region43: #{tpu_custom_call.1} parent=27 // pred_region
          %s394 = sand.u32 %s31, 1
          %s395 = scalar_lea.sflag [#allocation10], %s394
          %s396 = sand.u32 %s182, 1
          %s397 = smul.addr %s396, 128
          %s398 = scalar_lea.vmem [#allocation9], %s397
          %s400 = ssub.s32 2048, 2048
          %401 = vsyncadd %s395, %s400
          %s402 = smul.addr %s31, 32
          %s403 = smul.addr %s402, 64
          %s404 = scalar_lea.hbm %s6, %s403
          %s405 = sshll.u32 %s398, 4
          %s406 = int_to_ptr.vmem [resolvable:$true] %s405
          %411 = dma.hbm_to_vmem [thread:$0]  %s404, 2048, %s406, %s395, 128, 128, 8
        $region44: #{tpu_custom_call.1} parent=27 // pred_fallthru
          _
        // Predicated region
        $region45: #{tpu_custom_call.1} parent=27 // pred_check
          %p412 = pneg %p218
        $region46: #{tpu_custom_call.1} parent=27 // pred_check_branch
          %414 = sbr.rel (%p412) target = $region48
        $region47: #{tpu_custom_call.1} parent=27 // pred_region
          %s415 = sand.u32 %s31, 1
          %s416 = scalar_lea.sflag [#allocation10], %s415
          %s417 = sand.u32 %s208, 1
          %s418 = smul.addr %s417, 64
          %s419 = scalar_lea.vmem [#allocation11], %s418
          %s421 = ssub.s32 1024, 1024
          %422 = vsyncadd %s416, %s421
          %s423 = smul.addr %s31, 16
          %s424 = smul.addr %s423, 64
          %s425 = scalar_lea.hbm %s7, %s424
          %s426 = sshll.u32 %s419, 4
          %s427 = int_to_ptr.vmem [resolvable:$true] %s426
          %432 = dma.hbm_to_vmem [thread:$0]  %s425, 1024, %s427, %s416, 64, 64, 4
        $region48: #{tpu_custom_call.1} parent=27 // pred_fallthru
          _
        // Predicated region
        $region49: #{tpu_custom_call.1} parent=27 // pred_check
          %p433 = pneg %p244
        $region50: #{tpu_custom_call.1} parent=27 // pred_check_branch
          %435 = sbr.rel (%p433) target = $region52
        $region51: #{tpu_custom_call.1} parent=27 // pred_region
          %s436 = sand.u32 %s31, 1
          %s437 = scalar_lea.sflag [#allocation13], %s436
          %s438 = sand.u32 %s234, 1
          %s439 = smul.addr %s438, 256
          %s440 = scalar_lea.vmem [#allocation12], %s439
          %s442 = ssub.s32 4096, 4096
          %443 = vsyncadd %s437, %s442
          %s444 = smul.addr %s31, 64
          %s445 = smul.addr %s444, 64
          %s446 = scalar_lea.hbm %s8, %s445
          %s447 = sshll.u32 %s440, 4
          %s448 = int_to_ptr.vmem [resolvable:$true] %s447
          %453 = dma.hbm_to_vmem [thread:$0]  %s446, 4096, %s448, %s437, 256, 256, 16
        $region52: #{tpu_custom_call.1} parent=27 // pred_fallthru
          _
        // Predicated region
        $region53: #{tpu_custom_call.1} parent=27 // pred_check
          %p454 = pneg %p270
        $region54: #{tpu_custom_call.1} parent=27 // pred_check_branch
          %456 = sbr.rel (%p454) target = $region56
        $region55: #{tpu_custom_call.1} parent=27 // pred_region
          %s457 = sand.u32 %s31, 1
          %s458 = scalar_lea.sflag [#allocation13], %s457
          %s459 = sand.u32 %s260, 1
          %s460 = smul.addr %s459, 256
          %s461 = scalar_lea.vmem [#allocation14], %s460
          %s463 = ssub.s32 4096, 4096
          %464 = vsyncadd %s458, %s463
          %s465 = smul.addr %s31, 64
          %s466 = smul.addr %s465, 64
          %s467 = scalar_lea.hbm %s9, %s466
          %s468 = sshll.u32 %s461, 4
          %s469 = int_to_ptr.vmem [resolvable:$true] %s468
          %474 = dma.hbm_to_vmem [thread:$0]  %s467, 4096, %s469, %s458, 64, 64, 4
        $region56: #{tpu_custom_call.1} parent=27 // pred_fallthru
          _
      $region28: #{tpu_custom_call.1} parent=5 // pred_fallthru
        _
      %p475 = scmp.le.s32.totalorder 1, %s31
      %p476 = scmp.lt.s32.totalorder %s31, 3
      %p477 = pnand %p475, %p476
      %p478 = pneg %p477
      // Predicated region
      $region57: #{tpu_custom_call.1} parent=5 // pred_check
        _
      $region58: #{tpu_custom_call.1} parent=5 // pred_check_branch
        %480 = sbr.rel (%p477) target = $region60
      $region59: #{tpu_custom_call.1} parent=5 // pred_region
        %s481 = ssub.s32 %s31, 1
        %s482 = sand.u32 %s65, 1
        %s483 = scalar_lea.sflag [#allocation4], %s482
        %s484 = sand.u32 %s65, 1
        %s485 = smul.addr %s484, 16
        %s486 = scalar_lea.vmem [#allocation3], %s485
        // Predicated region
        $region61: #{tpu_custom_call.1} parent=59 // pred_check
          %p487 = pneg %p78
        $region62: #{tpu_custom_call.1} parent=59 // pred_check_branch
          %489 = sbr.rel (%p487) target = $region64
        $region63: #{tpu_custom_call.1} parent=59 // pred_region
          %490 = dma.done %s483, 256
        $region64: #{tpu_custom_call.1} parent=59 // pred_fallthru
          _
        %s491 = sand.u32 %s36, 1
        %s492 = scalar_lea.sflag [#allocation7], %s491
        %s493 = sand.u32 %s91, 1
        %s494 = smul.addr %s493, 16
        %s495 = scalar_lea.vmem [#allocation6], %s494
        // Predicated region
        $region65: #{tpu_custom_call.1} parent=59 // pred_check
          %p496 = pneg %p104
        $region66: #{tpu_custom_call.1} parent=59 // pred_check_branch
          %498 = sbr.rel (%p496) target = $region68
        $region67: #{tpu_custom_call.1} parent=59 // pred_region
          %499 = dma.done %s492, 256
        $region68: #{tpu_custom_call.1} parent=59 // pred_fallthru
          _
        %s500 = sand.u32 %s36, 1
        %s501 = scalar_lea.sflag [#allocation7], %s500
        %s502 = sand.u32 %s159, 1
        %s503 = smul.addr %s502, 32
        %s504 = scalar_lea.vmem [#allocation8], %s503
        // Predicated region
        $region69: #{tpu_custom_call.1} parent=59 // pred_check
          %p505 = pneg %p172
        $region70: #{tpu_custom_call.1} parent=59 // pred_check_branch
          %507 = sbr.rel (%p505) target = $region72
        $region71: #{tpu_custom_call.1} parent=59 // pred_region
          %508 = dma.done %s501, 512
        $region72: #{tpu_custom_call.1} parent=59 // pred_fallthru
          _
        %s509 = sand.u32 %s36, 1
        %s510 = scalar_lea.sflag [#allocation10], %s509
        %s511 = sand.u32 %s185, 1
        %s512 = smul.addr %s511, 128
        %s513 = scalar_lea.vmem [#allocation9], %s512
        // Predicated region
        $region73: #{tpu_custom_call.1} parent=59 // pred_check
          %p514 = pneg %p198
        $region74: #{tpu_custom_call.1} parent=59 // pred_check_branch
          %516 = sbr.rel (%p514) target = $region76
        $region75: #{tpu_custom_call.1} parent=59 // pred_region
          %517 = dma.done %s510, 2048
        $region76: #{tpu_custom_call.1} parent=59 // pred_fallthru
          _
        %s518 = sand.u32 %s36, 1
        %s519 = scalar_lea.sflag [#allocation10], %s518
        %s520 = sand.u32 %s211, 1
        %s521 = smul.addr %s520, 64
        %s522 = scalar_lea.vmem [#allocation11], %s521
        // Predicated region
        $region77: #{tpu_custom_call.1} parent=59 // pred_check
          %p523 = pneg %p224
        $region78: #{tpu_custom_call.1} parent=59 // pred_check_branch
          %525 = sbr.rel (%p523) target = $region80
        $region79: #{tpu_custom_call.1} parent=59 // pred_region
          %526 = dma.done %s519, 1024
        $region80: #{tpu_custom_call.1} parent=59 // pred_fallthru
          _
        %s527 = sand.u32 %s36, 1
        %s528 = scalar_lea.sflag [#allocation13], %s527
        %s529 = sand.u32 %s237, 1
        %s530 = smul.addr %s529, 256
        %s531 = scalar_lea.vmem [#allocation12], %s530
        // Predicated region
        $region81: #{tpu_custom_call.1} parent=59 // pred_check
          %p532 = pneg %p250
        $region82: #{tpu_custom_call.1} parent=59 // pred_check_branch
          %534 = sbr.rel (%p532) target = $region84
        $region83: #{tpu_custom_call.1} parent=59 // pred_region
          %535 = dma.done %s528, 4096
        $region84: #{tpu_custom_call.1} parent=59 // pred_fallthru
          _
        %s536 = sand.u32 %s36, 1
        %s537 = scalar_lea.sflag [#allocation13], %s536
        %s538 = sand.u32 %s263, 1
        %s539 = smul.addr %s538, 256
        %s540 = scalar_lea.vmem [#allocation14], %s539
        // Predicated region
        $region85: #{tpu_custom_call.1} parent=59 // pred_check
          %p541 = pneg %p276
        $region86: #{tpu_custom_call.1} parent=59 // pred_check_branch
          %543 = sbr.rel (%p541) target = $region88
        $region87: #{tpu_custom_call.1} parent=59 // pred_region
          %544 = dma.done %s537, 4096
        $region88: #{tpu_custom_call.1} parent=59 // pred_fallthru
          _
        %p545 = pneg %p52
        %p546 = pneg %p49
        %s547 = sand.u32 %s65, 1
        %s548 = scalar_lea.sflag [#allocation4], %s547
        %s549 = sand.u32 %s65, 1
        %s550 = smul.addr %s549, 16
        %s551 = scalar_lea.vmem [#allocation3], %s550
        %p552 = pneg %p78
        %p553 = pneg %p75
        %s554 = sand.u32 %s36, 1
        %s555 = scalar_lea.sflag [#allocation7], %s554
        %s556 = sand.u32 %s91, 1
        %s557 = smul.addr %s556, 16
        %s558 = scalar_lea.vmem [#allocation6], %s557
        %p559 = pneg %p104
        %p560 = pneg %p101
        %p561 = pneg %p125
        %p562 = pneg %p122
        %p563 = pneg %p146
        %p564 = pneg %p143
        %s565 = sand.u32 %s36, 1
        %s566 = scalar_lea.sflag [#allocation7], %s565
        %s567 = sand.u32 %s159, 1
        %s568 = smul.addr %s567, 32
        %s569 = scalar_lea.vmem [#allocation8], %s568
        %p570 = pneg %p172
        %p571 = pneg %p169
        %s572 = sand.u32 %s36, 1
        %s573 = scalar_lea.sflag [#allocation10], %s572
        %s574 = sand.u32 %s185, 1
        %s575 = smul.addr %s574, 128
        %s576 = scalar_lea.vmem [#allocation9], %s575
        %p577 = pneg %p198
        %p578 = pneg %p195
        %s579 = sand.u32 %s36, 1
        %s580 = scalar_lea.sflag [#allocation10], %s579
        %s581 = sand.u32 %s211, 1
        %s582 = smul.addr %s581, 64
        %s583 = scalar_lea.vmem [#allocation11], %s582
        %p584 = pneg %p224
        %p585 = pneg %p221
        %s586 = sand.u32 %s36, 1
        %s587 = scalar_lea.sflag [#allocation13], %s586
        %s588 = sand.u32 %s237, 1
        %s589 = smul.addr %s588, 256
        %s590 = scalar_lea.vmem [#allocation12], %s589
        %p591 = pneg %p250
        %p592 = pneg %p247
        %s593 = sand.u32 %s36, 1
        %s594 = scalar_lea.sflag [#allocation13], %s593
        %s595 = sand.u32 %s263, 1
        %s596 = smul.addr %s595, 256
        %s597 = scalar_lea.vmem [#allocation14], %s596
        %p598 = pneg %p276
        %p599 = pneg %p273
        %p600 = pneg %p302
        %p601 = pneg %p299
        %s602 = sand.u32 %s289, 1
        %s603 = scalar_lea.sflag [#allocation5], %s602
        %s604 = sand.u32 %s289, 1
        %s605 = smul.addr %s604, 16
        %s606 = scalar_lea.vmem [#allocation15], %s605
        %p608 = scmp.eq.s32.totalorder %s36, 0
        // Predicated region
        $region89: #{tpu_custom_call.1} parent=59 // pred_check
          %p609 = pneg %p608
        $region90: #{tpu_custom_call.1} parent=59 // pred_check_branch
          %611 = sbr.rel (%p609) target = $region92
        $region91: #{tpu_custom_call.1} parent=59 // pred_region
          %v612 = vld [vmem:[%s0] sm:$0xff]
          %v613 = vld [vmem:[%s0 + $0x8] sm:$0xff]
          %614 = vst [vmem:[#allocation2] sm:$0xff] %v612
          %615 = vst [vmem:[#allocation2 + $0x8] sm:$0xff] %v613
        $region92: #{tpu_custom_call.1} parent=59 // pred_fallthru
          _
        %v616 = vld [vmem:[#allocation2] sm:$0xff]
        %v617 = vld [vmem:[#allocation2 + $0x8] sm:$0xff]
        %v618 = vld [vmem:[%s504] sm:$0xff]
        %v619 = vld [vmem:[%s504 + $0x8] sm:$0xff]
        %v620 = vld [vmem:[%s504 + $0x10] sm:$0xff]
        %v621 = vld [vmem:[%s504 + $0x18] sm:$0xff]
        %622 = vadd.xlane.f32.xlu0 %v616
        %v623 = vpop.xlane.xlu0 %622
        %624 = vadd.xlane.f32.xlu0 %v617
        %v625 = vpop.xlane.xlu0 %624
        %v626 = vrcp.pop 128.0
        %v627 = vmul.f32 %v623, %v626
        %v628 = vmul.f32 %v625, %v626
        %v629 = vsub.f32 %v616, %v627
        %v630 = vsub.f32 %v617, %v628
        %v631 = vmul.f32 %v629, %v629
        %v632 = vmul.f32 %v630, %v630
        %633 = vadd.xlane.f32.xlu0 %v631
        %v634 = vpop.xlane.xlu0 %633
        %635 = vadd.xlane.f32.xlu0 %v632
        %v636 = vpop.xlane.xlu0 %635
        %v637 = vmul.f32 %v634, %v626
        %v638 = vmul.f32 %v636, %v626
        %v639 = vadd.f32 %v637, 1e-05
        %v640 = vadd.f32 %v638, 1e-05
        %v641 = vrsqrt.pop %v639
        %v642 = vrsqrt.pop %v640
        %v643 = vmul.f32 %v629, %v641
        %v644 = vmul.f32 %v630, %v642
        %v645 = vlaneseq
        %v646 = vshrl.u32 %v645, 7
        %v647 = vsub.s32 0, %v646
        %v648 = vrot.slane %v618, %v647
        %v649 = vmul.f32 %v643, %v648
        %v650 = vmul.f32 %v644, %v648
        %v651 = vlaneseq
        %v652 = vshrl.u32 %v651, 7
        %v653 = vsub.s32 1, %v652
        %v654 = vrot.slane %v618, %v653
        %v655 = vadd.f32 %v649, %v654
        %v656 = vadd.f32 %v650, %v654
        %v657 = vpack.c.bf16 %v656, %v655
        %v658 = vld [vmem:[%s513] sm:$0xff]
        %v659 = vld [vmem:[%s513 + $0x8] sm:$0xff]
        %v660 = vld [vmem:[%s513 + $0x10] sm:$0xff]
        %v661 = vld [vmem:[%s513 + $0x18] sm:$0xff]
        %v662 = vld [vmem:[%s513 + $0x20] sm:$0xff]
        %v663 = vld [vmem:[%s513 + $0x28] sm:$0xff]
        %v664 = vld [vmem:[%s513 + $0x30] sm:$0xff]
        %v665 = vld [vmem:[%s513 + $0x38] sm:$0xff]
        %v666 = vld [vmem:[%s513 + $0x40] sm:$0xff]
        %v667 = vld [vmem:[%s513 + $0x48] sm:$0xff]
        %v668 = vld [vmem:[%s513 + $0x50] sm:$0xff]
        %v669 = vld [vmem:[%s513 + $0x58] sm:$0xff]
        %v670 = vld [vmem:[%s513 + $0x60] sm:$0xff]
        %v671 = vld [vmem:[%s513 + $0x68] sm:$0xff]
        %v672 = vld [vmem:[%s513 + $0x70] sm:$0xff]
        %v673 = vld [vmem:[%s513 + $0x78] sm:$0xff]
        %v674 = vlaneseq
        %v675 = vshrl.u32 %v674, 7
        %v676 = vsub.s32 6, %v675
        %v677 = vrot.slane %v618, %v676
        %v678 = vlaneseq
        %v679 = vshrl.u32 %v678, 7
        %v680 = vsub.s32 6, %v679
        %v681 = vrot.slane %v619, %v680
        %v698 = vunpack.c.l.b16 %v658
        %v699 = vunpack.c.h.b16 %v658
        %v700 = vunpack.c.l.b16 %v659
        %v701 = vunpack.c.h.b16 %v659
        %v702 = vunpack.c.l.b16 %v660
        %v703 = vunpack.c.h.b16 %v660
        %v704 = vunpack.c.l.b16 %v661
        %v705 = vunpack.c.h.b16 %v661
        %v706 = vunpack.c.l.b16 %v662
        %v707 = vunpack.c.h.b16 %v662
        %v708 = vunpack.c.l.b16 %v663
        %v709 = vunpack.c.h.b16 %v663
        %v710 = vunpack.c.l.b16 %v664
        %v711 = vunpack.c.h.b16 %v664
        %v712 = vunpack.c.l.b16 %v665
        %v713 = vunpack.c.h.b16 %v665
        %v714 = vunpack.c.l.b16 %v666
        %v715 = vunpack.c.h.b16 %v666
        %v716 = vunpack.c.l.b16 %v667
        %v717 = vunpack.c.h.b16 %v667
        %v718 = vunpack.c.l.b16 %v668
        %v719 = vunpack.c.h.b16 %v668
        %v720 = vunpack.c.l.b16 %v669
        %v721 = vunpack.c.h.b16 %v669
        %v722 = vunpack.c.l.b16 %v670
        %v723 = vunpack.c.h.b16 %v670
        %v724 = vunpack.c.l.b16 %v671
        %v725 = vunpack.c.h.b16 %v671
        %v726 = vunpack.c.l.b16 %v672
        %v727 = vunpack.c.h.b16 %v672
        %v728 = vunpack.c.l.b16 %v673
        %v729 = vunpack.c.h.b16 %v673
        %v730 = vpack.c.b16 %v700, %v698
        %v731 = vpack.c.b16 %v701, %v699
        %v732 = vpack.c.b16 %v704, %v702
        %v733 = vpack.c.b16 %v705, %v703
        %v734 = vpack.c.b16 %v708, %v706
        %v735 = vpack.c.b16 %v709, %v707
        %v736 = vpack.c.b16 %v712, %v710
        %v737 = vpack.c.b16 %v713, %v711
        %v738 = vpack.c.b16 %v716, %v714
        %v739 = vpack.c.b16 %v717, %v715
        %v740 = vpack.c.b16 %v720, %v718
        %v741 = vpack.c.b16 %v721, %v719
        %v742 = vpack.c.b16 %v724, %v722
        %v743 = vpack.c.b16 %v725, %v723
        %v744 = vpack.c.b16 %v728, %v726
        %v745 = vpack.c.b16 %v729, %v727
        %762 = vmatprep.subr.bf16.mxu0 %v731
        %763 = vmatpush1.bf16.msra.mxu0 %v730
        %764 = vmatprep.subr.bf16.mxu0 %v733
        %765 = vmatpush1.bf16.msra.mxu0 %v732
        %766 = vmatprep.subr.bf16.mxu0 %v735
        %767 = vmatpush1.bf16.msra.mxu0 %v734
        %768 = vmatprep.subr.bf16.mxu0 %v737
        %769 = vmatpush1.bf16.msra.mxu0 %v736
        %770 = vmatprep.subr.bf16.mxu0 %v739
        %771 = vmatpush1.bf16.msra.mxu0 %v738
        %772 = vmatprep.subr.bf16.mxu0 %v741
        %773 = vmatpush1.bf16.msra.mxu0 %v740
        %774 = vmatprep.subr.bf16.mxu0 %v743
        %775 = vmatpush1.bf16.msra.mxu0 %v742
        %776 = vmatprep.subr.bf16.mxu0 %v745
        %777 = vmatpush1.bf16.msra.mxu0 %v744
        %778 = vmatprep.subr.bf16.mxu0 0
        %779 = vmatpush1.bf16.msra.mxu0 0
        %780 = vmatprep.subr.bf16.mxu0 0
        %781 = vmatpush1.bf16.msra.mxu0 0
        %782 = vmatprep.subr.bf16.mxu0 0
        %783 = vmatpush1.bf16.msra.mxu0 0
        %784 = vmatprep.subr.bf16.mxu0 0
        %785 = vmatpush1.bf16.msra.mxu0 0
        %786 = vmatprep.subr.bf16.mxu0 0
        %787 = vmatpush1.bf16.msra.mxu0 0
        %788 = vmatprep.subr.bf16.mxu0 0
        %789 = vmatpush1.bf16.msra.mxu0 0
        %790 = vmatprep.subr.bf16.mxu0 0
        %791 = vmatpush1.bf16.msra.mxu0 0
        %792 = vmatprep.subr.bf16.mxu0 0
        %793 = vmatpush1.bf16.msra.mxu0 0
        %794 = vmatprep.mubr.bf16.mxu0 0
        %795 = vmatmul.mubr.bf16.gmra.mrb[0].mxu0 %v657
        %v796 = vpop.f32.mrb[0].mxu0
        %v797 = vadd.f32 %v677, %v796
        %v798 = vpop.f32.mrb[0].mxu0
        %v799 = vadd.f32 %v681, %v798
        %v800 = vpop.f32.mrb[0].mxu0
        %v801 = vadd.f32 %v677, %v800
        %v802 = vpop.f32.mrb[0].mxu0
        %v803 = vadd.f32 %v681, %v802
        %804 = vdwg.mxu0
        %v805 = vld [vmem:[%s486] sm:$0xff]
        %v806 = vld [vmem:[%s486 + $0x8] sm:$0xff]
        %v807 = vld [vmem:[%s495] sm:$0xff]
        %v808 = vld [vmem:[%s495 + $0x8] sm:$0xff]
        %v809 = vld [vmem:[%s3] sm:$0x1]
        %v810 = vld [vmem:[%s3 + $0x1] sm:$0x1]
        %v811 = vld [vmem:[%s4] sm:$0xff]
        %v812 = vld [vmem:[%s4 + $0x8] sm:$0xff]
        %v813 = vmul.f32 %v797, 0.17677669
        %v814 = vmul.f32 %v799, 0.17677669
        %v815 = vpack.c.bf16 %v814, %v813
        %v816 = vpack.c.bf16 %v805, %v805
        %vm817 = vcmask 261120
        %v819 = vsel %vm817, %v815, 0
        %v822 = vsel %vm817, %v816, 0
        %824 = vmatprep.subr.bf16.mxu0 0
        %825 = vmatpush1.bf16.xpose.msra.mxu0 %v822
        %826 = vmatprep.subr.bf16.mxu0 0
        %827 = vmatpush1.bf16.xpose.msra.mxu0 0
        %828 = vmatprep.subr.bf16.mxu0 0
        %829 = vmatpush1.bf16.xpose.msra.mxu0 0
        %830 = vmatprep.subr.bf16.mxu0 0
        %831 = vmatpush1.bf16.xpose.msra.mxu0 0
        %832 = vmatprep.subr.bf16.mxu0 0
        %833 = vmatpush1.bf16.xpose.msra.mxu0 0
        %834 = vmatprep.subr.bf16.mxu0 0
        %835 = vmatpush1.bf16.xpose.msra.mxu0 0
        %836 = vmatprep.subr.bf16.mxu0 0
        %837 = vmatpush1.bf16.xpose.msra.mxu0 0
        %838 = vmatprep.subr.bf16.mxu0 0
        %839 = vmatpush1.bf16.xpose.msra.mxu0 0
        %840 = vmatprep.subr.bf16.mxu0 0
        %841 = vmatpush1.bf16.xpose.msra.mxu0 0
        %842 = vmatprep.subr.bf16.mxu0 0
        %843 = vmatpush1.bf16.xpose.msra.mxu0 0
        %844 = vmatprep.subr.bf16.mxu0 0
        %845 = vmatpush1.bf16.xpose.msra.mxu0 0
        %846 = vmatprep.subr.bf16.mxu0 0
        %847 = vmatpush1.bf16.xpose.msra.mxu0 0
        %848 = vmatprep.subr.bf16.mxu0 0
        %849 = vmatpush1.bf16.xpose.msra.mxu0 0
        %850 = vmatprep.subr.bf16.mxu0 0
        %851 = vmatpush1.bf16.xpose.msra.mxu0 0
        %852 = vmatprep.subr.bf16.mxu0 0
        %853 = vmatpush1.bf16.xpose.msra.mxu0 0
        %854 = vmatprep.subr.bf16.mxu0 0
        %855 = vmatpush1.bf16.xpose.msra.mxu0 0
        %856 = vmatprep.mubr.bf16.mxu0 0
        %857 = vmatmul.mubr.bf16.gmra.mrb[0].mxu0 %v819
        %v858 = vpop.f32.mrb[0].mxu0
        %v859 = vadd.f32 0.0, %v858
        %v860 = vpop.f32.mrb[0].mxu0
        %v861 = vpop.f32.mrb[0].mxu0
        %v862 = vadd.f32 0.0, %v861
        %v863 = vpop.f32.mrb[0].mxu0
        %864 = vdwg.mxu0
        %vm865 = vcmp.gt.f32.partialorder %v809, 0.5
        %v866 = vsel %vm865, 1, 0
        %v867 = vlaneseq
        %v868 = vshrl.u32 %v867, 7
        %v869 = vsub.s32 0, %v868
        %v870 = vrot.slane %v866, %v869
        %vm871 = vcmp.eq.s32.totalorder %v870, 1
        %v872 = vsel %vm871, %v859, -1e+30
        %vm873 = vcmask 64512
        %v874 = vsel %vm873, %v872, -inf
        %875 = vmax.xlane.f32.xlu0 %v874
        %v876 = vpop.xlane.xlu0 %875
        %v877 = vsub.f32 %v872, %v876
        %v878 = vmul.f32 %v877, 1.442695
        %v879 = vpow.pop %v878
        %v880 = vsel %vm873, %v879, 0.0
        %881 = vadd.xlane.f32.xlu0 %v880
        %v882 = vpop.xlane.xlu0 %881
        %v883 = vrcp.pop %v882
        %v884 = vmul.f32 %v879, %v883
        %v885 = vtanh.pop %v862
        %v886 = vsub.f32 %v799, %v805
        %v887 = vand.u32 2147483647, %v886
        %v888 = vsel %vm817, %v887, 0.0
        %889 = vadd.xlane.f32.xlu0 %v888
        %v890 = vpop.xlane.xlu0 %889
        %v891 = vsub.f32 0.0, %v890
        %v892 = vmul.f32 %v891, 0.17677669
        %v893 = vxor.u32 %v892, 2147483648
        %v894 = vmul.f32 %v893, 1.442695
        %v895 = vpow.pop %v894
        %v896 = vadd.f32 %v895, 1.0
        %v897 = vrcp.pop %v896
        %v898 = vmul.f32 1.0, %v897
        %v899 = vmul.f32 %v898, 2.0
        %v900 = vmul.f32 %v899, %v811
        %902 = vrot.lane.b32.xlu0 %v885, 8
        %v903 = vpop.permute.xlu0 %902
        %v905 = vsel %vm873, %v884, %v903
        %v906 = vpack.c.bf16 %v905, %v905
        %908 = vset.pattern.permute.xlu0 0
        %909 = vperm.xlu0 %908, %v900
        %v910 = vpop.permute.xlu0 %909
        %v912 = vmul.f32 %v910, %v807
        %v913 = vpack.c.bf16 %v912, %v807
        %vm914 = vcmask 130048
        %v916 = vsel %vm914, %v906, 0
        %918 = vmatprep.subr.bf16.mxu0 0
        %919 = vmatpush1.bf16.msra.mxu0 %v913
        %920 = vmatprep.subr.bf16.mxu0 0
        %921 = vmatpush1.bf16.msra.mxu0 0
        %922 = vmatprep.subr.bf16.mxu0 0
        %923 = vmatpush1.bf16.msra.mxu0 0
        %924 = vmatprep.subr.bf16.mxu0 0
        %925 = vmatpush1.bf16.msra.mxu0 0
        %926 = vmatprep.subr.bf16.mxu0 0
        %927 = vmatpush1.bf16.msra.mxu0 0
        %928 = vmatprep.subr.bf16.mxu0 0
        %929 = vmatpush1.bf16.msra.mxu0 0
        %930 = vmatprep.subr.bf16.mxu0 0
        %931 = vmatpush1.bf16.msra.mxu0 0
        %932 = vmatprep.subr.bf16.mxu0 0
        %933 = vmatpush1.bf16.msra.mxu0 0
        %934 = vmatprep.subr.bf16.mxu0 0
        %935 = vmatpush1.bf16.msra.mxu0 0
        %936 = vmatprep.subr.bf16.mxu0 0
        %937 = vmatpush1.bf16.msra.mxu0 0
        %938 = vmatprep.subr.bf16.mxu0 0
        %939 = vmatpush1.bf16.msra.mxu0 0
        %940 = vmatprep.subr.bf16.mxu0 0
        %941 = vmatpush1.bf16.msra.mxu0 0
        %942 = vmatprep.subr.bf16.mxu0 0
        %943 = vmatpush1.bf16.msra.mxu0 0
        %944 = vmatprep.subr.bf16.mxu0 0
        %945 = vmatpush1.bf16.msra.mxu0 0
        %946 = vmatprep.subr.bf16.mxu0 0
        %947 = vmatpush1.bf16.msra.mxu0 0
        %948 = vmatprep.subr.bf16.mxu0 0
        %949 = vmatpush1.bf16.msra.mxu0 0
        %950 = vmatprep.mubr.bf16.mxu0 0
        %951 = vmatmul.mubr.bf16.gmra.mrb[0].mxu0 %v916
        %v952 = vpop.f32.mrb[0].mxu0
        %v953 = vadd.f32 0.0, %v952
        %v954 = vpop.f32.mrb[0].mxu0
        %v955 = vpop.f32.mrb[0].mxu0
        %v956 = vpop.f32.mrb[0].mxu0
        %957 = vdwg.mxu0
        %v958 = vmul.f32 %v953, 0.5
        %960 = vrot.lane.b32.xlu0 %v815, 96
        %v961 = vpop.permute.xlu0 %960
        %963 = vrot.lane.b32.xlu0 %v816, 96
        %v964 = vpop.permute.xlu0 %963
        %v966 = vsel %vm817, %v961, 0
        %v969 = vsel %vm817, %v964, 0
        %971 = vmatprep.subr.bf16.mxu0 0
        %972 = vmatpush1.bf16.xpose.msra.mxu0 %v969
        %973 = vmatprep.subr.bf16.mxu0 0
        %974 = vmatpush1.bf16.xpose.msra.mxu0 0
        %975 = vmatprep.subr.bf16.mxu0 0
        %976 = vmatpush1.bf16.xpose.msra.mxu0 0
        %977 = vmatprep.subr.bf16.mxu0 0
        %978 = vmatpush1.bf16.xpose.msra.mxu0 0
        %979 = vmatprep.subr.bf16.mxu0 0
        %980 = vmatpush1.bf16.xpose.msra.mxu0 0
        %981 = vmatprep.subr.bf16.mxu0 0
        %982 = vmatpush1.bf16.xpose.msra.mxu0 0
        %983 = vmatprep.subr.bf16.mxu0 0
        %984 = vmatpush1.bf16.xpose.msra.mxu0 0
        %985 = vmatprep.subr.bf16.mxu0 0
        %986 = vmatpush1.bf16.xpose.msra.mxu0 0
        %987 = vmatprep.subr.bf16.mxu0 0
        %988 = vmatpush1.bf16.xpose.msra.mxu0 0
        %989 = vmatprep.subr.bf16.mxu0 0
        %990 = vmatpush1.bf16.xpose.msra.mxu0 0
        %991 = vmatprep.subr.bf16.mxu0 0
        %992 = vmatpush1.bf16.xpose.msra.mxu0 0
        %993 = vmatprep.subr.bf16.mxu0 0
        %994 = vmatpush1.bf16.xpose.msra.mxu0 0
        %995 = vmatprep.subr.bf16.mxu0 0
        %996 = vmatpush1.bf16.xpose.msra.mxu0 0
        %997 = vmatprep.subr.bf16.mxu0 0
        %998 = vmatpush1.bf16.xpose.msra.mxu0 0
        %999 = vmatprep.subr.bf16.mxu0 0
        %1000 = vmatpush1.bf16.xpose.msra.mxu0 0
        %1001 = vmatprep.subr.bf16.mxu0 0
        %1002 = vmatpush1.bf16.xpose.msra.mxu0 0
        %1003 = vmatprep.mubr.bf16.mxu0 0
        %1004 = vmatmul.mubr.bf16.gmra.mrb[0].mxu0 %v966
        %v1005 = vpop.f32.mrb[0].mxu0
        %v1006 = vadd.f32 0.0, %v1005
        %v1007 = vpop.f32.mrb[0].mxu0
        %v1008 = vpop.f32.mrb[0].mxu0
        %v1009 = vadd.f32 0.0, %v1008
        %v1010 = vpop.f32.mrb[0].mxu0
        %1011 = vdwg.mxu0
        %v1012 = vsel %vm871, %v1006, -1e+30
        %v1013 = vsel %vm873, %v1012, -inf
        %1014 = vmax.xlane.f32.xlu0 %v1013
        %v1015 = vpop.xlane.xlu0 %1014
        %v1016 = vsub.f32 %v1012, %v1015
        %v1017 = vmul.f32 %v1016, 1.442695
        %v1018 = vpow.pop %v1017
        %v1019 = vsel %vm873, %v1018, 0.0
        %1020 = vadd.xlane.f32.xlu0 %v1019
        %v1021 = vpop.xlane.xlu0 %1020
        %v1022 = vrcp.pop %v1021
        %v1023 = vmul.f32 %v1018, %v1022
        %v1024 = vtanh.pop %v1009
        %1026 = vrot.lane.b32.xlu0 %v887, 96
        %v1027 = vpop.permute.xlu0 %1026
        %v1029 = vsel %vm817, %v1027, 0.0
        %1030 = vadd.xlane.f32.xlu0 %v1029
        %v1031 = vpop.xlane.xlu0 %1030
        %v1032 = vsub.f32 0.0, %v1031
        %v1033 = vmul.f32 %v1032, 0.17677669
        %v1034 = vxor.u32 %v1033, 2147483648
        %v1035 = vmul.f32 %v1034, 1.442695
        %v1036 = vpow.pop %v1035
        %v1037 = vadd.f32 %v1036, 1.0
        %v1038 = vrcp.pop %v1037
        %v1039 = vmul.f32 1.0, %v1038
        %v1040 = vmul.f32 %v1039, 2.0
        %v1041 = vmul.f32 %v1040, %v811
        %1043 = vrot.lane.b32.xlu0 %v1024, 8
        %v1044 = vpop.permute.xlu0 %1043
        %v1046 = vsel %vm873, %v1023, %v1044
        %v1047 = vpack.c.bf16 %v1046, %v1046
        %1049 = vset.pattern.permute.xlu0 0
        %1050 = vperm.xlu0 %1049, %v1041
        %v1051 = vpop.permute.xlu0 %1050
        %v1053 = vmul.f32 %v1051, %v807
        %v1054 = vpack.c.bf16 %v1053, %v807
        %1056 = vrot.lane.b32.xlu0 %v1054, 96
        %v1057 = vpop.permute.xlu0 %1056
        %v1060 = vsel %vm914, %v1047, 0
        %1062 = vmatprep.subr.bf16.mxu0 0
        %1063 = vmatpush1.bf16.msra.mxu0 %v1057
        %1064 = vmatprep.subr.bf16.mxu0 0
        %1065 = vmatpush1.bf16.msra.mxu0 0
        %1066 = vmatprep.subr.bf16.mxu0 0
        %1067 = vmatpush1.bf16.msra.mxu0 0
        %1068 = vmatprep.subr.bf16.mxu0 0
        %1069 = vmatpush1.bf16.msra.mxu0 0
        %1070 = vmatprep.subr.bf16.mxu0 0
        %1071 = vmatpush1.bf16.msra.mxu0 0
        %1072 = vmatprep.subr.bf16.mxu0 0
        %1073 = vmatpush1.bf16.msra.mxu0 0
        %1074 = vmatprep.subr.bf16.mxu0 0
        %1075 = vmatpush1.bf16.msra.mxu0 0
        %1076 = vmatprep.subr.bf16.mxu0 0
        %1077 = vmatpush1.bf16.msra.mxu0 0
        %1078 = vmatprep.subr.bf16.mxu0 0
        %1079 = vmatpush1.bf16.msra.mxu0 0
        %1080 = vmatprep.subr.bf16.mxu0 0
        %1081 = vmatpush1.bf16.msra.mxu0 0
        %1082 = vmatprep.subr.bf16.mxu0 0
        %1083 = vmatpush1.bf16.msra.mxu0 0
        %1084 = vmatprep.subr.bf16.mxu0 0
        %1085 = vmatpush1.bf16.msra.mxu0 0
        %1086 = vmatprep.subr.bf16.mxu0 0
        %1087 = vmatpush1.bf16.msra.mxu0 0
        %1088 = vmatprep.subr.bf16.mxu0 0
        %1089 = vmatpush1.bf16.msra.mxu0 0
        %1090 = vmatprep.subr.bf16.mxu0 0
        %1091 = vmatpush1.bf16.msra.mxu0 0
        %1092 = vmatprep.subr.bf16.mxu0 0
        %1093 = vmatpush1.bf16.msra.mxu0 0
        %1094 = vmatprep.mubr.bf16.mxu0 0
        %1095 = vmatmul.mubr.bf16.gmra.mrb[0].mxu0 %v1060
        %v1096 = vpop.f32.mrb[0].mxu0
        %v1097 = vadd.f32 0.0, %v1096
        %v1098 = vpop.f32.mrb[0].mxu0
        %v1099 = vpop.f32.mrb[0].mxu0
        %v1100 = vpop.f32.mrb[0].mxu0
        %1101 = vdwg.mxu0
        %v1102 = vmul.f32 %v1097, 0.5
        %1103 = vrot.lane.b32.xlu0 %v815, 64
        %v1104 = vpop.permute.xlu0 %1103
        %1105 = vrot.lane.b32.xlu0 %v816, 64
        %v1106 = vpop.permute.xlu0 %1105
        %v1108 = vsel %vm817, %v1104, 0
        %v1111 = vsel %vm817, %v1106, 0
        %1113 = vmatprep.subr.bf16.mxu0 0
        %1114 = vmatpush1.bf16.xpose.msra.mxu0 %v1111
        %1115 = vmatprep.subr.bf16.mxu0 0
        %1116 = vmatpush1.bf16.xpose.msra.mxu0 0
        %1117 = vmatprep.subr.bf16.mxu0 0
        %1118 = vmatpush1.bf16.xpose.msra.mxu0 0
        %1119 = vmatprep.subr.bf16.mxu0 0
        %1120 = vmatpush1.bf16.xpose.msra.mxu0 0
        %1121 = vmatprep.subr.bf16.mxu0 0
        %1122 = vmatpush1.bf16.xpose.msra.mxu0 0
        %1123 = vmatprep.subr.bf16.mxu0 0
        %1124 = vmatpush1.bf16.xpose.msra.mxu0 0
        %1125 = vmatprep.subr.bf16.mxu0 0
        %1126 = vmatpush1.bf16.xpose.msra.mxu0 0
        %1127 = vmatprep.subr.bf16.mxu0 0
        %1128 = vmatpush1.bf16.xpose.msra.mxu0 0
        %1129 = vmatprep.subr.bf16.mxu0 0
        %1130 = vmatpush1.bf16.xpose.msra.mxu0 0
        %1131 = vmatprep.subr.bf16.mxu0 0
        %1132 = vmatpush1.bf16.xpose.msra.mxu0 0
        %1133 = vmatprep.subr.bf16.mxu0 0
        %1134 = vmatpush1.bf16.xpose.msra.mxu0 0
        %1135 = vmatprep.subr.bf16.mxu0 0
        %1136 = vmatpush1.bf16.xpose.msra.mxu0 0
        %1137 = vmatprep.subr.bf16.mxu0 0
        %1138 = vmatpush1.bf16.xpose.msra.mxu0 0
        %1139 = vmatprep.subr.bf16.mxu0 0
        %1140 = vmatpush1.bf16.xpose.msra.mxu0 0
        %1141 = vmatprep.subr.bf16.mxu0 0
        %1142 = vmatpush1.bf16.xpose.msra.mxu0 0
        %1143 = vmatprep.subr.bf16.mxu0 0
        %1144 = vmatpush1.bf16.xpose.msra.mxu0 0
        %1145 = vmatprep.mubr.bf16.mxu0 0
        %1146 = vmatmul.mubr.bf16.gmra.mrb[0].mxu0 %v1108
        %v1147 = vpop.f32.mrb[0].mxu0
        %v1148 = vadd.f32 0.0, %v1147
        %v1149 = vpop.f32.mrb[0].mxu0
        %v1150 = vpop.f32.mrb[0].mxu0
        %v1151 = vadd.f32 0.0, %v1150
        %v1152 = vpop.f32.mrb[0].mxu0
        %1153 = vdwg.mxu0
        %v1154 = vsel %vm871, %v1148, -1e+30
        %v1155 = vsel %vm873, %v1154, -inf
        %1156 = vmax.xlane.f32.xlu0 %v1155
        %v1157 = vpop.xlane.xlu0 %1156
        %v1158 = vsub.f32 %v1154, %v1157
        %v1159 = vmul.f32 %v1158, 1.442695
        %v1160 = vpow.pop %v1159
        %v1161 = vsel %vm873, %v1160, 0.0
        %1162 = vadd.xlane.f32.xlu0 %v1161
        %v1163 = vpop.xlane.xlu0 %1162
        %v1164 = vrcp.pop %v1163
        %v1165 = vmul.f32 %v1160, %v1164
        %v1166 = vtanh.pop %v1151
        %1167 = vrot.lane.b32.xlu0 %v887, 64
        %v1168 = vpop.permute.xlu0 %1167
        %v1170 = vsel %vm817, %v1168, 0.0
        %1171 = vadd.xlane.f32.xlu0 %v1170
        %v1172 = vpop.xlane.xlu0 %1171
        %v1173 = vsub.f32 0.0, %v1172
        %v1174 = vmul.f32 %v1173, 0.17677669
        %v1175 = vxor.u32 %v1174, 2147483648
        %v1176 = vmul.f32 %v1175, 1.442695
        %v1177 = vpow.pop %v1176
        %v1178 = vadd.f32 %v1177, 1.0
        %v1179 = vrcp.pop %v1178
        %v1180 = vmul.f32 1.0, %v1179
        %v1181 = vmul.f32 %v1180, 2.0
        %v1182 = vmul.f32 %v1181, %v811
        %1184 = vrot.lane.b32.xlu0 %v1166, 8
        %v1185 = vpop.permute.xlu0 %1184
        %v1187 = vsel %vm873, %v1165, %v1185
        %v1188 = vpack.c.bf16 %v1187, %v1187
        %1190 = vset.pattern.permute.xlu0 0
        %1191 = vperm.xlu0 %1190, %v1182
        %v1192 = vpop.permute.xlu0 %1191
        %v1194 = vmul.f32 %v1192, %v807
        %v1195 = vpack.c.bf16 %v1194, %v807
        %1197 = vrot.lane.b32.xlu0 %v1195, 64
        %v1198 = vpop.permute.xlu0 %1197
        %v1201 = vsel %vm914, %v1188, 0
        %1203 = vmatprep.subr.bf16.mxu0 0
        %1204 = vmatpush1.bf16.msra.mxu0 %v1198
        %1205 = vmatprep.subr.bf16.mxu0 0
        %1206 = vmatpush1.bf16.msra.mxu0 0
        %1207 = vmatprep.subr.bf16.mxu0 0
        %1208 = vmatpush1.bf16.msra.mxu0 0
        %1209 = vmatprep.subr.bf16.mxu0 0
        %1210 = vmatpush1.bf16.msra.mxu0 0
        %1211 = vmatprep.subr.bf16.mxu0 0
        %1212 = vmatpush1.bf16.msra.mxu0 0
        %1213 = vmatprep.subr.bf16.mxu0 0
        %1214 = vmatpush1.bf16.msra.mxu0 0
        %1215 = vmatprep.subr.bf16.mxu0 0
        %1216 = vmatpush1.bf16.msra.mxu0 0
        %1217 = vmatprep.subr.bf16.mxu0 0
        %1218 = vmatpush1.bf16.msra.mxu0 0
        %1219 = vmatprep.subr.bf16.mxu0 0
        %1220 = vmatpush1.bf16.msra.mxu0 0
        %1221 = vmatprep.subr.bf16.mxu0 0
        %1222 = vmatpush1.bf16.msra.mxu0 0
        %1223 = vmatprep.subr.bf16.mxu0 0
        %1224 = vmatpush1.bf16.msra.mxu0 0
        %1225 = vmatprep.subr.bf16.mxu0 0
        %1226 = vmatpush1.bf16.msra.mxu0 0
        %1227 = vmatprep.subr.bf16.mxu0 0
        %1228 = vmatpush1.bf16.msra.mxu0 0
        %1229 = vmatprep.subr.bf16.mxu0 0
        %1230 = vmatpush1.bf16.msra.mxu0 0
        %1231 = vmatprep.subr.bf16.mxu0 0
        %1232 = vmatpush1.bf16.msra.mxu0 0
        %1233 = vmatprep.subr.bf16.mxu0 0
        %1234 = vmatpush1.bf16.msra.mxu0 0
        %1235 = vmatprep.mubr.bf16.mxu0 0
        %1236 = vmatmul.mubr.bf16.gmra.mrb[0].mxu0 %v1201
        %v1237 = vpop.f32.mrb[0].mxu0
        %v1238 = vadd.f32 0.0, %v1237
        %v1239 = vpop.f32.mrb[0].mxu0
        %v1240 = vpop.f32.mrb[0].mxu0
        %v1241 = vpop.f32.mrb[0].mxu0
        %1242 = vdwg.mxu0
        %v1243 = vmul.f32 %v1238, 0.5
        %1244 = vrot.lane.b32.xlu0 %v815, 32
        %v1245 = vpop.permute.xlu0 %1244
        %1246 = vrot.lane.b32.xlu0 %v816, 32
        %v1247 = vpop.permute.xlu0 %1246
        %v1249 = vsel %vm817, %v1245, 0
        %v1252 = vsel %vm817, %v1247, 0
        %1254 = vmatprep.subr.bf16.mxu0 0
        %1255 = vmatpush1.bf16.xpose.msra.mxu0 %v1252
        %1256 = vmatprep.subr.bf16.mxu0 0
        %1257 = vmatpush1.bf16.xpose.msra.mxu0 0
        %1258 = vmatprep.subr.bf16.mxu0 0
        %1259 = vmatpush1.bf16.xpose.msra.mxu0 0
        %1260 = vmatprep.subr.bf16.mxu0 0
        %1261 = vmatpush1.bf16.xpose.msra.mxu0 0
        %1262 = vmatprep.subr.bf16.mxu0 0
        %1263 = vmatpush1.bf16.xpose.msra.mxu0 0
        %1264 = vmatprep.subr.bf16.mxu0 0
        %1265 = vmatpush1.bf16.xpose.msra.mxu0 0
        %1266 = vmatprep.subr.bf16.mxu0 0
        %1267 = vmatpush1.bf16.xpose.msra.mxu0 0
        %1268 = vmatprep.subr.bf16.mxu0 0
        %1269 = vmatpush1.bf16.xpose.msra.mxu0 0
        %1270 = vmatprep.subr.bf16.mxu0 0
        %1271 = vmatpush1.bf16.xpose.msra.mxu0 0
        %1272 = vmatprep.subr.bf16.mxu0 0
        %1273 = vmatpush1.bf16.xpose.msra.mxu0 0
        %1274 = vmatprep.subr.bf16.mxu0 0
        %1275 = vmatpush1.bf16.xpose.msra.mxu0 0
        %1276 = vmatprep.subr.bf16.mxu0 0
        %1277 = vmatpush1.bf16.xpose.msra.mxu0 0
        %1278 = vmatprep.subr.bf16.mxu0 0
        %1279 = vmatpush1.bf16.xpose.msra.mxu0 0
        %1280 = vmatprep.subr.bf16.mxu0 0
        %1281 = vmatpush1.bf16.xpose.msra.mxu0 0
        %1282 = vmatprep.subr.bf16.mxu0 0
        %1283 = vmatpush1.bf16.xpose.msra.mxu0 0
        %1284 = vmatprep.subr.bf16.mxu0 0
        %1285 = vmatpush1.bf16.xpose.msra.mxu0 0
        %1286 = vmatprep.mubr.bf16.mxu0 0
        %1287 = vmatmul.mubr.bf16.gmra.mrb[0].mxu0 %v1249
        %v1288 = vpop.f32.mrb[0].mxu0
        %v1289 = vadd.f32 0.0, %v1288
        %v1290 = vpop.f32.mrb[0].mxu0
        %v1291 = vpop.f32.mrb[0].mxu0
        %v1292 = vadd.f32 0.0, %v1291
        %v1293 = vpop.f32.mrb[0].mxu0
        %1294 = vdwg.mxu0
        %v1295 = vsel %vm871, %v1289, -1e+30
        %v1296 = vsel %vm873, %v1295, -inf
        %1297 = vmax.xlane.f32.xlu0 %v1296
        %v1298 = vpop.xlane.xlu0 %1297
        %v1299 = vsub.f32 %v1295, %v1298
        %v1300 = vmul.f32 %v1299, 1.442695
        %v1301 = vpow.pop %v1300
        %v1302 = vsel %vm873, %v1301, 0.0
        %1303 = vadd.xlane.f32.xlu0 %v1302
        %v1304 = vpop.xlane.xlu0 %1303
        %v1305 = vrcp.pop %v1304
        %v1306 = vmul.f32 %v1301, %v1305
        %v1307 = vtanh.pop %v1292
        %1308 = vrot.lane.b32.xlu0 %v887, 32
        %v1309 = vpop.permute.xlu0 %1308
        %v1311 = vsel %vm817, %v1309, 0.0
        %1312 = vadd.xlane.f32.xlu0 %v1311
        %v1313 = vpop.xlane.xlu0 %1312
        %v1314 = vsub.f32 0.0, %v1313
        %v1315 = vmul.f32 %v1314, 0.17677669
        %v1316 = vxor.u32 %v1315, 2147483648
        %v1317 = vmul.f32 %v1316, 1.442695
        %v1318 = vpow.pop %v1317
        %v1319 = vadd.f32 %v1318, 1.0
        %v1320 = vrcp.pop %v1319
        %v1321 = vmul.f32 1.0, %v1320
        %v1322 = vmul.f32 %v1321, 2.0
        %v1323 = vmul.f32 %v1322, %v811
        %1325 = vrot.lane.b32.xlu0 %v1307, 8
        %v1326 = vpop.permute.xlu0 %1325
        %v1328 = vsel %vm873, %v1306, %v1326
        %v1329 = vpack.c.bf16 %v1328, %v1328
        %1331 = vset.pattern.permute.xlu0 0
        %1332 = vperm.xlu0 %1331, %v1323
        %v1333 = vpop.permute.xlu0 %1332
        %v1335 = vmul.f32 %v1333, %v807
        %v1336 = vpack.c.bf16 %v1335, %v807
        %1338 = vrot.lane.b32.xlu0 %v1336, 32
        %v1339 = vpop.permute.xlu0 %1338
        %v1342 = vsel %vm914, %v1329, 0
        %1344 = vmatprep.subr.bf16.mxu0 0
        %1345 = vmatpush1.bf16.msra.mxu0 %v1339
        %1346 = vmatprep.subr.bf16.mxu0 0
        %1347 = vmatpush1.bf16.msra.mxu0 0
        %1348 = vmatprep.subr.bf16.mxu0 0
        %1349 = vmatpush1.bf16.msra.mxu0 0
        %1350 = vmatprep.subr.bf16.mxu0 0
        %1351 = vmatpush1.bf16.msra.mxu0 0
        %1352 = vmatprep.subr.bf16.mxu0 0
        %1353 = vmatpush1.bf16.msra.mxu0 0
        %1354 = vmatprep.subr.bf16.mxu0 0
        %1355 = vmatpush1.bf16.msra.mxu0 0
        %1356 = vmatprep.subr.bf16.mxu0 0
        %1357 = vmatpush1.bf16.msra.mxu0 0
        %1358 = vmatprep.subr.bf16.mxu0 0
        %1359 = vmatpush1.bf16.msra.mxu0 0
        %1360 = vmatprep.subr.bf16.mxu0 0
        %1361 = vmatpush1.bf16.msra.mxu0 0
        %1362 = vmatprep.subr.bf16.mxu0 0
        %1363 = vmatpush1.bf16.msra.mxu0 0
        %1364 = vmatprep.subr.bf16.mxu0 0
        %1365 = vmatpush1.bf16.msra.mxu0 0
        %1366 = vmatprep.subr.bf16.mxu0 0
        %1367 = vmatpush1.bf16.msra.mxu0 0
        %1368 = vmatprep.subr.bf16.mxu0 0
        %1369 = vmatpush1.bf16.msra.mxu0 0
        %1370 = vmatprep.subr.bf16.mxu0 0
        %1371 = vmatpush1.bf16.msra.mxu0 0
        %1372 = vmatprep.subr.bf16.mxu0 0
        %1373 = vmatpush1.bf16.msra.mxu0 0
        %1374 = vmatprep.subr.bf16.mxu0 0
        %1375 = vmatpush1.bf16.msra.mxu0 0
        %1376 = vmatprep.mubr.bf16.mxu0 0
        %1377 = vmatmul.mubr.bf16.gmra.mrb[0].mxu0 %v1342
        %v1378 = vpop.f32.mrb[0].mxu0
        %v1379 = vadd.f32 0.0, %v1378
        %v1380 = vpop.f32.mrb[0].mxu0
        %v1381 = vpop.f32.mrb[0].mxu0
        %v1382 = vpop.f32.mrb[0].mxu0
        %1383 = vdwg.mxu0
        %v1384 = vmul.f32 %v1379, 0.5
        %1386 = vrot.lane.b32.xlu0 %v1102, 32
        %v1387 = vpop.permute.xlu0 %1386
        %1390 = vrot.lane.b32.xlu0 %v1243, 64
        %v1391 = vpop.permute.xlu0 %1390
        %1394 = vrot.lane.b32.xlu0 %v1384, 96
        %v1395 = vpop.permute.xlu0 %1394
        %v1397 = vsel %vm817, %v958, %v1387
        %vm1398 = vcmask 523264
        %v1399 = vsel %vm1398, %v1397, %v1391
        %vm1400 = vcmask 785408
        %v1401 = vsel %vm1400, %v1399, %v1395
        %v1402 = vmul.f32 %v801, 0.17677669
        %v1403 = vmul.f32 %v803, 0.17677669
        %v1404 = vpack.c.bf16 %v1403, %v1402
        %v1405 = vpack.c.bf16 %v806, %v806
        %v1407 = vsel %vm817, %v1404, 0
        %v1410 = vsel %vm817, %v1405, 0
        %1412 = vmatprep.subr.bf16.mxu0 0
        %1413 = vmatpush1.bf16.xpose.msra.mxu0 %v1410
        %1414 = vmatprep.subr.bf16.mxu0 0
        %1415 = vmatpush1.bf16.xpose.msra.mxu0 0
        %1416 = vmatprep.subr.bf16.mxu0 0
        %1417 = vmatpush1.bf16.xpose.msra.mxu0 0
        %1418 = vmatprep.subr.bf16.mxu0 0
        %1419 = vmatpush1.bf16.xpose.msra.mxu0 0
        %1420 = vmatprep.subr.bf16.mxu0 0
        %1421 = vmatpush1.bf16.xpose.msra.mxu0 0
        %1422 = vmatprep.subr.bf16.mxu0 0
        %1423 = vmatpush1.bf16.xpose.msra.mxu0 0
        %1424 = vmatprep.subr.bf16.mxu0 0
        %1425 = vmatpush1.bf16.xpose.msra.mxu0 0
        %1426 = vmatprep.subr.bf16.mxu0 0
        %1427 = vmatpush1.bf16.xpose.msra.mxu0 0
        %1428 = vmatprep.subr.bf16.mxu0 0
        %1429 = vmatpush1.bf16.xpose.msra.mxu0 0
        %1430 = vmatprep.subr.bf16.mxu0 0
        %1431 = vmatpush1.bf16.xpose.msra.mxu0 0
        %1432 = vmatprep.subr.bf16.mxu0 0
        %1433 = vmatpush1.bf16.xpose.msra.mxu0 0
        %1434 = vmatprep.subr.bf16.mxu0 0
        %1435 = vmatpush1.bf16.xpose.msra.mxu0 0
        %1436 = vmatprep.subr.bf16.mxu0 0
        %1437 = vmatpush1.bf16.xpose.msra.mxu0 0
        %1438 = vmatprep.subr.bf16.mxu0 0
        %1439 = vmatpush1.bf16.xpose.msra.mxu0 0
        %1440 = vmatprep.subr.bf16.mxu0 0
        %1441 = vmatpush1.bf16.xpose.msra.mxu0 0
        %1442 = vmatprep.subr.bf16.mxu0 0
        %1443 = vmatpush1.bf16.xpose.msra.mxu0 0
        %1444 = vmatprep.mubr.bf16.mxu0 0
        %1445 = vmatmul.mubr.bf16.gmra.mrb[0].mxu0 %v1407
        %v1446 = vpop.f32.mrb[0].mxu0
        %v1447 = vadd.f32 0.0, %v1446
        %v1448 = vpop.f32.mrb[0].mxu0
        %v1449 = vpop.f32.mrb[0].mxu0
        %v1450 = vadd.f32 0.0, %v1449
        %v1451 = vpop.f32.mrb[0].mxu0
        %1452 = vdwg.mxu0
        %vm1453 = vcmp.gt.f32.partialorder %v810, 0.5
        %v1454 = vsel %vm1453, 1, 0
        %v1455 = vlaneseq
        %v1456 = vshrl.u32 %v1455, 7
        %v1457 = vsub.s32 0, %v1456
        %v1458 = vrot.slane %v1454, %v1457
        %vm1459 = vcmp.eq.s32.totalorder %v1458, 1
        %v1460 = vsel %vm1459, %v1447, -1e+30
        %v1461 = vsel %vm873, %v1460, -inf
        %1462 = vmax.xlane.f32.xlu0 %v1461
        %v1463 = vpop.xlane.xlu0 %1462
        %v1464 = vsub.f32 %v1460, %v1463
        %v1465 = vmul.f32 %v1464, 1.442695
        %v1466 = vpow.pop %v1465
        %v1467 = vsel %vm873, %v1466, 0.0
        %1468 = vadd.xlane.f32.xlu0 %v1467
        %v1469 = vpop.xlane.xlu0 %1468
        %v1470 = vrcp.pop %v1469
        %v1471 = vmul.f32 %v1466, %v1470
        %v1472 = vtanh.pop %v1450
        %v1473 = vsub.f32 %v803, %v806
        %v1474 = vand.u32 2147483647, %v1473
        %v1475 = vsel %vm817, %v1474, 0.0
        %1476 = vadd.xlane.f32.xlu0 %v1475
        %v1477 = vpop.xlane.xlu0 %1476
        %v1478 = vsub.f32 0.0, %v1477
        %v1479 = vmul.f32 %v1478, 0.17677669
        %v1480 = vxor.u32 %v1479, 2147483648
        %v1481 = vmul.f32 %v1480, 1.442695
        %v1482 = vpow.pop %v1481
        %v1483 = vadd.f32 %v1482, 1.0
        %v1484 = vrcp.pop %v1483
        %v1485 = vmul.f32 1.0, %v1484
        %v1486 = vmul.f32 %v1485, 2.0
        %v1487 = vmul.f32 %v1486, %v812
        %1489 = vrot.lane.b32.xlu0 %v1472, 8
        %v1490 = vpop.permute.xlu0 %1489
        %v1492 = vsel %vm873, %v1471, %v1490
        %v1493 = vpack.c.bf16 %v1492, %v1492
        %1495 = vset.pattern.permute.xlu0 0
        %1496 = vperm.xlu0 %1495, %v1487
        %v1497 = vpop.permute.xlu0 %1496
        %v1499 = vmul.f32 %v1497, %v808
        %v1500 = vpack.c.bf16 %v1499, %v808
        %v1502 = vsel %vm914, %v1493, 0
        %1504 = vmatprep.subr.bf16.mxu0 0
        %1505 = vmatpush1.bf16.msra.mxu0 %v1500
        %1506 = vmatprep.subr.bf16.mxu0 0
        %1507 = vmatpush1.bf16.msra.mxu0 0
        %1508 = vmatprep.subr.bf16.mxu0 0
        %1509 = vmatpush1.bf16.msra.mxu0 0
        %1510 = vmatprep.subr.bf16.mxu0 0
        %1511 = vmatpush1.bf16.msra.mxu0 0
        %1512 = vmatprep.subr.bf16.mxu0 0
        %1513 = vmatpush1.bf16.msra.mxu0 0
        %1514 = vmatprep.subr.bf16.mxu0 0
        %1515 = vmatpush1.bf16.msra.mxu0 0
        %1516 = vmatprep.subr.bf16.mxu0 0
        %1517 = vmatpush1.bf16.msra.mxu0 0
        %1518 = vmatprep.subr.bf16.mxu0 0
        %1519 = vmatpush1.bf16.msra.mxu0 0
        %1520 = vmatprep.subr.bf16.mxu0 0
        %1521 = vmatpush1.bf16.msra.mxu0 0
        %1522 = vmatprep.subr.bf16.mxu0 0
        %1523 = vmatpush1.bf16.msra.mxu0 0
        %1524 = vmatprep.subr.bf16.mxu0 0
        %1525 = vmatpush1.bf16.msra.mxu0 0
        %1526 = vmatprep.subr.bf16.mxu0 0
        %1527 = vmatpush1.bf16.msra.mxu0 0
        %1528 = vmatprep.subr.bf16.mxu0 0
        %1529 = vmatpush1.bf16.msra.mxu0 0
        %1530 = vmatprep.subr.bf16.mxu0 0
        %1531 = vmatpush1.bf16.msra.mxu0 0
        %1532 = vmatprep.subr.bf16.mxu0 0
        %1533 = vmatpush1.bf16.msra.mxu0 0
        %1534 = vmatprep.subr.bf16.mxu0 0
        %1535 = vmatpush1.bf16.msra.mxu0 0
        %1536 = vmatprep.mubr.bf16.mxu0 0
        %1537 = vmatmul.mubr.bf16.gmra.mrb[0].mxu0 %v1502
        %v1538 = vpop.f32.mrb[0].mxu0
        %v1539 = vadd.f32 0.0, %v1538
        %v1540 = vpop.f32.mrb[0].mxu0
        %v1541 = vpop.f32.mrb[0].mxu0
        %v1542 = vpop.f32.mrb[0].mxu0
        %1543 = vdwg.mxu0
        %v1544 = vmul.f32 %v1539, 0.5
        %1546 = vrot.lane.b32.xlu0 %v1404, 96
        %v1547 = vpop.permute.xlu0 %1546
        %1549 = vrot.lane.b32.xlu0 %v1405, 96
        %v1550 = vpop.permute.xlu0 %1549
        %v1552 = vsel %vm817, %v1547, 0
        %v1555 = vsel %vm817, %v1550, 0
        %1557 = vmatprep.subr.bf16.mxu0 0
        %1558 = vmatpush1.bf16.xpose.msra.mxu0 %v1555
        %1559 = vmatprep.subr.bf16.mxu0 0
        %1560 = vmatpush1.bf16.xpose.msra.mxu0 0
        %1561 = vmatprep.subr.bf16.mxu0 0
        %1562 = vmatpush1.bf16.xpose.msra.mxu0 0
        %1563 = vmatprep.subr.bf16.mxu0 0
        %1564 = vmatpush1.bf16.xpose.msra.mxu0 0
        %1565 = vmatprep.subr.bf16.mxu0 0
        %1566 = vmatpush1.bf16.xpose.msra.mxu0 0
        %1567 = vmatprep.subr.bf16.mxu0 0
        %1568 = vmatpush1.bf16.xpose.msra.mxu0 0
        %1569 = vmatprep.subr.bf16.mxu0 0
        %1570 = vmatpush1.bf16.xpose.msra.mxu0 0
        %1571 = vmatprep.subr.bf16.mxu0 0
        %1572 = vmatpush1.bf16.xpose.msra.mxu0 0
        %1573 = vmatprep.subr.bf16.mxu0 0
        %1574 = vmatpush1.bf16.xpose.msra.mxu0 0
        %1575 = vmatprep.subr.bf16.mxu0 0
        %1576 = vmatpush1.bf16.xpose.msra.mxu0 0
        %1577 = vmatprep.subr.bf16.mxu0 0
        %1578 = vmatpush1.bf16.xpose.msra.mxu0 0
        %1579 = vmatprep.subr.bf16.mxu0 0
        %1580 = vmatpush1.bf16.xpose.msra.mxu0 0
        %1581 = vmatprep.subr.bf16.mxu0 0
        %1582 = vmatpush1.bf16.xpose.msra.mxu0 0
        %1583 = vmatprep.subr.bf16.mxu0 0
        %1584 = vmatpush1.bf16.xpose.msra.mxu0 0
        %1585 = vmatprep.subr.bf16.mxu0 0
        %1586 = vmatpush1.bf16.xpose.msra.mxu0 0
        %1587 = vmatprep.subr.bf16.mxu0 0
        %1588 = vmatpush1.bf16.xpose.msra.mxu0 0
        %1589 = vmatprep.mubr.bf16.mxu0 0
        %1590 = vmatmul.mubr.bf16.gmra.mrb[0].mxu0 %v1552
        %v1591 = vpop.f32.mrb[0].mxu0
        %v1592 = vadd.f32 0.0, %v1591
        %v1593 = vpop.f32.mrb[0].mxu0
        %v1594 = vpop.f32.mrb[0].mxu0
        %v1595 = vadd.f32 0.0, %v1594
        %v1596 = vpop.f32.mrb[0].mxu0
        %1597 = vdwg.mxu0
        %v1598 = vsel %vm1459, %v1592, -1e+30
        %v1599 = vsel %vm873, %v1598, -inf
        %1600 = vmax.xlane.f32.xlu0 %v1599
        %v1601 = vpop.xlane.xlu0 %1600
        %v1602 = vsub.f32 %v1598, %v1601
        %v1603 = vmul.f32 %v1602, 1.442695
        %v1604 = vpow.pop %v1603
        %v1605 = vsel %vm873, %v1604, 0.0
        %1606 = vadd.xlane.f32.xlu0 %v1605
        %v1607 = vpop.xlane.xlu0 %1606
        %v1608 = vrcp.pop %v1607
        %v1609 = vmul.f32 %v1604, %v1608
        %v1610 = vtanh.pop %v1595
        %1612 = vrot.lane.b32.xlu0 %v1474, 96
        %v1613 = vpop.permute.xlu0 %1612
        %v1615 = vsel %vm817, %v1613, 0.0
        %1616 = vadd.xlane.f32.xlu0 %v1615
        %v1617 = vpop.xlane.xlu0 %1616
        %v1618 = vsub.f32 0.0, %v1617
        %v1619 = vmul.f32 %v1618, 0.17677669
        %v1620 = vxor.u32 %v1619, 2147483648
        %v1621 = vmul.f32 %v1620, 1.442695
        %v1622 = vpow.pop %v1621
        %v1623 = vadd.f32 %v1622, 1.0
        %v1624 = vrcp.pop %v1623
        %v1625 = vmul.f32 1.0, %v1624
        %v1626 = vmul.f32 %v1625, 2.0
        %v1627 = vmul.f32 %v1626, %v812
        %1629 = vrot.lane.b32.xlu0 %v1610, 8
        %v1630 = vpop.permute.xlu0 %1629
        %v1632 = vsel %vm873, %v1609, %v1630
        %v1633 = vpack.c.bf16 %v1632, %v1632
        %1635 = vset.pattern.permute.xlu0 0
        %1636 = vperm.xlu0 %1635, %v1627
        %v1637 = vpop.permute.xlu0 %1636
        %v1639 = vmul.f32 %v1637, %v808
        %v1640 = vpack.c.bf16 %v1639, %v808
        %1642 = vrot.lane.b32.xlu0 %v1640, 96
        %v1643 = vpop.permute.xlu0 %1642
        %v1646 = vsel %vm914, %v1633, 0
        %1648 = vmatprep.subr.bf16.mxu0 0
        %1649 = vmatpush1.bf16.msra.mxu0 %v1643
        %1650 = vmatprep.subr.bf16.mxu0 0
        %1651 = vmatpush1.bf16.msra.mxu0 0
        %1652 = vmatprep.subr.bf16.mxu0 0
        %1653 = vmatpush1.bf16.msra.mxu0 0
        %1654 = vmatprep.subr.bf16.mxu0 0
        %1655 = vmatpush1.bf16.msra.mxu0 0
        %1656 = vmatprep.subr.bf16.mxu0 0
        %1657 = vmatpush1.bf16.msra.mxu0 0
        %1658 = vmatprep.subr.bf16.mxu0 0
        %1659 = vmatpush1.bf16.msra.mxu0 0
        %1660 = vmatprep.subr.bf16.mxu0 0
        %1661 = vmatpush1.bf16.msra.mxu0 0
        %1662 = vmatprep.subr.bf16.mxu0 0
        %1663 = vmatpush1.bf16.msra.mxu0 0
        %1664 = vmatprep.subr.bf16.mxu0 0
        %1665 = vmatpush1.bf16.msra.mxu0 0
        %1666 = vmatprep.subr.bf16.mxu0 0
        %1667 = vmatpush1.bf16.msra.mxu0 0
        %1668 = vmatprep.subr.bf16.mxu0 0
        %1669 = vmatpush1.bf16.msra.mxu0 0
        %1670 = vmatprep.subr.bf16.mxu0 0
        %1671 = vmatpush1.bf16.msra.mxu0 0
        %1672 = vmatprep.subr.bf16.mxu0 0
        %1673 = vmatpush1.bf16.msra.mxu0 0
        %1674 = vmatprep.subr.bf16.mxu0 0
        %1675 = vmatpush1.bf16.msra.mxu0 0
        %1676 = vmatprep.subr.bf16.mxu0 0
        %1677 = vmatpush1.bf16.msra.mxu0 0
        %1678 = vmatprep.subr.bf16.mxu0 0
        %1679 = vmatpush1.bf16.msra.mxu0 0
        %1680 = vmatprep.mubr.bf16.mxu0 0
        %1681 = vmatmul.mubr.bf16.gmra.mrb[0].mxu0 %v1646
        %v1682 = vpop.f32.mrb[0].mxu0
        %v1683 = vadd.f32 0.0, %v1682
        %v1684 = vpop.f32.mrb[0].mxu0
        %v1685 = vpop.f32.mrb[0].mxu0
        %v1686 = vpop.f32.mrb[0].mxu0
        %1687 = vdwg.mxu0
        %v1688 = vmul.f32 %v1683, 0.5
        %1689 = vrot.lane.b32.xlu0 %v1404, 64
        %v1690 = vpop.permute.xlu0 %1689
        %1691 = vrot.lane.b32.xlu0 %v1405, 64
        %v1692 = vpop.permute.xlu0 %1691
        %v1694 = vsel %vm817, %v1690, 0
        %v1697 = vsel %vm817, %v1692, 0
        %1699 = vmatprep.subr.bf16.mxu0 0
        %1700 = vmatpush1.bf16.xpose.msra.mxu0 %v1697
        %1701 = vmatprep.subr.bf16.mxu0 0
        %1702 = vmatpush1.bf16.xpose.msra.mxu0 0
        %1703 = vmatprep.subr.bf16.mxu0 0
        %1704 = vmatpush1.bf16.xpose.msra.mxu0 0
        %1705 = vmatprep.subr.bf16.mxu0 0
        %1706 = vmatpush1.bf16.xpose.msra.mxu0 0
        %1707 = vmatprep.subr.bf16.mxu0 0
        %1708 = vmatpush1.bf16.xpose.msra.mxu0 0
        %1709 = vmatprep.subr.bf16.mxu0 0
        %1710 = vmatpush1.bf16.xpose.msra.mxu0 0
        %1711 = vmatprep.subr.bf16.mxu0 0
        %1712 = vmatpush1.bf16.xpose.msra.mxu0 0
        %1713 = vmatprep.subr.bf16.mxu0 0
        %1714 = vmatpush1.bf16.xpose.msra.mxu0 0
        %1715 = vmatprep.subr.bf16.mxu0 0
        %1716 = vmatpush1.bf16.xpose.msra.mxu0 0
        %1717 = vmatprep.subr.bf16.mxu0 0
        %1718 = vmatpush1.bf16.xpose.msra.mxu0 0
        %1719 = vmatprep.subr.bf16.mxu0 0
        %1720 = vmatpush1.bf16.xpose.msra.mxu0 0
        %1721 = vmatprep.subr.bf16.mxu0 0
        %1722 = vmatpush1.bf16.xpose.msra.mxu0 0
        %1723 = vmatprep.subr.bf16.mxu0 0
        %1724 = vmatpush1.bf16.xpose.msra.mxu0 0
        %1725 = vmatprep.subr.bf16.mxu0 0
        %1726 = vmatpush1.bf16.xpose.msra.mxu0 0
        %1727 = vmatprep.subr.bf16.mxu0 0
        %1728 = vmatpush1.bf16.xpose.msra.mxu0 0
        %1729 = vmatprep.subr.bf16.mxu0 0
        %1730 = vmatpush1.bf16.xpose.msra.mxu0 0
        %1731 = vmatprep.mubr.bf16.mxu0 0
        %1732 = vmatmul.mubr.bf16.gmra.mrb[0].mxu0 %v1694
        %v1733 = vpop.f32.mrb[0].mxu0
        %v1734 = vadd.f32 0.0, %v1733
        %v1735 = vpop.f32.mrb[0].mxu0
        %v1736 = vpop.f32.mrb[0].mxu0
        %v1737 = vadd.f32 0.0, %v1736
        %v1738 = vpop.f32.mrb[0].mxu0
        %1739 = vdwg.mxu0
        %v1740 = vsel %vm1459, %v1734, -1e+30
        %v1741 = vsel %vm873, %v1740, -inf
        %1742 = vmax.xlane.f32.xlu0 %v1741
        %v1743 = vpop.xlane.xlu0 %1742
        %v1744 = vsub.f32 %v1740, %v1743
        %v1745 = vmul.f32 %v1744, 1.442695
        %v1746 = vpow.pop %v1745
        %v1747 = vsel %vm873, %v1746, 0.0
        %1748 = vadd.xlane.f32.xlu0 %v1747
        %v1749 = vpop.xlane.xlu0 %1748
        %v1750 = vrcp.pop %v1749
        %v1751 = vmul.f32 %v1746, %v1750
        %v1752 = vtanh.pop %v1737
        %1753 = vrot.lane.b32.xlu0 %v1474, 64
        %v1754 = vpop.permute.xlu0 %1753
        %v1756 = vsel %vm817, %v1754, 0.0
        %1757 = vadd.xlane.f32.xlu0 %v1756
        %v1758 = vpop.xlane.xlu0 %1757
        %v1759 = vsub.f32 0.0, %v1758
        %v1760 = vmul.f32 %v1759, 0.17677669
        %v1761 = vxor.u32 %v1760, 2147483648
        %v1762 = vmul.f32 %v1761, 1.442695
        %v1763 = vpow.pop %v1762
        %v1764 = vadd.f32 %v1763, 1.0
        %v1765 = vrcp.pop %v1764
        %v1766 = vmul.f32 1.0, %v1765
        %v1767 = vmul.f32 %v1766, 2.0
        %v1768 = vmul.f32 %v1767, %v812
        %1770 = vrot.lane.b32.xlu0 %v1752, 8
        %v1771 = vpop.permute.xlu0 %1770
        %v1773 = vsel %vm873, %v1751, %v1771
        %v1774 = vpack.c.bf16 %v1773, %v1773
        %1776 = vset.pattern.permute.xlu0 0
        %1777 = vperm.xlu0 %1776, %v1768
        %v1778 = vpop.permute.xlu0 %1777
        %v1780 = vmul.f32 %v1778, %v808
        %v1781 = vpack.c.bf16 %v1780, %v808
        %1783 = vrot.lane.b32.xlu0 %v1781, 64
        %v1784 = vpop.permute.xlu0 %1783
        %v1787 = vsel %vm914, %v1774, 0
        %1789 = vmatprep.subr.bf16.mxu0 0
        %1790 = vmatpush1.bf16.msra.mxu0 %v1784
        %1791 = vmatprep.subr.bf16.mxu0 0
        %1792 = vmatpush1.bf16.msra.mxu0 0
        %1793 = vmatprep.subr.bf16.mxu0 0
        %1794 = vmatpush1.bf16.msra.mxu0 0
        %1795 = vmatprep.subr.bf16.mxu0 0
        %1796 = vmatpush1.bf16.msra.mxu0 0
        %1797 = vmatprep.subr.bf16.mxu0 0
        %1798 = vmatpush1.bf16.msra.mxu0 0
        %1799 = vmatprep.subr.bf16.mxu0 0
        %1800 = vmatpush1.bf16.msra.mxu0 0
        %1801 = vmatprep.subr.bf16.mxu0 0
        %1802 = vmatpush1.bf16.msra.mxu0 0
        %1803 = vmatprep.subr.bf16.mxu0 0
        %1804 = vmatpush1.bf16.msra.mxu0 0
        %1805 = vmatprep.subr.bf16.mxu0 0
        %1806 = vmatpush1.bf16.msra.mxu0 0
        %1807 = vmatprep.subr.bf16.mxu0 0
        %1808 = vmatpush1.bf16.msra.mxu0 0
        %1809 = vmatprep.subr.bf16.mxu0 0
        %1810 = vmatpush1.bf16.msra.mxu0 0
        %1811 = vmatprep.subr.bf16.mxu0 0
        %1812 = vmatpush1.bf16.msra.mxu0 0
        %1813 = vmatprep.subr.bf16.mxu0 0
        %1814 = vmatpush1.bf16.msra.mxu0 0
        %1815 = vmatprep.subr.bf16.mxu0 0
        %1816 = vmatpush1.bf16.msra.mxu0 0
        %1817 = vmatprep.subr.bf16.mxu0 0
        %1818 = vmatpush1.bf16.msra.mxu0 0
        %1819 = vmatprep.subr.bf16.mxu0 0
        %1820 = vmatpush1.bf16.msra.mxu0 0
        %1821 = vmatprep.mubr.bf16.mxu0 0
        %1822 = vmatmul.mubr.bf16.gmra.mrb[0].mxu0 %v1787
        %v1823 = vpop.f32.mrb[0].mxu0
        %v1824 = vadd.f32 0.0, %v1823
        %v1825 = vpop.f32.mrb[0].mxu0
        %v1826 = vpop.f32.mrb[0].mxu0
        %v1827 = vpop.f32.mrb[0].mxu0
        %1828 = vdwg.mxu0
        %v1829 = vmul.f32 %v1824, 0.5
        %1830 = vrot.lane.b32.xlu0 %v1404, 32
        %v1831 = vpop.permute.xlu0 %1830
        %1832 = vrot.lane.b32.xlu0 %v1405, 32
        %v1833 = vpop.permute.xlu0 %1832
        %v1835 = vsel %vm817, %v1831, 0
        %v1838 = vsel %vm817, %v1833, 0
        %1840 = vmatprep.subr.bf16.mxu0 0
        %1841 = vmatpush1.bf16.xpose.msra.mxu0 %v1838
        %1842 = vmatprep.subr.bf16.mxu0 0
        %1843 = vmatpush1.bf16.xpose.msra.mxu0 0
        %1844 = vmatprep.subr.bf16.mxu0 0
        %1845 = vmatpush1.bf16.xpose.msra.mxu0 0
        %1846 = vmatprep.subr.bf16.mxu0 0
        %1847 = vmatpush1.bf16.xpose.msra.mxu0 0
        %1848 = vmatprep.subr.bf16.mxu0 0
        %1849 = vmatpush1.bf16.xpose.msra.mxu0 0
        %1850 = vmatprep.subr.bf16.mxu0 0
        %1851 = vmatpush1.bf16.xpose.msra.mxu0 0
        %1852 = vmatprep.subr.bf16.mxu0 0
        %1853 = vmatpush1.bf16.xpose.msra.mxu0 0
        %1854 = vmatprep.subr.bf16.mxu0 0
        %1855 = vmatpush1.bf16.xpose.msra.mxu0 0
        %1856 = vmatprep.subr.bf16.mxu0 0
        %1857 = vmatpush1.bf16.xpose.msra.mxu0 0
        %1858 = vmatprep.subr.bf16.mxu0 0
        %1859 = vmatpush1.bf16.xpose.msra.mxu0 0
        %1860 = vmatprep.subr.bf16.mxu0 0
        %1861 = vmatpush1.bf16.xpose.msra.mxu0 0
        %1862 = vmatprep.subr.bf16.mxu0 0
        %1863 = vmatpush1.bf16.xpose.msra.mxu0 0
        %1864 = vmatprep.subr.bf16.mxu0 0
        %1865 = vmatpush1.bf16.xpose.msra.mxu0 0
        %1866 = vmatprep.subr.bf16.mxu0 0
        %1867 = vmatpush1.bf16.xpose.msra.mxu0 0
        %1868 = vmatprep.subr.bf16.mxu0 0
        %1869 = vmatpush1.bf16.xpose.msra.mxu0 0
        %1870 = vmatprep.subr.bf16.mxu0 0
        %1871 = vmatpush1.bf16.xpose.msra.mxu0 0
        %1872 = vmatprep.mubr.bf16.mxu0 0
        %1873 = vmatmul.mubr.bf16.gmra.mrb[0].mxu0 %v1835
        %v1874 = vpop.f32.mrb[0].mxu0
        %v1875 = vadd.f32 0.0, %v1874
        %v1876 = vpop.f32.mrb[0].mxu0
        %v1877 = vpop.f32.mrb[0].mxu0
        %v1878 = vadd.f32 0.0, %v1877
        %v1879 = vpop.f32.mrb[0].mxu0
        %1880 = vdwg.mxu0
        %v1881 = vsel %vm1459, %v1875, -1e+30
        %v1882 = vsel %vm873, %v1881, -inf
        %1883 = vmax.xlane.f32.xlu0 %v1882
        %v1884 = vpop.xlane.xlu0 %1883
        %v1885 = vsub.f32 %v1881, %v1884
        %v1886 = vmul.f32 %v1885, 1.442695
        %v1887 = vpow.pop %v1886
        %v1888 = vsel %vm873, %v1887, 0.0
        %1889 = vadd.xlane.f32.xlu0 %v1888
        %v1890 = vpop.xlane.xlu0 %1889
        %v1891 = vrcp.pop %v1890
        %v1892 = vmul.f32 %v1887, %v1891
        %v1893 = vtanh.pop %v1878
        %1894 = vrot.lane.b32.xlu0 %v1474, 32
        %v1895 = vpop.permute.xlu0 %1894
        %v1897 = vsel %vm817, %v1895, 0.0
        %1898 = vadd.xlane.f32.xlu0 %v1897
        %v1899 = vpop.xlane.xlu0 %1898
        %v1900 = vsub.f32 0.0, %v1899
        %v1901 = vmul.f32 %v1900, 0.17677669
        %v1902 = vxor.u32 %v1901, 2147483648
        %v1903 = vmul.f32 %v1902, 1.442695
        %v1904 = vpow.pop %v1903
        %v1905 = vadd.f32 %v1904, 1.0
        %v1906 = vrcp.pop %v1905
        %v1907 = vmul.f32 1.0, %v1906
        %v1908 = vmul.f32 %v1907, 2.0
        %v1909 = vmul.f32 %v1908, %v812
        %1911 = vrot.lane.b32.xlu0 %v1893, 8
        %v1912 = vpop.permute.xlu0 %1911
        %v1914 = vsel %vm873, %v1892, %v1912
        %v1915 = vpack.c.bf16 %v1914, %v1914
        %1917 = vset.pattern.permute.xlu0 0
        %1918 = vperm.xlu0 %1917, %v1909
        %v1919 = vpop.permute.xlu0 %1918
        %v1921 = vmul.f32 %v1919, %v808
        %v1922 = vpack.c.bf16 %v1921, %v808
        %1924 = vrot.lane.b32.xlu0 %v1922, 32
        %v1925 = vpop.permute.xlu0 %1924
        %v1928 = vsel %vm914, %v1915, 0
        %1930 = vmatprep.subr.bf16.mxu0 0
        %1931 = vmatpush1.bf16.msra.mxu0 %v1925
        %1932 = vmatprep.subr.bf16.mxu0 0
        %1933 = vmatpush1.bf16.msra.mxu0 0
        %1934 = vmatprep.subr.bf16.mxu0 0
        %1935 = vmatpush1.bf16.msra.mxu0 0
        %1936 = vmatprep.subr.bf16.mxu0 0
        %1937 = vmatpush1.bf16.msra.mxu0 0
        %1938 = vmatprep.subr.bf16.mxu0 0
        %1939 = vmatpush1.bf16.msra.mxu0 0
        %1940 = vmatprep.subr.bf16.mxu0 0
        %1941 = vmatpush1.bf16.msra.mxu0 0
        %1942 = vmatprep.subr.bf16.mxu0 0
        %1943 = vmatpush1.bf16.msra.mxu0 0
        %1944 = vmatprep.subr.bf16.mxu0 0
        %1945 = vmatpush1.bf16.msra.mxu0 0
        %1946 = vmatprep.subr.bf16.mxu0 0
        %1947 = vmatpush1.bf16.msra.mxu0 0
        %1948 = vmatprep.subr.bf16.mxu0 0
        %1949 = vmatpush1.bf16.msra.mxu0 0
        %1950 = vmatprep.subr.bf16.mxu0 0
        %1951 = vmatpush1.bf16.msra.mxu0 0
        %1952 = vmatprep.subr.bf16.mxu0 0
        %1953 = vmatpush1.bf16.msra.mxu0 0
        %1954 = vmatprep.subr.bf16.mxu0 0
        %1955 = vmatpush1.bf16.msra.mxu0 0
        %1956 = vmatprep.subr.bf16.mxu0 0
        %1957 = vmatpush1.bf16.msra.mxu0 0
        %1958 = vmatprep.subr.bf16.mxu0 0
        %1959 = vmatpush1.bf16.msra.mxu0 0
        %1960 = vmatprep.subr.bf16.mxu0 0
        %1961 = vmatpush1.bf16.msra.mxu0 0
        %1962 = vmatprep.mubr.bf16.mxu0 0
        %1963 = vmatmul.mubr.bf16.gmra.mrb[0].mxu0 %v1928
        %v1964 = vpop.f32.mrb[0].mxu0
        %v1965 = vadd.f32 0.0, %v1964
        %v1966 = vpop.f32.mrb[0].mxu0
        %v1967 = vpop.f32.mrb[0].mxu0
        %v1968 = vpop.f32.mrb[0].mxu0
        %1969 = vdwg.mxu0
        %v1970 = vmul.f32 %v1965, 0.5
        %1972 = vrot.lane.b32.xlu0 %v1688, 32
        %v1973 = vpop.permute.xlu0 %1972
        %1976 = vrot.lane.b32.xlu0 %v1829, 64
        %v1977 = vpop.permute.xlu0 %1976
        %1980 = vrot.lane.b32.xlu0 %v1970, 96
        %v1981 = vpop.permute.xlu0 %1980
        %v1983 = vsel %vm817, %v1544, %v1973
        %v1984 = vsel %vm1398, %v1983, %v1977
        %v1985 = vsel %vm1400, %v1984, %v1981
        %v1986 = vpack.c.bf16 %v1985, %v1401
        %v1987 = vld [vmem:[%s522] sm:$0xf]
        %v1988 = vld [vmem:[%s522 + $0x4] sm:$0xf]
        %v1989 = vld [vmem:[%s522 + $0x8] sm:$0xf]
        %v1990 = vld [vmem:[%s522 + $0xc] sm:$0xf]
        %v1991 = vld [vmem:[%s522 + $0x10] sm:$0xf]
        %v1992 = vld [vmem:[%s522 + $0x14] sm:$0xf]
        %v1993 = vld [vmem:[%s522 + $0x18] sm:$0xf]
        %v1994 = vld [vmem:[%s522 + $0x1c] sm:$0xf]
        %v1995 = vld [vmem:[%s522 + $0x20] sm:$0xf]
        %v1996 = vld [vmem:[%s522 + $0x24] sm:$0xf]
        %v1997 = vld [vmem:[%s522 + $0x28] sm:$0xf]
        %v1998 = vld [vmem:[%s522 + $0x2c] sm:$0xf]
        %v1999 = vld [vmem:[%s522 + $0x30] sm:$0xf]
        %v2000 = vld [vmem:[%s522 + $0x34] sm:$0xf]
        %v2001 = vld [vmem:[%s522 + $0x38] sm:$0xf]
        %v2002 = vld [vmem:[%s522 + $0x3c] sm:$0xf]
        %v2003 = vlaneseq
        %v2004 = vshrl.u32 %v2003, 7
        %v2005 = vsub.s32 2, %v2004
        %v2006 = vrot.slane %v618, %v2005
        %v2023 = vunpack.c.l.b16 %v1987
        %v2024 = vunpack.c.l.b16 %v1988
        %v2025 = vunpack.c.l.b16 %v1989
        %v2026 = vunpack.c.l.b16 %v1990
        %v2027 = vunpack.c.l.b16 %v1991
        %v2028 = vunpack.c.l.b16 %v1992
        %v2029 = vunpack.c.l.b16 %v1993
        %v2030 = vunpack.c.l.b16 %v1994
        %v2031 = vunpack.c.l.b16 %v1995
        %v2032 = vunpack.c.l.b16 %v1996
        %v2033 = vunpack.c.l.b16 %v1997
        %v2034 = vunpack.c.l.b16 %v1998
        %v2035 = vunpack.c.l.b16 %v1999
        %v2036 = vunpack.c.l.b16 %v2000
        %v2037 = vunpack.c.l.b16 %v2001
        %v2038 = vunpack.c.l.b16 %v2002
        %v2039 = vpack.c.b16 %v2024, %v2023
        %v2040 = vpack.c.b16 %v2026, %v2025
        %v2041 = vpack.c.b16 %v2028, %v2027
        %v2042 = vpack.c.b16 %v2030, %v2029
        %v2043 = vpack.c.b16 %v2032, %v2031
        %v2044 = vpack.c.b16 %v2034, %v2033
        %v2045 = vpack.c.b16 %v2036, %v2035
        %v2046 = vpack.c.b16 %v2038, %v2037
        %2055 = vmatprep.subr.bf16.mxu0 0
        %2056 = vmatpush1.bf16.msra.mxu0 %v2039
        %2057 = vmatprep.subr.bf16.mxu0 0
        %2058 = vmatpush1.bf16.msra.mxu0 %v2040
        %2059 = vmatprep.subr.bf16.mxu0 0
        %2060 = vmatpush1.bf16.msra.mxu0 %v2041
        %2061 = vmatprep.subr.bf16.mxu0 0
        %2062 = vmatpush1.bf16.msra.mxu0 %v2042
        %2063 = vmatprep.subr.bf16.mxu0 0
        %2064 = vmatpush1.bf16.msra.mxu0 %v2043
        %2065 = vmatprep.subr.bf16.mxu0 0
        %2066 = vmatpush1.bf16.msra.mxu0 %v2044
        %2067 = vmatprep.subr.bf16.mxu0 0
        %2068 = vmatpush1.bf16.msra.mxu0 %v2045
        %2069 = vmatprep.subr.bf16.mxu0 0
        %2070 = vmatpush1.bf16.msra.mxu0 %v2046
        %2071 = vmatprep.subr.bf16.mxu0 0
        %2072 = vmatpush1.bf16.msra.mxu0 0
        %2073 = vmatprep.subr.bf16.mxu0 0
        %2074 = vmatpush1.bf16.msra.mxu0 0
        %2075 = vmatprep.subr.bf16.mxu0 0
        %2076 = vmatpush1.bf16.msra.mxu0 0
        %2077 = vmatprep.subr.bf16.mxu0 0
        %2078 = vmatpush1.bf16.msra.mxu0 0
        %2079 = vmatprep.subr.bf16.mxu0 0
        %2080 = vmatpush1.bf16.msra.mxu0 0
        %2081 = vmatprep.subr.bf16.mxu0 0
        %2082 = vmatpush1.bf16.msra.mxu0 0
        %2083 = vmatprep.subr.bf16.mxu0 0
        %2084 = vmatpush1.bf16.msra.mxu0 0
        %2085 = vmatprep.subr.bf16.mxu0 0
        %2086 = vmatpush1.bf16.msra.mxu0 0
        %2087 = vmatprep.mubr.bf16.mxu0 0
        %2088 = vmatmul.mubr.bf16.gmra.mrb[0].mxu0 %v1986
        %v2089 = vpop.f32.mrb[0].mxu0
        %v2090 = vadd.f32 %v2006, %v2089
        %v2091 = vpop.f32.mrb[0].mxu0
        %v2092 = vpop.f32.mrb[0].mxu0
        %v2093 = vadd.f32 %v2006, %v2092
        %v2094 = vpop.f32.mrb[0].mxu0
        %2095 = vdwg.mxu0
        %v2096 = vadd.f32 %v616, %v2090
        %v2097 = vadd.f32 %v617, %v2093
        %2098 = vadd.xlane.f32.xlu0 %v2096
        %v2099 = vpop.xlane.xlu0 %2098
        %2100 = vadd.xlane.f32.xlu0 %v2097
        %v2101 = vpop.xlane.xlu0 %2100
        %v2102 = vmul.f32 %v2099, %v626
        %v2103 = vmul.f32 %v2101, %v626
        %v2104 = vsub.f32 %v2096, %v2102
        %v2105 = vsub.f32 %v2097, %v2103
        %v2106 = vmul.f32 %v2104, %v2104
        %v2107 = vmul.f32 %v2105, %v2105
        %2108 = vadd.xlane.f32.xlu0 %v2106
        %v2109 = vpop.xlane.xlu0 %2108
        %2110 = vadd.xlane.f32.xlu0 %v2107
        %v2111 = vpop.xlane.xlu0 %2110
        %v2112 = vmul.f32 %v2109, %v626
        %v2113 = vmul.f32 %v2111, %v626
        %v2114 = vadd.f32 %v2112, 1e-05
        %v2115 = vadd.f32 %v2113, 1e-05
        %v2116 = vrsqrt.pop %v2114
        %v2117 = vrsqrt.pop %v2115
        %v2118 = vmul.f32 %v2104, %v2116
        %v2119 = vmul.f32 %v2105, %v2117
        %v2120 = vlaneseq
        %v2121 = vshrl.u32 %v2120, 7
        %v2122 = vsub.s32 3, %v2121
        %v2123 = vrot.slane %v618, %v2122
        %v2124 = vmul.f32 %v2118, %v2123
        %v2125 = vmul.f32 %v2119, %v2123
        %v2126 = vlaneseq
        %v2127 = vshrl.u32 %v2126, 7
        %v2128 = vsub.s32 4, %v2127
        %v2129 = vrot.slane %v618, %v2128
        %v2130 = vadd.f32 %v2124, %v2129
        %v2131 = vadd.f32 %v2125, %v2129
        %v2132 = vpack.c.bf16 %v2131, %v2130
        %v2133 = vld [vmem:[%s531] sm:$0xff]
        %v2134 = vld [vmem:[%s531 + $0x8] sm:$0xff]
        %v2135 = vld [vmem:[%s531 + $0x10] sm:$0xff]
        %v2136 = vld [vmem:[%s531 + $0x18] sm:$0xff]
        %v2137 = vld [vmem:[%s531 + $0x20] sm:$0xff]
        %v2138 = vld [vmem:[%s531 + $0x28] sm:$0xff]
        %v2139 = vld [vmem:[%s531 + $0x30] sm:$0xff]
        %v2140 = vld [vmem:[%s531 + $0x38] sm:$0xff]
        %v2141 = vld [vmem:[%s531 + $0x40] sm:$0xff]
        %v2142 = vld [vmem:[%s531 + $0x48] sm:$0xff]
        %v2143 = vld [vmem:[%s531 + $0x50] sm:$0xff]
        %v2144 = vld [vmem:[%s531 + $0x58] sm:$0xff]
        %v2145 = vld [vmem:[%s531 + $0x60] sm:$0xff]
        %v2146 = vld [vmem:[%s531 + $0x68] sm:$0xff]
        %v2147 = vld [vmem:[%s531 + $0x70] sm:$0xff]
        %v2148 = vld [vmem:[%s531 + $0x78] sm:$0xff]
        %v2149 = vld [vmem:[%s531 + $0x80] sm:$0xff]
        %v2150 = vld [vmem:[%s531 + $0x88] sm:$0xff]
        %v2151 = vld [vmem:[%s531 + $0x90] sm:$0xff]
        %v2152 = vld [vmem:[%s531 + $0x98] sm:$0xff]
        %v2153 = vld [vmem:[%s531 + $0xa0] sm:$0xff]
        %v2154 = vld [vmem:[%s531 + $0xa8] sm:$0xff]
        %v2155 = vld [vmem:[%s531 + $0xb0] sm:$0xff]
        %v2156 = vld [vmem:[%s531 + $0xb8] sm:$0xff]
        %v2157 = vld [vmem:[%s531 + $0xc0] sm:$0xff]
        %v2158 = vld [vmem:[%s531 + $0xc8] sm:$0xff]
        %v2159 = vld [vmem:[%s531 + $0xd0] sm:$0xff]
        %v2160 = vld [vmem:[%s531 + $0xd8] sm:$0xff]
        %v2161 = vld [vmem:[%s531 + $0xe0] sm:$0xff]
        %v2162 = vld [vmem:[%s531 + $0xe8] sm:$0xff]
        %v2163 = vld [vmem:[%s531 + $0xf0] sm:$0xff]
        %v2164 = vld [vmem:[%s531 + $0xf8] sm:$0xff]
        %v2165 = vlaneseq
        %v2166 = vshrl.u32 %v2165, 7
        %v2167 = vsub.s32 7, %v2166
        %v2168 = vrot.slane %v618, %v2167
        %v2169 = vlaneseq
        %v2170 = vshrl.u32 %v2169, 7
        %v2171 = vsub.s32 7, %v2170
        %v2172 = vrot.slane %v619, %v2171
        %v2173 = vlaneseq
        %v2174 = vshrl.u32 %v2173, 7
        %v2175 = vsub.s32 7, %v2174
        %v2176 = vrot.slane %v620, %v2175
        %v2177 = vlaneseq
        %v2178 = vshrl.u32 %v2177, 7
        %v2179 = vsub.s32 7, %v2178
        %v2180 = vrot.slane %v621, %v2179
        %v2213 = vunpack.c.l.b16 %v2133
        %v2214 = vunpack.c.h.b16 %v2133
        %v2215 = vunpack.c.l.b16 %v2134
        %v2216 = vunpack.c.h.b16 %v2134
        %v2217 = vunpack.c.l.b16 %v2135
        %v2218 = vunpack.c.h.b16 %v2135
        %v2219 = vunpack.c.l.b16 %v2136
        %v2220 = vunpack.c.h.b16 %v2136
        %v2221 = vunpack.c.l.b16 %v2137
        %v2222 = vunpack.c.h.b16 %v2137
        %v2223 = vunpack.c.l.b16 %v2138
        %v2224 = vunpack.c.h.b16 %v2138
        %v2225 = vunpack.c.l.b16 %v2139
        %v2226 = vunpack.c.h.b16 %v2139
        %v2227 = vunpack.c.l.b16 %v2140
        %v2228 = vunpack.c.h.b16 %v2140
        %v2229 = vunpack.c.l.b16 %v2141
        %v2230 = vunpack.c.h.b16 %v2141
        %v2231 = vunpack.c.l.b16 %v2142
        %v2232 = vunpack.c.h.b16 %v2142
        %v2233 = vunpack.c.l.b16 %v2143
        %v2234 = vunpack.c.h.b16 %v2143
        %v2235 = vunpack.c.l.b16 %v2144
        %v2236 = vunpack.c.h.b16 %v2144
        %v2237 = vunpack.c.l.b16 %v2145
        %v2238 = vunpack.c.h.b16 %v2145
        %v2239 = vunpack.c.l.b16 %v2146
        %v2240 = vunpack.c.h.b16 %v2146
        %v2241 = vunpack.c.l.b16 %v2147
        %v2242 = vunpack.c.h.b16 %v2147
        %v2243 = vunpack.c.l.b16 %v2148
        %v2244 = vunpack.c.h.b16 %v2148
        %v2245 = vunpack.c.l.b16 %v2149
        %v2246 = vunpack.c.h.b16 %v2149
        %v2247 = vunpack.c.l.b16 %v2150
        %v2248 = vunpack.c.h.b16 %v2150
        %v2249 = vunpack.c.l.b16 %v2151
        %v2250 = vunpack.c.h.b16 %v2151
        %v2251 = vunpack.c.l.b16 %v2152
        %v2252 = vunpack.c.h.b16 %v2152
        %v2253 = vunpack.c.l.b16 %v2153
        %v2254 = vunpack.c.h.b16 %v2153
        %v2255 = vunpack.c.l.b16 %v2154
        %v2256 = vunpack.c.h.b16 %v2154
        %v2257 = vunpack.c.l.b16 %v2155
        %v2258 = vunpack.c.h.b16 %v2155
        %v2259 = vunpack.c.l.b16 %v2156
        %v2260 = vunpack.c.h.b16 %v2156
        %v2261 = vunpack.c.l.b16 %v2157
        %v2262 = vunpack.c.h.b16 %v2157
        %v2263 = vunpack.c.l.b16 %v2158
        %v2264 = vunpack.c.h.b16 %v2158
        %v2265 = vunpack.c.l.b16 %v2159
        %v2266 = vunpack.c.h.b16 %v2159
        %v2267 = vunpack.c.l.b16 %v2160
        %v2268 = vunpack.c.h.b16 %v2160
        %v2269 = vunpack.c.l.b16 %v2161
        %v2270 = vunpack.c.h.b16 %v2161
        %v2271 = vunpack.c.l.b16 %v2162
        %v2272 = vunpack.c.h.b16 %v2162
        %v2273 = vunpack.c.l.b16 %v2163
        %v2274 = vunpack.c.h.b16 %v2163
        %v2275 = vunpack.c.l.b16 %v2164
        %v2276 = vunpack.c.h.b16 %v2164
        %v2277 = vpack.c.b16 %v2217, %v2213
        %v2278 = vpack.c.b16 %v2218, %v2214
        %v2279 = vpack.c.b16 %v2219, %v2215
        %v2280 = vpack.c.b16 %v2220, %v2216
        %v2281 = vpack.c.b16 %v2225, %v2221
        %v2282 = vpack.c.b16 %v2226, %v2222
        %v2283 = vpack.c.b16 %v2227, %v2223
        %v2284 = vpack.c.b16 %v2228, %v2224
        %v2285 = vpack.c.b16 %v2233, %v2229
        %v2286 = vpack.c.b16 %v2234, %v2230
        %v2287 = vpack.c.b16 %v2235, %v2231
        %v2288 = vpack.c.b16 %v2236, %v2232
        %v2289 = vpack.c.b16 %v2241, %v2237
        %v2290 = vpack.c.b16 %v2242, %v2238
        %v2291 = vpack.c.b16 %v2243, %v2239
        %v2292 = vpack.c.b16 %v2244, %v2240
        %v2293 = vpack.c.b16 %v2249, %v2245
        %v2294 = vpack.c.b16 %v2250, %v2246
        %v2295 = vpack.c.b16 %v2251, %v2247
        %v2296 = vpack.c.b16 %v2252, %v2248
        %v2297 = vpack.c.b16 %v2257, %v2253
        %v2298 = vpack.c.b16 %v2258, %v2254
        %v2299 = vpack.c.b16 %v2259, %v2255
        %v2300 = vpack.c.b16 %v2260, %v2256
        %v2301 = vpack.c.b16 %v2265, %v2261
        %v2302 = vpack.c.b16 %v2266, %v2262
        %v2303 = vpack.c.b16 %v2267, %v2263
        %v2304 = vpack.c.b16 %v2268, %v2264
        %v2305 = vpack.c.b16 %v2273, %v2269
        %v2306 = vpack.c.b16 %v2274, %v2270
        %v2307 = vpack.c.b16 %v2275, %v2271
        %v2308 = vpack.c.b16 %v2276, %v2272
        %2341 = vmatprep.subr.bf16.mxu0 %v2278
        %2342 = vmatpush1.bf16.msra.mxu0 %v2277
        %2343 = vmatprep.subr.bf16.mxu0 %v2282
        %2344 = vmatpush1.bf16.msra.mxu0 %v2281
        %2345 = vmatprep.subr.bf16.mxu0 %v2286
        %2346 = vmatpush1.bf16.msra.mxu0 %v2285
        %2347 = vmatprep.subr.bf16.mxu0 %v2290
        %2348 = vmatpush1.bf16.msra.mxu0 %v2289
        %2349 = vmatprep.subr.bf16.mxu0 %v2294
        %2350 = vmatpush1.bf16.msra.mxu0 %v2293
        %2351 = vmatprep.subr.bf16.mxu0 %v2298
        %2352 = vmatpush1.bf16.msra.mxu0 %v2297
        %2353 = vmatprep.subr.bf16.mxu0 %v2302
        %2354 = vmatpush1.bf16.msra.mxu0 %v2301
        %2355 = vmatprep.subr.bf16.mxu0 %v2306
        %2356 = vmatpush1.bf16.msra.mxu0 %v2305
        %2357 = vmatprep.subr.bf16.mxu0 0
        %2358 = vmatpush1.bf16.msra.mxu0 0
        %2359 = vmatprep.subr.bf16.mxu0 0
        %2360 = vmatpush1.bf16.msra.mxu0 0
        %2361 = vmatprep.subr.bf16.mxu0 0
        %2362 = vmatpush1.bf16.msra.mxu0 0
        %2363 = vmatprep.subr.bf16.mxu0 0
        %2364 = vmatpush1.bf16.msra.mxu0 0
        %2365 = vmatprep.subr.bf16.mxu0 0
        %2366 = vmatpush1.bf16.msra.mxu0 0
        %2367 = vmatprep.subr.bf16.mxu0 0
        %2368 = vmatpush1.bf16.msra.mxu0 0
        %2369 = vmatprep.subr.bf16.mxu0 0
        %2370 = vmatpush1.bf16.msra.mxu0 0
        %2371 = vmatprep.subr.bf16.mxu0 0
        %2372 = vmatpush1.bf16.msra.mxu0 0
        %2373 = vmatprep.mubr.bf16.mxu0 0
        %2374 = vmatmul.mubr.bf16.gmra.mrb[0].mxu0 %v2132
        %v2375 = vpop.f32.mrb[0].mxu0
        %v2376 = vadd.f32 %v2168, %v2375
        %v2377 = vpop.f32.mrb[0].mxu0
        %v2378 = vadd.f32 %v2172, %v2377
        %v2379 = vpop.f32.mrb[0].mxu0
        %v2380 = vadd.f32 %v2168, %v2379
        %v2381 = vpop.f32.mrb[0].mxu0
        %v2382 = vadd.f32 %v2172, %v2381
        %2383 = vdwg.mxu0
        %2384 = vmatprep.subr.bf16.mxu0 %v2280
        %2385 = vmatpush1.bf16.msra.mxu0 %v2279
        %2386 = vmatprep.subr.bf16.mxu0 %v2284
        %2387 = vmatpush1.bf16.msra.mxu0 %v2283
        %2388 = vmatprep.subr.bf16.mxu0 %v2288
        %2389 = vmatpush1.bf16.msra.mxu0 %v2287
        %2390 = vmatprep.subr.bf16.mxu0 %v2292
        %2391 = vmatpush1.bf16.msra.mxu0 %v2291
        %2392 = vmatprep.subr.bf16.mxu0 %v2296
        %2393 = vmatpush1.bf16.msra.mxu0 %v2295
        %2394 = vmatprep.subr.bf16.mxu0 %v2300
        %2395 = vmatpush1.bf16.msra.mxu0 %v2299
        %2396 = vmatprep.subr.bf16.mxu0 %v2304
        %2397 = vmatpush1.bf16.msra.mxu0 %v2303
        %2398 = vmatprep.subr.bf16.mxu0 %v2308
        %2399 = vmatpush1.bf16.msra.mxu0 %v2307
        %2400 = vmatprep.subr.bf16.mxu0 0
        %2401 = vmatpush1.bf16.msra.mxu0 0
        %2402 = vmatprep.subr.bf16.mxu0 0
        %2403 = vmatpush1.bf16.msra.mxu0 0
        %2404 = vmatprep.subr.bf16.mxu0 0
        %2405 = vmatpush1.bf16.msra.mxu0 0
        %2406 = vmatprep.subr.bf16.mxu0 0
        %2407 = vmatpush1.bf16.msra.mxu0 0
        %2408 = vmatprep.subr.bf16.mxu0 0
        %2409 = vmatpush1.bf16.msra.mxu0 0
        %2410 = vmatprep.subr.bf16.mxu0 0
        %2411 = vmatpush1.bf16.msra.mxu0 0
        %2412 = vmatprep.subr.bf16.mxu0 0
        %2413 = vmatpush1.bf16.msra.mxu0 0
        %2414 = vmatprep.subr.bf16.mxu0 0
        %2415 = vmatpush1.bf16.msra.mxu0 0
        %2416 = vmatprep.mubr.bf16.mxu0 0
        %2417 = vmatmul.mubr.bf16.gmra.mrb[0].mxu0 %v2132
        %v2418 = vpop.f32.mrb[0].mxu0
        %v2419 = vadd.f32 %v2176, %v2418
        %v2420 = vpop.f32.mrb[0].mxu0
        %v2421 = vadd.f32 %v2180, %v2420
        %v2422 = vpop.f32.mrb[0].mxu0
        %v2423 = vadd.f32 %v2176, %v2422
        %v2424 = vpop.f32.mrb[0].mxu0
        %v2425 = vadd.f32 %v2180, %v2424
        %2426 = vdwg.mxu0
        %v2427 = vmul.f32 %v2376, 1.702
        %v2428 = vmul.f32 %v2378, 1.702
        %v2429 = vmul.f32 %v2419, 1.702
        %v2430 = vmul.f32 %v2421, 1.702
        %v2431 = vmul.f32 %v2380, 1.702
        %v2432 = vmul.f32 %v2382, 1.702
        %v2433 = vmul.f32 %v2423, 1.702
        %v2434 = vmul.f32 %v2425, 1.702
        %v2435 = vxor.u32 %v2427, 2147483648
        %v2436 = vxor.u32 %v2428, 2147483648
        %v2437 = vxor.u32 %v2429, 2147483648
        %v2438 = vxor.u32 %v2430, 2147483648
        %v2439 = vxor.u32 %v2431, 2147483648
        %v2440 = vxor.u32 %v2432, 2147483648
        %v2441 = vxor.u32 %v2433, 2147483648
        %v2442 = vxor.u32 %v2434, 2147483648
        %v2443 = vmul.f32 %v2435, 1.442695
        %v2444 = vpow.pop %v2443
        %v2445 = vmul.f32 %v2436, 1.442695
        %v2446 = vpow.pop %v2445
        %v2447 = vmul.f32 %v2437, 1.442695
        %v2448 = vpow.pop %v2447
        %v2449 = vmul.f32 %v2438, 1.442695
        %v2450 = vpow.pop %v2449
        %v2451 = vmul.f32 %v2439, 1.442695
        %v2452 = vpow.pop %v2451
        %v2453 = vmul.f32 %v2440, 1.442695
        %v2454 = vpow.pop %v2453
        %v2455 = vmul.f32 %v2441, 1.442695
        %v2456 = vpow.pop %v2455
        %v2457 = vmul.f32 %v2442, 1.442695
        %v2458 = vpow.pop %v2457
        %v2459 = vadd.f32 %v2444, 1.0
        %v2460 = vadd.f32 %v2446, 1.0
        %v2461 = vadd.f32 %v2448, 1.0
        %v2462 = vadd.f32 %v2450, 1.0
        %v2463 = vadd.f32 %v2452, 1.0
        %v2464 = vadd.f32 %v2454, 1.0
        %v2465 = vadd.f32 %v2456, 1.0
        %v2466 = vadd.f32 %v2458, 1.0
        %v2467 = vrcp.pop %v2459
        %v2468 = vmul.f32 1.0, %v2467
        %v2469 = vrcp.pop %v2460
        %v2470 = vmul.f32 1.0, %v2469
        %v2471 = vrcp.pop %v2461
        %v2472 = vmul.f32 1.0, %v2471
        %v2473 = vrcp.pop %v2462
        %v2474 = vmul.f32 1.0, %v2473
        %v2475 = vrcp.pop %v2463
        %v2476 = vmul.f32 1.0, %v2475
        %v2477 = vrcp.pop %v2464
        %v2478 = vmul.f32 1.0, %v2477
        %v2479 = vrcp.pop %v2465
        %v2480 = vmul.f32 1.0, %v2479
        %v2481 = vrcp.pop %v2466
        %v2482 = vmul.f32 1.0, %v2481
        %v2483 = vmul.f32 %v2376, %v2468
        %v2484 = vmul.f32 %v2378, %v2470
        %v2485 = vmul.f32 %v2419, %v2472
        %v2486 = vmul.f32 %v2421, %v2474
        %v2487 = vmul.f32 %v2380, %v2476
        %v2488 = vmul.f32 %v2382, %v2478
        %v2489 = vmul.f32 %v2423, %v2480
        %v2490 = vmul.f32 %v2425, %v2482
        %v2491 = vpack.c.bf16 %v2487, %v2483
        %v2492 = vpack.c.bf16 %v2488, %v2484
        %v2493 = vpack.c.bf16 %v2489, %v2485
        %v2494 = vpack.c.bf16 %v2490, %v2486
        %v2495 = vld [vmem:[%s540] sm:$0xf]
        %v2496 = vld [vmem:[%s540 + $0x4] sm:$0xf]
        %v2497 = vld [vmem:[%s540 + $0x8] sm:$0xf]
        %v2498 = vld [vmem:[%s540 + $0xc] sm:$0xf]
        %v2499 = vld [vmem:[%s540 + $0x10] sm:$0xf]
        %v2500 = vld [vmem:[%s540 + $0x14] sm:$0xf]
        %v2501 = vld [vmem:[%s540 + $0x18] sm:$0xf]
        %v2502 = vld [vmem:[%s540 + $0x1c] sm:$0xf]
        %v2503 = vld [vmem:[%s540 + $0x20] sm:$0xf]
        %v2504 = vld [vmem:[%s540 + $0x24] sm:$0xf]
        %v2505 = vld [vmem:[%s540 + $0x28] sm:$0xf]
        %v2506 = vld [vmem:[%s540 + $0x2c] sm:$0xf]
        %v2507 = vld [vmem:[%s540 + $0x30] sm:$0xf]
        %v2508 = vld [vmem:[%s540 + $0x34] sm:$0xf]
        %v2509 = vld [vmem:[%s540 + $0x38] sm:$0xf]
        %v2510 = vld [vmem:[%s540 + $0x3c] sm:$0xf]
        %v2511 = vld [vmem:[%s540 + $0x40] sm:$0xf]
        %v2512 = vld [vmem:[%s540 + $0x44] sm:$0xf]
        %v2513 = vld [vmem:[%s540 + $0x48] sm:$0xf]
        %v2514 = vld [vmem:[%s540 + $0x4c] sm:$0xf]
        %v2515 = vld [vmem:[%s540 + $0x50] sm:$0xf]
        %v2516 = vld [vmem:[%s540 + $0x54] sm:$0xf]
        %v2517 = vld [vmem:[%s540 + $0x58] sm:$0xf]
        %v2518 = vld [vmem:[%s540 + $0x5c] sm:$0xf]
        %v2519 = vld [vmem:[%s540 + $0x60] sm:$0xf]
        %v2520 = vld [vmem:[%s540 + $0x64] sm:$0xf]
        %v2521 = vld [vmem:[%s540 + $0x68] sm:$0xf]
        %v2522 = vld [vmem:[%s540 + $0x6c] sm:$0xf]
        %v2523 = vld [vmem:[%s540 + $0x70] sm:$0xf]
        %v2524 = vld [vmem:[%s540 + $0x74] sm:$0xf]
        %v2525 = vld [vmem:[%s540 + $0x78] sm:$0xf]
        %v2526 = vld [vmem:[%s540 + $0x7c] sm:$0xf]
        %v2527 = vld [vmem:[%s540 + $0x80] sm:$0xf]
        %v2528 = vld [vmem:[%s540 + $0x84] sm:$0xf]
        %v2529 = vld [vmem:[%s540 + $0x88] sm:$0xf]
        %v2530 = vld [vmem:[%s540 + $0x8c] sm:$0xf]
        %v2531 = vld [vmem:[%s540 + $0x90] sm:$0xf]
        %v2532 = vld [vmem:[%s540 + $0x94] sm:$0xf]
        %v2533 = vld [vmem:[%s540 + $0x98] sm:$0xf]
        %v2534 = vld [vmem:[%s540 + $0x9c] sm:$0xf]
        %v2535 = vld [vmem:[%s540 + $0xa0] sm:$0xf]
        %v2536 = vld [vmem:[%s540 + $0xa4] sm:$0xf]
        %v2537 = vld [vmem:[%s540 + $0xa8] sm:$0xf]
        %v2538 = vld [vmem:[%s540 + $0xac] sm:$0xf]
        %v2539 = vld [vmem:[%s540 + $0xb0] sm:$0xf]
        %v2540 = vld [vmem:[%s540 + $0xb4] sm:$0xf]
        %v2541 = vld [vmem:[%s540 + $0xb8] sm:$0xf]
        %v2542 = vld [vmem:[%s540 + $0xbc] sm:$0xf]
        %v2543 = vld [vmem:[%s540 + $0xc0] sm:$0xf]
        %v2544 = vld [vmem:[%s540 + $0xc4] sm:$0xf]
        %v2545 = vld [vmem:[%s540 + $0xc8] sm:$0xf]
        %v2546 = vld [vmem:[%s540 + $0xcc] sm:$0xf]
        %v2547 = vld [vmem:[%s540 + $0xd0] sm:$0xf]
        %v2548 = vld [vmem:[%s540 + $0xd4] sm:$0xf]
        %v2549 = vld [vmem:[%s540 + $0xd8] sm:$0xf]
        %v2550 = vld [vmem:[%s540 + $0xdc] sm:$0xf]
        %v2551 = vld [vmem:[%s540 + $0xe0] sm:$0xf]
        %v2552 = vld [vmem:[%s540 + $0xe4] sm:$0xf]
        %v2553 = vld [vmem:[%s540 + $0xe8] sm:$0xf]
        %v2554 = vld [vmem:[%s540 + $0xec] sm:$0xf]
        %v2555 = vld [vmem:[%s540 + $0xf0] sm:$0xf]
        %v2556 = vld [vmem:[%s540 + $0xf4] sm:$0xf]
        %v2557 = vld [vmem:[%s540 + $0xf8] sm:$0xf]
        %v2558 = vld [vmem:[%s540 + $0xfc] sm:$0xf]
        %v2559 = vlaneseq
        %v2560 = vshrl.u32 %v2559, 7
        %v2561 = vsub.s32 5, %v2560
        %v2562 = vrot.slane %v618, %v2561
        %v2627 = vunpack.c.l.b16 %v2495
        %v2628 = vunpack.c.l.b16 %v2496
        %v2629 = vunpack.c.l.b16 %v2497
        %v2630 = vunpack.c.l.b16 %v2498
        %v2631 = vunpack.c.l.b16 %v2499
        %v2632 = vunpack.c.l.b16 %v2500
        %v2633 = vunpack.c.l.b16 %v2501
        %v2634 = vunpack.c.l.b16 %v2502
        %v2635 = vunpack.c.l.b16 %v2503
        %v2636 = vunpack.c.l.b16 %v2504
        %v2637 = vunpack.c.l.b16 %v2505
        %v2638 = vunpack.c.l.b16 %v2506
        %v2639 = vunpack.c.l.b16 %v2507
        %v2640 = vunpack.c.l.b16 %v2508
        %v2641 = vunpack.c.l.b16 %v2509
        %v2642 = vunpack.c.l.b16 %v2510
        %v2643 = vunpack.c.l.b16 %v2511
        %v2644 = vunpack.c.l.b16 %v2512
        %v2645 = vunpack.c.l.b16 %v2513
        %v2646 = vunpack.c.l.b16 %v2514
        %v2647 = vunpack.c.l.b16 %v2515
        %v2648 = vunpack.c.l.b16 %v2516
        %v2649 = vunpack.c.l.b16 %v2517
        %v2650 = vunpack.c.l.b16 %v2518
        %v2651 = vunpack.c.l.b16 %v2519
        %v2652 = vunpack.c.l.b16 %v2520
        %v2653 = vunpack.c.l.b16 %v2521
        %v2654 = vunpack.c.l.b16 %v2522
        %v2655 = vunpack.c.l.b16 %v2523
        %v2656 = vunpack.c.l.b16 %v2524
        %v2657 = vunpack.c.l.b16 %v2525
        %v2658 = vunpack.c.l.b16 %v2526
        %v2659 = vunpack.c.l.b16 %v2527
        %v2660 = vunpack.c.l.b16 %v2528
        %v2661 = vunpack.c.l.b16 %v2529
        %v2662 = vunpack.c.l.b16 %v2530
        %v2663 = vunpack.c.l.b16 %v2531
        %v2664 = vunpack.c.l.b16 %v2532
        %v2665 = vunpack.c.l.b16 %v2533
        %v2666 = vunpack.c.l.b16 %v2534
        %v2667 = vunpack.c.l.b16 %v2535
        %v2668 = vunpack.c.l.b16 %v2536
        %v2669 = vunpack.c.l.b16 %v2537
        %v2670 = vunpack.c.l.b16 %v2538
        %v2671 = vunpack.c.l.b16 %v2539
        %v2672 = vunpack.c.l.b16 %v2540
        %v2673 = vunpack.c.l.b16 %v2541
        %v2674 = vunpack.c.l.b16 %v2542
        %v2675 = vunpack.c.l.b16 %v2543
        %v2676 = vunpack.c.l.b16 %v2544
        %v2677 = vunpack.c.l.b16 %v2545
        %v2678 = vunpack.c.l.b16 %v2546
        %v2679 = vunpack.c.l.b16 %v2547
        %v2680 = vunpack.c.l.b16 %v2548
        %v2681 = vunpack.c.l.b16 %v2549
        %v2682 = vunpack.c.l.b16 %v2550
        %v2683 = vunpack.c.l.b16 %v2551
        %v2684 = vunpack.c.l.b16 %v2552
        %v2685 = vunpack.c.l.b16 %v2553
        %v2686 = vunpack.c.l.b16 %v2554
        %v2687 = vunpack.c.l.b16 %v2555
        %v2688 = vunpack.c.l.b16 %v2556
        %v2689 = vunpack.c.l.b16 %v2557
        %v2690 = vunpack.c.l.b16 %v2558
        %v2691 = vpack.c.b16 %v2628, %v2627
        %v2692 = vpack.c.b16 %v2630, %v2629
        %v2693 = vpack.c.b16 %v2632, %v2631
        %v2694 = vpack.c.b16 %v2634, %v2633
        %v2695 = vpack.c.b16 %v2636, %v2635
        %v2696 = vpack.c.b16 %v2638, %v2637
        %v2697 = vpack.c.b16 %v2640, %v2639
        %v2698 = vpack.c.b16 %v2642, %v2641
        %v2699 = vpack.c.b16 %v2644, %v2643
        %v2700 = vpack.c.b16 %v2646, %v2645
        %v2701 = vpack.c.b16 %v2648, %v2647
        %v2702 = vpack.c.b16 %v2650, %v2649
        %v2703 = vpack.c.b16 %v2652, %v2651
        %v2704 = vpack.c.b16 %v2654, %v2653
        %v2705 = vpack.c.b16 %v2656, %v2655
        %v2706 = vpack.c.b16 %v2658, %v2657
        %v2707 = vpack.c.b16 %v2660, %v2659
        %v2708 = vpack.c.b16 %v2662, %v2661
        %v2709 = vpack.c.b16 %v2664, %v2663
        %v2710 = vpack.c.b16 %v2666, %v2665
        %v2711 = vpack.c.b16 %v2668, %v2667
        %v2712 = vpack.c.b16 %v2670, %v2669
        %v2713 = vpack.c.b16 %v2672, %v2671
        %v2714 = vpack.c.b16 %v2674, %v2673
        %v2715 = vpack.c.b16 %v2676, %v2675
        %v2716 = vpack.c.b16 %v2678, %v2677
        %v2717 = vpack.c.b16 %v2680, %v2679
        %v2718 = vpack.c.b16 %v2682, %v2681
        %v2719 = vpack.c.b16 %v2684, %v2683
        %v2720 = vpack.c.b16 %v2686, %v2685
        %v2721 = vpack.c.b16 %v2688, %v2687
        %v2722 = vpack.c.b16 %v2690, %v2689
        %2755 = vmatprep.subr.bf16.mxu0 0
        %2756 = vmatpush1.bf16.msra.mxu0 %v2691
        %2757 = vmatprep.subr.bf16.mxu0 0
        %2758 = vmatpush1.bf16.msra.mxu0 %v2692
        %2759 = vmatprep.subr.bf16.mxu0 0
        %2760 = vmatpush1.bf16.msra.mxu0 %v2693
        %2761 = vmatprep.subr.bf16.mxu0 0
        %2762 = vmatpush1.bf16.msra.mxu0 %v2694
        %2763 = vmatprep.subr.bf16.mxu0 0
        %2764 = vmatpush1.bf16.msra.mxu0 %v2695
        %2765 = vmatprep.subr.bf16.mxu0 0
        %2766 = vmatpush1.bf16.msra.mxu0 %v2696
        %2767 = vmatprep.subr.bf16.mxu0 0
        %2768 = vmatpush1.bf16.msra.mxu0 %v2697
        %2769 = vmatprep.subr.bf16.mxu0 0
        %2770 = vmatpush1.bf16.msra.mxu0 %v2698
        %2771 = vmatprep.subr.bf16.mxu0 0
        %2772 = vmatpush1.bf16.msra.mxu0 %v2699
        %2773 = vmatprep.subr.bf16.mxu0 0
        %2774 = vmatpush1.bf16.msra.mxu0 %v2700
        %2775 = vmatprep.subr.bf16.mxu0 0
        %2776 = vmatpush1.bf16.msra.mxu0 %v2701
        %2777 = vmatprep.subr.bf16.mxu0 0
        %2778 = vmatpush1.bf16.msra.mxu0 %v2702
        %2779 = vmatprep.subr.bf16.mxu0 0
        %2780 = vmatpush1.bf16.msra.mxu0 %v2703
        %2781 = vmatprep.subr.bf16.mxu0 0
        %2782 = vmatpush1.bf16.msra.mxu0 %v2704
        %2783 = vmatprep.subr.bf16.mxu0 0
        %2784 = vmatpush1.bf16.msra.mxu0 %v2705
        %2785 = vmatprep.subr.bf16.mxu0 0
        %2786 = vmatpush1.bf16.msra.mxu0 %v2706
        %2787 = vmatprep.mubr.bf16.mxu0 %v2492
        %2788 = vmatmul.mubr.bf16.gmra.mrb[0].mxu0 %v2491
        %v2789 = vpop.f32.mrb[0].mxu0
        %v2790 = vadd.f32 %v2562, %v2789
        %v2791 = vpop.f32.mrb[0].mxu0
        %v2792 = vpop.f32.mrb[0].mxu0
        %v2793 = vadd.f32 %v2562, %v2792
        %v2794 = vpop.f32.mrb[0].mxu0
        %2795 = vdwg.mxu0
        %2796 = vmatprep.subr.bf16.mxu0 0
        %2797 = vmatpush1.bf16.msra.mxu0 %v2707
        %2798 = vmatprep.subr.bf16.mxu0 0
        %2799 = vmatpush1.bf16.msra.mxu0 %v2708
        %2800 = vmatprep.subr.bf16.mxu0 0
        %2801 = vmatpush1.bf16.msra.mxu0 %v2709
        %2802 = vmatprep.subr.bf16.mxu0 0
        %2803 = vmatpush1.bf16.msra.mxu0 %v2710
        %2804 = vmatprep.subr.bf16.mxu0 0
        %2805 = vmatpush1.bf16.msra.mxu0 %v2711
        %2806 = vmatprep.subr.bf16.mxu0 0
        %2807 = vmatpush1.bf16.msra.mxu0 %v2712
        %2808 = vmatprep.subr.bf16.mxu0 0
        %2809 = vmatpush1.bf16.msra.mxu0 %v2713
        %2810 = vmatprep.subr.bf16.mxu0 0
        %2811 = vmatpush1.bf16.msra.mxu0 %v2714
        %2812 = vmatprep.subr.bf16.mxu0 0
        %2813 = vmatpush1.bf16.msra.mxu0 %v2715
        %2814 = vmatprep.subr.bf16.mxu0 0
        %2815 = vmatpush1.bf16.msra.mxu0 %v2716
        %2816 = vmatprep.subr.bf16.mxu0 0
        %2817 = vmatpush1.bf16.msra.mxu0 %v2717
        %2818 = vmatprep.subr.bf16.mxu0 0
        %2819 = vmatpush1.bf16.msra.mxu0 %v2718
        %2820 = vmatprep.subr.bf16.mxu0 0
        %2821 = vmatpush1.bf16.msra.mxu0 %v2719
        %2822 = vmatprep.subr.bf16.mxu0 0
        %2823 = vmatpush1.bf16.msra.mxu0 %v2720
        %2824 = vmatprep.subr.bf16.mxu0 0
        %2825 = vmatpush1.bf16.msra.mxu0 %v2721
        %2826 = vmatprep.subr.bf16.mxu0 0
        %2827 = vmatpush1.bf16.msra.mxu0 %v2722
        %2828 = vmatprep.mubr.bf16.mxu0 %v2494
        %2829 = vmatmul.mubr.bf16.gmra.mrb[0].mxu0 %v2493
        %v2830 = vpop.f32.mrb[0].mxu0
        %v2831 = vadd.f32 %v2790, %v2830
        %v2832 = vpop.f32.mrb[0].mxu0
        %v2833 = vpop.f32.mrb[0].mxu0
        %v2834 = vadd.f32 %v2793, %v2833
        %v2835 = vpop.f32.mrb[0].mxu0
        %2836 = vdwg.mxu0
        %v2837 = vadd.f32 %v2096, %v2831
        %v2838 = vadd.f32 %v2097, %v2834
        %2839 = vst [vmem:[%s606] sm:$0xff] %v2837
        %2840 = vst [vmem:[%s606 + $0x8] sm:$0xff] %v2838
        %2841 = vst [vmem:[#allocation2] sm:$0xff] %v2837
        %2842 = vst [vmem:[#allocation2 + $0x8] sm:$0xff] %v2838
        %s2843 = sand.u32 %s289, 1
        %s2844 = scalar_lea.sflag [#allocation5], %s2843
        %s2845 = sand.u32 %s289, 1
        %s2846 = smul.addr %s2845, 16
        %s2847 = scalar_lea.vmem [#allocation15], %s2846
        // Predicated region
        $region93: #{tpu_custom_call.1} parent=59 // pred_check
          %p2848 = pneg %p299
        $region94: #{tpu_custom_call.1} parent=59 // pred_check_branch
          %2850 = sbr.rel (%p2848) target = $region96
        $region95: #{tpu_custom_call.1} parent=59 // pred_region
          %s2852 = ssub.s32 256, 256
          %2853 = vsyncadd %s2844, %s2852
          %s2854 = smul.addr %s36, 2
          %s2855 = smul.addr %s2854, 128
          %s2856 = scalar_lea.hbm %s10, %s2855
          %s2857 = sshll.u32 %s2847, 4
          %s2858 = int_to_ptr.vmem [resolvable:$true] %s2857
          %2863 = dma.vmem_to_hbm [thread:$0]  %s2858, 256, %s2856, %s2844, 128, 128, 8
        $region96: #{tpu_custom_call.1} parent=59 // pred_fallthru
          _
      $region60: #{tpu_custom_call.1} parent=5 // pred_fallthru
        _
      %p2864 = scmp.le.s32.totalorder 2, %s31
      // Predicated region
      $region97: #{tpu_custom_call.1} parent=5 // pred_check
        %p2865 = pneg %p2864
      $region98: #{tpu_custom_call.1} parent=5 // pred_check_branch
        %2867 = sbr.rel (%p2865) target = $region100
      $region99: #{tpu_custom_call.1} parent=5 // pred_region
        %s2868 = ssub.s32 %s31, 2
        // Predicated region
        $region101: #{tpu_custom_call.1} parent=99 // pred_check
          %p2869 = pneg %p305
        $region102: #{tpu_custom_call.1} parent=99 // pred_check_branch
          %2871 = sbr.rel (%p2869) target = $region104
        $region103: #{tpu_custom_call.1} parent=99 // pred_region
          %s2872 = sand.u32 %s290, 1
          %s2873 = scalar_lea.sflag [#allocation5], %s2872
          %s2874 = sand.u32 %s290, 1
          %s2875 = smul.addr %s2874, 16
          %s2876 = scalar_lea.vmem [#allocation15], %s2875
          %2877 = dma.done %s2873, 256
        $region104: #{tpu_custom_call.1} parent=99 // pred_fallthru
          _
      $region100: #{tpu_custom_call.1} parent=5 // pred_fallthru
        _
    $region6: #{tpu_custom_call.1} parent=1 // loop_footer
      %s35 = sadd.s32 1, %s31
    $region7: #{tpu_custom_call.1} parent=1 // loop_footer_branch
      %30 = sbr.rel target = $region3
    $region8: #{tpu_custom_call.1} parent=1 // loop_exit
      _
    %2878 = vsyncpa [#allocation4], 1
    %s2879 = scalar_lea.sflag [#allocation4], 1
    %2880 = vsyncpa %s2879, 1
    %2881 = vsyncpa [#allocation7], 1
    %s2882 = scalar_lea.sflag [#allocation7], 1
    %2883 = vsyncpa %s2882, 1
    %2884 = vsyncpa [#allocation10], 1
    %s2885 = scalar_lea.sflag [#allocation10], 1
    %2886 = vsyncpa %s2885, 1
    %2887 = vsyncpa [#allocation13], 1
    %s2888 = scalar_lea.sflag [#allocation13], 1
    %2889 = vsyncpa %s2888, 1
    %2890 = vsyncpa [#allocation5], 1
    %s2891 = scalar_lea.sflag [#allocation5], 1
    %2892 = vsyncpa %s2891, 1

</llo_original>
